<compile_context>
chip_gen: v6e
topology: v6e:2x2x1
jax: 0.10.0
libtpu: 0.0.40
codegen_flags: <defaults>
</compile_context>

<pallas_src>
import jax
import jax.numpy as jnp
import numpy as np
from jax import lax
from jax.experimental import pallas as pl
from jax.experimental.pallas import tpu as pltpu


COMPUTE_DTYPE = jnp.float32   # set to jnp.bfloat16 for bf16 MXU operands in production


class Args:
    def __init__(self):
        self.image_channel = 4
        self.conv_channels = [8, 16]
        self.kernel_size = [4, 4]
        self.enc_stride = [2, 2]
        self.enc_padding = [1, 1]
        self.dec_stride = [2, 2]
        self.dec_padding = [1, 1]


# --------------------------- static layer configs --------------------------- #
def layer_configs(args, H, W):
    """Static (Python-int) per-layer config; closed over, never traced by jit."""
    channels = [args.image_channel] + args.conv_channels
    cfgs = []
    h, w = H, W
    for i in range(len(args.conv_channels)):            # encoder: Conv2d + ReLU
        cin, cout = channels[i], channels[i + 1]
        k, s, p = args.kernel_size[i], args.enc_stride[i], args.enc_padding[i]
        ho, wo = (h + 2 * p - k) // s + 1, (w + 2 * p - k) // s + 1
        cfgs.append(dict(kind="conv", cin=cin, cout=cout, k=k, s=s, p=p,
                         h=h, w=w, ho=ho, wo=wo))
        h, w = ho, wo
    for i in range(1, len(args.conv_channels) + 1):      # decoder: ConvTranspose2d + ReLU
        cin, cout = channels[-i], channels[-(i + 1)]
        k, s, p = args.kernel_size[-i], args.dec_stride[i - 1], args.dec_padding[i - 1]
        ho, wo = (h - 1) * s - 2 * p + k, (w - 1) * s - 2 * p + k
        cfgs.append(dict(kind="convT", cin=cin, cout=cout, k=k, s=s, p=p,
                         h=h, w=w, ho=ho, wo=wo))
        h, w = ho, wo
    return cfgs


def init_params(cfgs, key):
    """PyTorch-layout weights: Conv2d (Cout,Cin,K,K); ConvTranspose2d (Cin,Cout,K,K)."""
    params = []
    for cfg in cfgs:
        cin, cout, k = cfg["cin"], cfg["cout"], cfg["k"]
        key, kw_, kb_ = jax.random.split(key, 3)
        scale = 1.0 / float(np.sqrt(cin * k * k))
        if cfg["kind"] == "conv":
            w = jax.random.normal(kw_, (cout, cin, k, k), jnp.float32) * scale
        else:
            w = jax.random.normal(kw_, (cin, cout, k, k), jnp.float32) * scale
        b = jax.random.normal(kb_, (cout,), jnp.float32) * scale
        params.append(dict(w=w, b=b))
    return params


# --------------------- one-time packing into S/T/b form --------------------- #
def pack_params(cfgs, params, dtype=jnp.float32):
    """Per layer build, once (outside the per-call hot path):
      S[kh] (Ho, H):        0/1 matrix, S[kh,ho,h]=1 iff row h feeds output row ho via tap kh
      T[kh] (W*Cin, Wo*Cout): conv weights with the W-dim stride/padding folded in
      b     (1, Wo*Cout):   bias tiled along Wo
    Conv:  h = ho*s - p + kh,   w = wo*s - p + kw
    ConvT: ho = h*s - p + kh,   wo = w*s - p + kw   (exact PyTorch semantics)
    """
    packed = []
    for cfg, prm in zip(cfgs, params):
        k, s, p = cfg["k"], cfg["s"], cfg["p"]
        cin, cout = cfg["cin"], cfg["cout"]
        H, W, Ho, Wo = cfg["h"], cfg["w"], cfg["ho"], cfg["wo"]

        if cfg["kind"] == "conv":
            w_kk = jnp.transpose(prm["w"], (2, 3, 1, 0))   # (K,K,Cin,Cout)
        else:
            w_kk = jnp.transpose(prm["w"], (2, 3, 0, 1))   # (K,K,Cin,Cout)

        S = np.zeros((k, Ho, H), np.float32)
        T = jnp.zeros((k, W * cin, Wo * cout), jnp.float32)

        if cfg["kind"] == "conv":
            for kh in range(k):
                for ho in range(Ho):
                    h_in = ho * s - p + kh
                    if 0 <= h_in < H:
                        S[kh, ho, h_in] = 1.0
            for wo in range(Wo):
                for kw in range(k):
                    w_in = wo * s - p + kw
                    if 0 <= w_in < W:
                        T = T.at[:, w_in * cin:(w_in + 1) * cin,
                                 wo * cout:(wo + 1) * cout].set(w_kk[:, kw])
        else:  # ConvTranspose2d
            for kh in range(k):
                for h_in in range(H):
                    ho = h_in * s - p + kh
                    if 0 <= ho < Ho:
                        S[kh, ho, h_in] = 1.0
            for w_in in range(W):
                for kw in range(k):
                    wo = w_in * s - p + kw
                    if 0 <= wo < Wo:
                        T = T.at[:, w_in * cin:(w_in + 1) * cin,
                                 wo * cout:(wo + 1) * cout].set(w_kk[:, kw])

        b_row = jnp.tile(prm["b"], Wo).reshape(1, Wo * cout)
        packed.append(dict(S=jnp.asarray(S, dtype),
                           T=T.astype(dtype),
                           b=b_row.astype(jnp.float32)))
    return packed


def _const_index_map(ndim):
    zeros = (0,) * ndim
    return lambda n: zeros


# ----------------------------- fused Pallas kernel --------------------------- #
def make_forward(cfgs, compute_dtype=jnp.float32):
    n_layers = len(cfgs)
    Hin, Win, Cin0 = cfgs[0]["h"], cfgs[0]["w"], cfgs[0]["cin"]
    Hout, Wout, CoutF = cfgs[-1]["ho"], cfgs[-1]["wo"], cfgs[-1]["cout"]

    def kernel(x_ref, *refs):
        o_ref = refs[-1]
        p_refs = refs[:-1]                       # (S, T, b) per layer
        x = x_ref[0].astype(compute_dtype)       # (H, W*Cin) for this sample
        for li in range(n_layers):               # static unroll: whole net in VMEM
            S_ref = p_refs[3 * li]
            T_ref = p_refs[3 * li + 1]
            b_ref = p_refs[3 * li + 2]
            k = S_ref.shape[0]
            acc = None
            for kh in range(k):                  # static unroll over kernel rows
                rows = jnp.dot(S_ref[kh], x, preferred_element_type=jnp.float32)
                part = jnp.dot(rows.astype(compute_dtype), T_ref[kh],
                               preferred_element_type=jnp.float32)
                acc = part if acc is None else acc + part
            x = jnp.maximum(acc + b_ref[...], 0.0).astype(compute_dtype)
        o_ref[0] = x.astype(o_ref.dtype)

    def forward(packed, x_nchw):
        N = x_nchw.shape[0]
        # NCHW -> NHWC -> (N, H, W*Cin): channels land on the 128-lane axis.
        x = jnp.transpose(x_nchw, (0, 2, 3, 1)).reshape(N, Hin, Win * Cin0)
        x = x.astype(compute_dtype)

        flat = [x]
        in_specs = [pl.BlockSpec((1, Hin, Win * Cin0), lambda n: (n, 0, 0))]
        flops = 0
        bytes_accessed = x.size * x.dtype.itemsize + N * Hout * Wout * CoutF * 4
        for lp in packed:
            for name in ("S", "T", "b"):
                arr = lp[name]
                flat.append(arr)
                in_specs.append(pl.BlockSpec(arr.shape, _const_index_map(arr.ndim)))
            k_, ho_, h_ = lp["S"].shape
            _, wc_, woc_ = lp["T"].shape
            flops += 2 * N * k_ * (ho_ * h_ * wc_ + ho_ * wc_ * woc_)
            bytes_accessed += sum(int(a.size) * a.dtype.itemsize for a in lp.values())

        out = pl.pallas_call(
            kernel,
            out_shape=jax.ShapeDtypeStruct((N, Hout, Wout * CoutF), jnp.float32),
            grid=(N,),
            in_specs=in_specs,
            out_specs=pl.BlockSpec((1, Hout, Wout * CoutF), lambda n: (n, 0, 0)),
            compiler_params=pltpu.CompilerParams(
                dimension_semantics=("parallel",)),   # v7x megacore splits the batch
            cost_estimate=pl.CostEstimate(flops=int(flops), transcendentals=0,
                                          bytes_accessed=int(bytes_accessed)),
        )(*flat)

        out = out.reshape(N, Hout, Wout, CoutF)
        return jnp.transpose(out, (0, 3, 1, 2))       # back to NCHW

    return forward


# ----------------------------- pure-JAX reference ---------------------------- #
def reference_forward(cfgs, params, x_nchw):
    dn = ("NHWC", "HWIO", "NHWC")
    x = jnp.transpose(x_nchw, (0, 2, 3, 1))
    for cfg, prm in zip(cfgs, params):
        k, s, p = cfg["k"], cfg["s"], cfg["p"]
        if cfg["kind"] == "conv":
            w_hwio = jnp.transpose(prm["w"], (2, 3, 1, 0))
            x = lax.conv_general_dilated(x, w_hwio, (s, s), [(p, p), (p, p)],
                                         dimension_numbers=dn,
                                         precision=lax.Precision.HIGHEST)
        else:
            assert p <= k - 1, "transpose-conv lowering assumes padding <= kernel-1"
            w_hwio = jnp.transpose(prm["w"][:, :, ::-1, ::-1], (2, 3, 0, 1))
            pp = k - 1 - p
            x = lax.conv_general_dilated(x, w_hwio, (1, 1), [(pp, pp), (pp, pp)],
                                         lhs_dilation=(s, s), dimension_numbers=dn,
                                         precision=lax.Precision.HIGHEST)
        x = jnp.maximum(x + prm["b"], 0.0)
    return jnp.transpose(x, (0, 3, 1, 2))


if __name__ == "__main__":
    args = Args()
    N, H, W = 2, 16, 16
    cfgs = layer_configs(args, H, W)

    key = jax.random.PRNGKey(0)
    key, kx = jax.random.split(key)
    x = jax.random.normal(kx, (N, args.image_channel, H, W), jnp.float32)  # NCHW

    params = init_params(cfgs, key)
    packed = pack_params(cfgs, params, dtype=COMPUTE_DTYPE)   # one-time weight packing

    fwd = jax.jit(make_forward(cfgs, compute_dtype=COMPUTE_DTYPE))
    out = jax.block_until_ready(fwd(packed, x))
    assert out.shape == (N, args.image_channel, H, W), out.shape

    ref = reference_forward(cfgs, params, x)
    # Tolerance covers MXU default-precision (bf16-pass) rounding differences between
    # the Pallas matmul path and the XLA convolution reference.
    assert jnp.allclose(out, ref, atol=2e-2, rtol=2e-2), float(jnp.max(jnp.abs(out - ref)))

    print("KERNEL_OK")
</pallas_src>

<mosaic_0001>
module attributes {stable_mosaic.version = 11 : i64} {
  func.func @kernel(%arg0: i32, %arg1: memref<1x16x64xf32, #tpu.memory_space<vmem>>, %arg2: memref<4x8x16xf32, #tpu.memory_space<vmem>>, %arg3: memref<4x64x64xf32, #tpu.memory_space<vmem>>, %arg4: memref<1x64xf32, #tpu.memory_space<vmem>>, %arg5: memref<4x4x8xf32, #tpu.memory_space<vmem>>, %arg6: memref<4x64x64xf32, #tpu.memory_space<vmem>>, %arg7: memref<1x64xf32, #tpu.memory_space<vmem>>, %arg8: memref<4x8x4xf32, #tpu.memory_space<vmem>>, %arg9: memref<4x64x64xf32, #tpu.memory_space<vmem>>, %arg10: memref<1x64xf32, #tpu.memory_space<vmem>>, %arg11: memref<4x16x8xf32, #tpu.memory_space<vmem>>, %arg12: memref<4x64x64xf32, #tpu.memory_space<vmem>>, %arg13: memref<1x64xf32, #tpu.memory_space<vmem>>, %arg14: memref<1x16x64xf32, #tpu.memory_space<vmem>>) attributes {dimension_semantics = [#tpu.dimension_semantics<parallel>], iteration_bounds = array<i64: 2>, scalar_prefetch = 0 : i64, scratch_operands = 0 : i64, tpu.core_type = #tpu.core_type<tc>, window_params = [{transform_indices = @transform_0, window_bounds = array<i64: 1, 16, 64>}, {pipeline_mode = #tpu.pipeline_mode<synchronous>, transform_indices = @transform_1, window_bounds = array<i64: 4, 8, 16>}, {pipeline_mode = #tpu.pipeline_mode<synchronous>, transform_indices = @transform_2, window_bounds = array<i64: 4, 64, 64>}, {pipeline_mode = #tpu.pipeline_mode<synchronous>, transform_indices = @transform_3, window_bounds = array<i64: 1, 64>}, {pipeline_mode = #tpu.pipeline_mode<synchronous>, transform_indices = @transform_4, window_bounds = array<i64: 4, 4, 8>}, {pipeline_mode = #tpu.pipeline_mode<synchronous>, transform_indices = @transform_5, window_bounds = array<i64: 4, 64, 64>}, {pipeline_mode = #tpu.pipeline_mode<synchronous>, transform_indices = @transform_6, window_bounds = array<i64: 1, 64>}, {pipeline_mode = #tpu.pipeline_mode<synchronous>, transform_indices = @transform_7, window_bounds = array<i64: 4, 8, 4>}, {pipeline_mode = #tpu.pipeline_mode<synchronous>, transform_indices = @transform_8, window_bounds = array<i64: 4, 64, 64>}, {pipeline_mode = #tpu.pipeline_mode<synchronous>, transform_indices = @transform_9, window_bounds = array<i64: 1, 64>}, {pipeline_mode = #tpu.pipeline_mode<synchronous>, transform_indices = @transform_10, window_bounds = array<i64: 4, 16, 8>}, {pipeline_mode = #tpu.pipeline_mode<synchronous>, transform_indices = @transform_11, window_bounds = array<i64: 4, 64, 64>}, {pipeline_mode = #tpu.pipeline_mode<synchronous>, transform_indices = @transform_12, window_bounds = array<i64: 1, 64>}, {transform_indices = @transform_13, window_bounds = array<i64: 1, 16, 64>}]} {
    %c0 = arith.constant 0 : index
    %c0_0 = arith.constant 0 : index
    %c0_1 = arith.constant 0 : index
    %0 = vector.load %arg1[%c0, %c0_0, %c0_1] : memref<1x16x64xf32, #tpu.memory_space<vmem>>, vector<1x16x64xf32>
    %1 = vector.shape_cast %0 : vector<1x16x64xf32> to vector<16x64xf32>
    %c0_2 = arith.constant 0 : index
    %c0_3 = arith.constant 0 : index
    %c0_4 = arith.constant 0 : index
    %2 = vector.load %arg2[%c0_2, %c0_3, %c0_4] : memref<4x8x16xf32, #tpu.memory_space<vmem>>, vector<1x8x16xf32>
    %3 = vector.shape_cast %2 : vector<1x8x16xf32> to vector<8x16xf32>
    %cst = arith.constant dense<0.000000e+00> : vector<8x64xf32>
    %4 = tpu.matmul %3, %1, %cst {dimension_numbers = #tpu.dot_dimension_numbers<[1], [0], [0], [1], [0, 0, 1, 1], [], []>} : vector<8x16xf32>, vector<16x64xf32>, vector<8x64xf32> -> vector<8x64xf32>
    %c0_5 = arith.constant 0 : index
    %c0_6 = arith.constant 0 : index
    %c0_7 = arith.constant 0 : index
    %5 = vector.load %arg3[%c0_5, %c0_6, %c0_7] : memref<4x64x64xf32, #tpu.memory_space<vmem>>, vector<1x64x64xf32>
    %6 = vector.shape_cast %5 : vector<1x64x64xf32> to vector<64x64xf32>
    %cst_8 = arith.constant dense<0.000000e+00> : vector<8x64xf32>
    %7 = tpu.matmul %4, %6, %cst_8 {dimension_numbers = #tpu.dot_dimension_numbers<[1], [0], [0], [1], [0, 0, 1, 1], [], []>} : vector<8x64xf32>, vector<64x64xf32>, vector<8x64xf32> -> vector<8x64xf32>
    %c1 = arith.constant 1 : index
    %c0_9 = arith.constant 0 : index
    %c0_10 = arith.constant 0 : index
    %8 = vector.load %arg2[%c1, %c0_9, %c0_10] : memref<4x8x16xf32, #tpu.memory_space<vmem>>, vector<1x8x16xf32>
    %9 = vector.shape_cast %8 : vector<1x8x16xf32> to vector<8x16xf32>
    %cst_11 = arith.constant dense<0.000000e+00> : vector<8x64xf32>
    %10 = tpu.matmul %9, %1, %cst_11 {dimension_numbers = #tpu.dot_dimension_numbers<[1], [0], [0], [1], [0, 0, 1, 1], [], []>} : vector<8x16xf32>, vector<16x64xf32>, vector<8x64xf32> -> vector<8x64xf32>
    %c1_12 = arith.constant 1 : index
    %c0_13 = arith.constant 0 : index
    %c0_14 = arith.constant 0 : index
    %11 = vector.load %arg3[%c1_12, %c0_13, %c0_14] : memref<4x64x64xf32, #tpu.memory_space<vmem>>, vector<1x64x64xf32>
    %12 = vector.shape_cast %11 : vector<1x64x64xf32> to vector<64x64xf32>
    %cst_15 = arith.constant dense<0.000000e+00> : vector<8x64xf32>
    %13 = tpu.matmul %10, %12, %cst_15 {dimension_numbers = #tpu.dot_dimension_numbers<[1], [0], [0], [1], [0, 0, 1, 1], [], []>} : vector<8x64xf32>, vector<64x64xf32>, vector<8x64xf32> -> vector<8x64xf32>
    %14 = arith.addf %7, %13 : vector<8x64xf32>
    %c2 = arith.constant 2 : index
    %c0_16 = arith.constant 0 : index
    %c0_17 = arith.constant 0 : index
    %15 = vector.load %arg2[%c2, %c0_16, %c0_17] : memref<4x8x16xf32, #tpu.memory_space<vmem>>, vector<1x8x16xf32>
    %16 = vector.shape_cast %15 : vector<1x8x16xf32> to vector<8x16xf32>
    %cst_18 = arith.constant dense<0.000000e+00> : vector<8x64xf32>
    %17 = tpu.matmul %16, %1, %cst_18 {dimension_numbers = #tpu.dot_dimension_numbers<[1], [0], [0], [1], [0, 0, 1, 1], [], []>} : vector<8x16xf32>, vector<16x64xf32>, vector<8x64xf32> -> vector<8x64xf32>
    %c2_19 = arith.constant 2 : index
    %c0_20 = arith.constant 0 : index
    %c0_21 = arith.constant 0 : index
    %18 = vector.load %arg3[%c2_19, %c0_20, %c0_21] : memref<4x64x64xf32, #tpu.memory_space<vmem>>, vector<1x64x64xf32>
    %19 = vector.shape_cast %18 : vector<1x64x64xf32> to vector<64x64xf32>
    %cst_22 = arith.constant dense<0.000000e+00> : vector<8x64xf32>
    %20 = tpu.matmul %17, %19, %cst_22 {dimension_numbers = #tpu.dot_dimension_numbers<[1], [0], [0], [1], [0, 0, 1, 1], [], []>} : vector<8x64xf32>, vector<64x64xf32>, vector<8x64xf32> -> vector<8x64xf32>
    %21 = arith.addf %14, %20 : vector<8x64xf32>
    %c3 = arith.constant 3 : index
    %c0_23 = arith.constant 0 : index
    %c0_24 = arith.constant 0 : index
    %22 = vector.load %arg2[%c3, %c0_23, %c0_24] : memref<4x8x16xf32, #tpu.memory_space<vmem>>, vector<1x8x16xf32>
    %23 = vector.shape_cast %22 : vector<1x8x16xf32> to vector<8x16xf32>
    %cst_25 = arith.constant dense<0.000000e+00> : vector<8x64xf32>
    %24 = tpu.matmul %23, %1, %cst_25 {dimension_numbers = #tpu.dot_dimension_numbers<[1], [0], [0], [1], [0, 0, 1, 1], [], []>} : vector<8x16xf32>, vector<16x64xf32>, vector<8x64xf32> -> vector<8x64xf32>
    %c3_26 = arith.constant 3 : index
    %c0_27 = arith.constant 0 : index
    %c0_28 = arith.constant 0 : index
    %25 = vector.load %arg3[%c3_26, %c0_27, %c0_28] : memref<4x64x64xf32, #tpu.memory_space<vmem>>, vector<1x64x64xf32>
    %26 = vector.shape_cast %25 : vector<1x64x64xf32> to vector<64x64xf32>
    %cst_29 = arith.constant dense<0.000000e+00> : vector<8x64xf32>
    %27 = tpu.matmul %24, %26, %cst_29 {dimension_numbers = #tpu.dot_dimension_numbers<[1], [0], [0], [1], [0, 0, 1, 1], [], []>} : vector<8x64xf32>, vector<64x64xf32>, vector<8x64xf32> -> vector<8x64xf32>
    %28 = arith.addf %21, %27 : vector<8x64xf32>
    %c0_30 = arith.constant 0 : index
    %c0_31 = arith.constant 0 : index
    %29 = vector.load %arg4[%c0_30, %c0_31] : memref<1x64xf32, #tpu.memory_space<vmem>>, vector<1x64xf32>
    %30 = vector.broadcast %29 : vector<1x64xf32> to vector<8x64xf32>
    %31 = arith.addf %28, %30 : vector<8x64xf32>
    %cst_32 = arith.constant 0.000000e+00 : f32
    %32 = vector.broadcast %cst_32 : f32 to vector<8x64xf32>
    %33 = arith.maximumf %31, %32 : vector<8x64xf32>
    %c0_33 = arith.constant 0 : index
    %c0_34 = arith.constant 0 : index
    %c0_35 = arith.constant 0 : index
    %34 = vector.load %arg5[%c0_33, %c0_34, %c0_35] : memref<4x4x8xf32, #tpu.memory_space<vmem>>, vector<1x4x8xf32>
    %35 = vector.shape_cast %34 : vector<1x4x8xf32> to vector<4x8xf32>
    %cst_36 = arith.constant dense<0.000000e+00> : vector<4x64xf32>
    %36 = tpu.matmul %35, %33, %cst_36 {dimension_numbers = #tpu.dot_dimension_numbers<[1], [0], [0], [1], [0, 0, 1, 1], [], []>} : vector<4x8xf32>, vector<8x64xf32>, vector<4x64xf32> -> vector<4x64xf32>
    %c0_37 = arith.constant 0 : index
    %c0_38 = arith.constant 0 : index
    %c0_39 = arith.constant 0 : index
    %37 = vector.load %arg6[%c0_37, %c0_38, %c0_39] : memref<4x64x64xf32, #tpu.memory_space<vmem>>, vector<1x64x64xf32>
    %38 = vector.shape_cast %37 : vector<1x64x64xf32> to vector<64x64xf32>
    %cst_40 = arith.constant dense<0.000000e+00> : vector<4x64xf32>
    %39 = tpu.matmul %36, %38, %cst_40 {dimension_numbers = #tpu.dot_dimension_numbers<[1], [0], [0], [1], [0, 0, 1, 1], [], []>} : vector<4x64xf32>, vector<64x64xf32>, vector<4x64xf32> -> vector<4x64xf32>
    %c1_41 = arith.constant 1 : index
    %c0_42 = arith.constant 0 : index
    %c0_43 = arith.constant 0 : index
    %40 = vector.load %arg5[%c1_41, %c0_42, %c0_43] : memref<4x4x8xf32, #tpu.memory_space<vmem>>, vector<1x4x8xf32>
    %41 = vector.shape_cast %40 : vector<1x4x8xf32> to vector<4x8xf32>
    %cst_44 = arith.constant dense<0.000000e+00> : vector<4x64xf32>
    %42 = tpu.matmul %41, %33, %cst_44 {dimension_numbers = #tpu.dot_dimension_numbers<[1], [0], [0], [1], [0, 0, 1, 1], [], []>} : vector<4x8xf32>, vector<8x64xf32>, vector<4x64xf32> -> vector<4x64xf32>
    %c1_45 = arith.constant 1 : index
    %c0_46 = arith.constant 0 : index
    %c0_47 = arith.constant 0 : index
    %43 = vector.load %arg6[%c1_45, %c0_46, %c0_47] : memref<4x64x64xf32, #tpu.memory_space<vmem>>, vector<1x64x64xf32>
    %44 = vector.shape_cast %43 : vector<1x64x64xf32> to vector<64x64xf32>
    %cst_48 = arith.constant dense<0.000000e+00> : vector<4x64xf32>
    %45 = tpu.matmul %42, %44, %cst_48 {dimension_numbers = #tpu.dot_dimension_numbers<[1], [0], [0], [1], [0, 0, 1, 1], [], []>} : vector<4x64xf32>, vector<64x64xf32>, vector<4x64xf32> -> vector<4x64xf32>
    %46 = arith.addf %39, %45 : vector<4x64xf32>
    %c2_49 = arith.constant 2 : index
    %c0_50 = arith.constant 0 : index
    %c0_51 = arith.constant 0 : index
    %47 = vector.load %arg5[%c2_49, %c0_50, %c0_51] : memref<4x4x8xf32, #tpu.memory_space<vmem>>, vector<1x4x8xf32>
    %48 = vector.shape_cast %47 : vector<1x4x8xf32> to vector<4x8xf32>
    %cst_52 = arith.constant dense<0.000000e+00> : vector<4x64xf32>
    %49 = tpu.matmul %48, %33, %cst_52 {dimension_numbers = #tpu.dot_dimension_numbers<[1], [0], [0], [1], [0, 0, 1, 1], [], []>} : vector<4x8xf32>, vector<8x64xf32>, vector<4x64xf32> -> vector<4x64xf32>
    %c2_53 = arith.constant 2 : index
    %c0_54 = arith.constant 0 : index
    %c0_55 = arith.constant 0 : index
    %50 = vector.load %arg6[%c2_53, %c0_54, %c0_55] : memref<4x64x64xf32, #tpu.memory_space<vmem>>, vector<1x64x64xf32>
    %51 = vector.shape_cast %50 : vector<1x64x64xf32> to vector<64x64xf32>
    %cst_56 = arith.constant dense<0.000000e+00> : vector<4x64xf32>
    %52 = tpu.matmul %49, %51, %cst_56 {dimension_numbers = #tpu.dot_dimension_numbers<[1], [0], [0], [1], [0, 0, 1, 1], [], []>} : vector<4x64xf32>, vector<64x64xf32>, vector<4x64xf32> -> vector<4x64xf32>
    %53 = arith.addf %46, %52 : vector<4x64xf32>
    %c3_57 = arith.constant 3 : index
    %c0_58 = arith.constant 0 : index
    %c0_59 = arith.constant 0 : index
    %54 = vector.load %arg5[%c3_57, %c0_58, %c0_59] : memref<4x4x8xf32, #tpu.memory_space<vmem>>, vector<1x4x8xf32>
    %55 = vector.shape_cast %54 : vector<1x4x8xf32> to vector<4x8xf32>
    %cst_60 = arith.constant dense<0.000000e+00> : vector<4x64xf32>
    %56 = tpu.matmul %55, %33, %cst_60 {dimension_numbers = #tpu.dot_dimension_numbers<[1], [0], [0], [1], [0, 0, 1, 1], [], []>} : vector<4x8xf32>, vector<8x64xf32>, vector<4x64xf32> -> vector<4x64xf32>
    %c3_61 = arith.constant 3 : index
    %c0_62 = arith.constant 0 : index
    %c0_63 = arith.constant 0 : index
    %57 = vector.load %arg6[%c3_61, %c0_62, %c0_63] : memref<4x64x64xf32, #tpu.memory_space<vmem>>, vector<1x64x64xf32>
    %58 = vector.shape_cast %57 : vector<1x64x64xf32> to vector<64x64xf32>
    %cst_64 = arith.constant dense<0.000000e+00> : vector<4x64xf32>
    %59 = tpu.matmul %56, %58, %cst_64 {dimension_numbers = #tpu.dot_dimension_numbers<[1], [0], [0], [1], [0, 0, 1, 1], [], []>} : vector<4x64xf32>, vector<64x64xf32>, vector<4x64xf32> -> vector<4x64xf32>
    %60 = arith.addf %53, %59 : vector<4x64xf32>
    %c0_65 = arith.constant 0 : index
    %c0_66 = arith.constant 0 : index
    %61 = vector.load %arg7[%c0_65, %c0_66] : memref<1x64xf32, #tpu.memory_space<vmem>>, vector<1x64xf32>
    %62 = vector.broadcast %61 : vector<1x64xf32> to vector<4x64xf32>
    %63 = arith.addf %60, %62 : vector<4x64xf32>
    %cst_67 = arith.constant 0.000000e+00 : f32
    %64 = vector.broadcast %cst_67 : f32 to vector<4x64xf32>
    %65 = arith.maximumf %63, %64 : vector<4x64xf32>
    %c0_68 = arith.constant 0 : index
    %c0_69 = arith.constant 0 : index
    %c0_70 = arith.constant 0 : index
    %66 = vector.load %arg8[%c0_68, %c0_69, %c0_70] : memref<4x8x4xf32, #tpu.memory_space<vmem>>, vector<1x8x4xf32>
    %67 = vector.shape_cast %66 : vector<1x8x4xf32> to vector<8x4xf32>
    %cst_71 = arith.constant dense<0.000000e+00> : vector<8x64xf32>
    %68 = tpu.matmul %67, %65, %cst_71 {dimension_numbers = #tpu.dot_dimension_numbers<[1], [0], [0], [1], [0, 0, 1, 1], [], []>} : vector<8x4xf32>, vector<4x64xf32>, vector<8x64xf32> -> vector<8x64xf32>
    %c0_72 = arith.constant 0 : index
    %c0_73 = arith.constant 0 : index
    %c0_74 = arith.constant 0 : index
    %69 = vector.load %arg9[%c0_72, %c0_73, %c0_74] : memref<4x64x64xf32, #tpu.memory_space<vmem>>, vector<1x64x64xf32>
    %70 = vector.shape_cast %69 : vector<1x64x64xf32> to vector<64x64xf32>
    %cst_75 = arith.constant dense<0.000000e+00> : vector<8x64xf32>
    %71 = tpu.matmul %68, %70, %cst_75 {dimension_numbers = #tpu.dot_dimension_numbers<[1], [0], [0], [1], [0, 0, 1, 1], [], []>} : vector<8x64xf32>, vector<64x64xf32>, vector<8x64xf32> -> vector<8x64xf32>
    %c1_76 = arith.constant 1 : index
    %c0_77 = arith.constant 0 : index
    %c0_78 = arith.constant 0 : index
    %72 = vector.load %arg8[%c1_76, %c0_77, %c0_78] : memref<4x8x4xf32, #tpu.memory_space<vmem>>, vector<1x8x4xf32>
    %73 = vector.shape_cast %72 : vector<1x8x4xf32> to vector<8x4xf32>
    %cst_79 = arith.constant dense<0.000000e+00> : vector<8x64xf32>
    %74 = tpu.matmul %73, %65, %cst_79 {dimension_numbers = #tpu.dot_dimension_numbers<[1], [0], [0], [1], [0, 0, 1, 1], [], []>} : vector<8x4xf32>, vector<4x64xf32>, vector<8x64xf32> -> vector<8x64xf32>
    %c1_80 = arith.constant 1 : index
    %c0_81 = arith.constant 0 : index
    %c0_82 = arith.constant 0 : index
    %75 = vector.load %arg9[%c1_80, %c0_81, %c0_82] : memref<4x64x64xf32, #tpu.memory_space<vmem>>, vector<1x64x64xf32>
    %76 = vector.shape_cast %75 : vector<1x64x64xf32> to vector<64x64xf32>
    %cst_83 = arith.constant dense<0.000000e+00> : vector<8x64xf32>
    %77 = tpu.matmul %74, %76, %cst_83 {dimension_numbers = #tpu.dot_dimension_numbers<[1], [0], [0], [1], [0, 0, 1, 1], [], []>} : vector<8x64xf32>, vector<64x64xf32>, vector<8x64xf32> -> vector<8x64xf32>
    %78 = arith.addf %71, %77 : vector<8x64xf32>
    %c2_84 = arith.constant 2 : index
    %c0_85 = arith.constant 0 : index
    %c0_86 = arith.constant 0 : index
    %79 = vector.load %arg8[%c2_84, %c0_85, %c0_86] : memref<4x8x4xf32, #tpu.memory_space<vmem>>, vector<1x8x4xf32>
    %80 = vector.shape_cast %79 : vector<1x8x4xf32> to vector<8x4xf32>
    %cst_87 = arith.constant dense<0.000000e+00> : vector<8x64xf32>
    %81 = tpu.matmul %80, %65, %cst_87 {dimension_numbers = #tpu.dot_dimension_numbers<[1], [0], [0], [1], [0, 0, 1, 1], [], []>} : vector<8x4xf32>, vector<4x64xf32>, vector<8x64xf32> -> vector<8x64xf32>
    %c2_88 = arith.constant 2 : index
    %c0_89 = arith.constant 0 : index
    %c0_90 = arith.constant 0 : index
    %82 = vector.load %arg9[%c2_88, %c0_89, %c0_90] : memref<4x64x64xf32, #tpu.memory_space<vmem>>, vector<1x64x64xf32>
    %83 = vector.shape_cast %82 : vector<1x64x64xf32> to vector<64x64xf32>
    %cst_91 = arith.constant dense<0.000000e+00> : vector<8x64xf32>
    %84 = tpu.matmul %81, %83, %cst_91 {dimension_numbers = #tpu.dot_dimension_numbers<[1], [0], [0], [1], [0, 0, 1, 1], [], []>} : vector<8x64xf32>, vector<64x64xf32>, vector<8x64xf32> -> vector<8x64xf32>
    %85 = arith.addf %78, %84 : vector<8x64xf32>
    %c3_92 = arith.constant 3 : index
    %c0_93 = arith.constant 0 : index
    %c0_94 = arith.constant 0 : index
    %86 = vector.load %arg8[%c3_92, %c0_93, %c0_94] : memref<4x8x4xf32, #tpu.memory_space<vmem>>, vector<1x8x4xf32>
    %87 = vector.shape_cast %86 : vector<1x8x4xf32> to vector<8x4xf32>
    %cst_95 = arith.constant dense<0.000000e+00> : vector<8x64xf32>
    %88 = tpu.matmul %87, %65, %cst_95 {dimension_numbers = #tpu.dot_dimension_numbers<[1], [0], [0], [1], [0, 0, 1, 1], [], []>} : vector<8x4xf32>, vector<4x64xf32>, vector<8x64xf32> -> vector<8x64xf32>
    %c3_96 = arith.constant 3 : index
    %c0_97 = arith.constant 0 : index
    %c0_98 = arith.constant 0 : index
    %89 = vector.load %arg9[%c3_96, %c0_97, %c0_98] : memref<4x64x64xf32, #tpu.memory_space<vmem>>, vector<1x64x64xf32>
    %90 = vector.shape_cast %89 : vector<1x64x64xf32> to vector<64x64xf32>
    %cst_99 = arith.constant dense<0.000000e+00> : vector<8x64xf32>
    %91 = tpu.matmul %88, %90, %cst_99 {dimension_numbers = #tpu.dot_dimension_numbers<[1], [0], [0], [1], [0, 0, 1, 1], [], []>} : vector<8x64xf32>, vector<64x64xf32>, vector<8x64xf32> -> vector<8x64xf32>
    %92 = arith.addf %85, %91 : vector<8x64xf32>
    %c0_100 = arith.constant 0 : index
    %c0_101 = arith.constant 0 : index
    %93 = vector.load %arg10[%c0_100, %c0_101] : memref<1x64xf32, #tpu.memory_space<vmem>>, vector<1x64xf32>
    %94 = vector.broadcast %93 : vector<1x64xf32> to vector<8x64xf32>
    %95 = arith.addf %92, %94 : vector<8x64xf32>
    %cst_102 = arith.constant 0.000000e+00 : f32
    %96 = vector.broadcast %cst_102 : f32 to vector<8x64xf32>
    %97 = arith.maximumf %95, %96 : vector<8x64xf32>
    %c0_103 = arith.constant 0 : index
    %c0_104 = arith.constant 0 : index
    %c0_105 = arith.constant 0 : index
    %98 = vector.load %arg11[%c0_103, %c0_104, %c0_105] : memref<4x16x8xf32, #tpu.memory_space<vmem>>, vector<1x16x8xf32>
    %99 = vector.shape_cast %98 : vector<1x16x8xf32> to vector<16x8xf32>
    %cst_106 = arith.constant dense<0.000000e+00> : vector<16x64xf32>
    %100 = tpu.matmul %99, %97, %cst_106 {dimension_numbers = #tpu.dot_dimension_numbers<[1], [0], [0], [1], [0, 0, 1, 1], [], []>} : vector<16x8xf32>, vector<8x64xf32>, vector<16x64xf32> -> vector<16x64xf32>
    %c0_107 = arith.constant 0 : index
    %c0_108 = arith.constant 0 : index
    %c0_109 = arith.constant 0 : index
    %101 = vector.load %arg12[%c0_107, %c0_108, %c0_109] : memref<4x64x64xf32, #tpu.memory_space<vmem>>, vector<1x64x64xf32>
    %102 = vector.shape_cast %101 : vector<1x64x64xf32> to vector<64x64xf32>
    %cst_110 = arith.constant dense<0.000000e+00> : vector<16x64xf32>
    %103 = tpu.matmul %100, %102, %cst_110 {dimension_numbers = #tpu.dot_dimension_numbers<[1], [0], [0], [1], [0, 0, 1, 1], [], []>} : vector<16x64xf32>, vector<64x64xf32>, vector<16x64xf32> -> vector<16x64xf32>
    %c1_111 = arith.constant 1 : index
    %c0_112 = arith.constant 0 : index
    %c0_113 = arith.constant 0 : index
    %104 = vector.load %arg11[%c1_111, %c0_112, %c0_113] : memref<4x16x8xf32, #tpu.memory_space<vmem>>, vector<1x16x8xf32>
    %105 = vector.shape_cast %104 : vector<1x16x8xf32> to vector<16x8xf32>
    %cst_114 = arith.constant dense<0.000000e+00> : vector<16x64xf32>
    %106 = tpu.matmul %105, %97, %cst_114 {dimension_numbers = #tpu.dot_dimension_numbers<[1], [0], [0], [1], [0, 0, 1, 1], [], []>} : vector<16x8xf32>, vector<8x64xf32>, vector<16x64xf32> -> vector<16x64xf32>
    %c1_115 = arith.constant 1 : index
    %c0_116 = arith.constant 0 : index
    %c0_117 = arith.constant 0 : index
    %107 = vector.load %arg12[%c1_115, %c0_116, %c0_117] : memref<4x64x64xf32, #tpu.memory_space<vmem>>, vector<1x64x64xf32>
    %108 = vector.shape_cast %107 : vector<1x64x64xf32> to vector<64x64xf32>
    %cst_118 = arith.constant dense<0.000000e+00> : vector<16x64xf32>
    %109 = tpu.matmul %106, %108, %cst_118 {dimension_numbers = #tpu.dot_dimension_numbers<[1], [0], [0], [1], [0, 0, 1, 1], [], []>} : vector<16x64xf32>, vector<64x64xf32>, vector<16x64xf32> -> vector<16x64xf32>
    %110 = arith.addf %103, %109 : vector<16x64xf32>
    %c2_119 = arith.constant 2 : index
    %c0_120 = arith.constant 0 : index
    %c0_121 = arith.constant 0 : index
    %111 = vector.load %arg11[%c2_119, %c0_120, %c0_121] : memref<4x16x8xf32, #tpu.memory_space<vmem>>, vector<1x16x8xf32>
    %112 = vector.shape_cast %111 : vector<1x16x8xf32> to vector<16x8xf32>
    %cst_122 = arith.constant dense<0.000000e+00> : vector<16x64xf32>
    %113 = tpu.matmul %112, %97, %cst_122 {dimension_numbers = #tpu.dot_dimension_numbers<[1], [0], [0], [1], [0, 0, 1, 1], [], []>} : vector<16x8xf32>, vector<8x64xf32>, vector<16x64xf32> -> vector<16x64xf32>
    %c2_123 = arith.constant 2 : index
    %c0_124 = arith.constant 0 : index
    %c0_125 = arith.constant 0 : index
    %114 = vector.load %arg12[%c2_123, %c0_124, %c0_125] : memref<4x64x64xf32, #tpu.memory_space<vmem>>, vector<1x64x64xf32>
    %115 = vector.shape_cast %114 : vector<1x64x64xf32> to vector<64x64xf32>
    %cst_126 = arith.constant dense<0.000000e+00> : vector<16x64xf32>
    %116 = tpu.matmul %113, %115, %cst_126 {dimension_numbers = #tpu.dot_dimension_numbers<[1], [0], [0], [1], [0, 0, 1, 1], [], []>} : vector<16x64xf32>, vector<64x64xf32>, vector<16x64xf32> -> vector<16x64xf32>
    %117 = arith.addf %110, %116 : vector<16x64xf32>
    %c3_127 = arith.constant 3 : index
    %c0_128 = arith.constant 0 : index
    %c0_129 = arith.constant 0 : index
    %118 = vector.load %arg11[%c3_127, %c0_128, %c0_129] : memref<4x16x8xf32, #tpu.memory_space<vmem>>, vector<1x16x8xf32>
    %119 = vector.shape_cast %118 : vector<1x16x8xf32> to vector<16x8xf32>
    %cst_130 = arith.constant dense<0.000000e+00> : vector<16x64xf32>
    %120 = tpu.matmul %119, %97, %cst_130 {dimension_numbers = #tpu.dot_dimension_numbers<[1], [0], [0], [1], [0, 0, 1, 1], [], []>} : vector<16x8xf32>, vector<8x64xf32>, vector<16x64xf32> -> vector<16x64xf32>
    %c3_131 = arith.constant 3 : index
    %c0_132 = arith.constant 0 : index
    %c0_133 = arith.constant 0 : index
    %121 = vector.load %arg12[%c3_131, %c0_132, %c0_133] : memref<4x64x64xf32, #tpu.memory_space<vmem>>, vector<1x64x64xf32>
    %122 = vector.shape_cast %121 : vector<1x64x64xf32> to vector<64x64xf32>
    %cst_134 = arith.constant dense<0.000000e+00> : vector<16x64xf32>
    %123 = tpu.matmul %120, %122, %cst_134 {dimension_numbers = #tpu.dot_dimension_numbers<[1], [0], [0], [1], [0, 0, 1, 1], [], []>} : vector<16x64xf32>, vector<64x64xf32>, vector<16x64xf32> -> vector<16x64xf32>
    %124 = arith.addf %117, %123 : vector<16x64xf32>
    %c0_135 = arith.constant 0 : index
    %c0_136 = arith.constant 0 : index
    %125 = vector.load %arg13[%c0_135, %c0_136] : memref<1x64xf32, #tpu.memory_space<vmem>>, vector<1x64xf32>
    %126 = vector.broadcast %125 : vector<1x64xf32> to vector<16x64xf32>
    %127 = arith.addf %124, %126 : vector<16x64xf32>
    %cst_137 = arith.constant 0.000000e+00 : f32
    %128 = vector.broadcast %cst_137 : f32 to vector<16x64xf32>
    %129 = arith.maximumf %127, %128 : vector<16x64xf32>
    %c0_138 = arith.constant 0 : index
    %c0_139 = arith.constant 0 : index
    %c0_140 = arith.constant 0 : index
    %130 = vector.load %arg14[%c0_138, %c0_139, %c0_140] : memref<1x16x64xf32, #tpu.memory_space<vmem>>, vector<1x16x64xf32>
    %131 = vector.shape_cast %130 : vector<1x16x64xf32> to vector<16x64xf32>
    %132 = vector.shape_cast %129 : vector<16x64xf32> to vector<1x16x64xf32>
    tpu.vector_store %arg14[%c0_138, %c0_139, %c0_140], %132 {strides = array<i32>} : memref<1x16x64xf32, #tpu.memory_space<vmem>>, vector<1x16x64xf32>,
    return
  }
  func.func @transform_0(%arg0: i32) -> (i32, i32, i32) {
    %c0_i32 = arith.constant 0 : i32
    %c0_i32_0 = arith.constant 0 : i32
    %c0_i32_1 = arith.constant 0 : i32
    return %arg0, %c0_i32, %c0_i32_0 : i32, i32, i32
  }
  func.func @transform_1(%arg0: i32) -> (i32, i32, i32) {
    %c0_i32 = arith.constant 0 : i32
    %c0_i32_0 = arith.constant 0 : i32
    %c0_i32_1 = arith.constant 0 : i32
    %c0_i32_2 = arith.constant 0 : i32
    return %c0_i32, %c0_i32_0, %c0_i32_1 : i32, i32, i32
  }
  func.func @transform_2(%arg0: i32) -> (i32, i32, i32) {
    %c0_i32 = arith.constant 0 : i32
    %c0_i32_0 = arith.constant 0 : i32
    %c0_i32_1 = arith.constant 0 : i32
    %c0_i32_2 = arith.constant 0 : i32
    return %c0_i32, %c0_i32_0, %c0_i32_1 : i32, i32, i32
  }
  func.func @transform_3(%arg0: i32) -> (i32, i32) {
    %c0_i32 = arith.constant 0 : i32
    %c0_i32_0 = arith.constant 0 : i32
    %c0_i32_1 = arith.constant 0 : i32
    return %c0_i32, %c0_i32_0 : i32, i32
  }
  func.func @transform_4(%arg0: i32) -> (i32, i32, i32) {
    %c0_i32 = arith.constant 0 : i32
    %c0_i32_0 = arith.constant 0 : i32
    %c0_i32_1 = arith.constant 0 : i32
    %c0_i32_2 = arith.constant 0 : i32
    return %c0_i32, %c0_i32_0, %c0_i32_1 : i32, i32, i32
  }
  func.func @transform_5(%arg0: i32) -> (i32, i32, i32) {
    %c0_i32 = arith.constant 0 : i32
    %c0_i32_0 = arith.constant 0 : i32
    %c0_i32_1 = arith.constant 0 : i32
    %c0_i32_2 = arith.constant 0 : i32
    return %c0_i32, %c0_i32_0, %c0_i32_1 : i32, i32, i32
  }
  func.func @transform_6(%arg0: i32) -> (i32, i32) {
    %c0_i32 = arith.constant 0 : i32
    %c0_i32_0 = arith.constant 0 : i32
    %c0_i32_1 = arith.constant 0 : i32
    return %c0_i32, %c0_i32_0 : i32, i32
  }
  func.func @transform_7(%arg0: i32) -> (i32, i32, i32) {
    %c0_i32 = arith.constant 0 : i32
    %c0_i32_0 = arith.constant 0 : i32
    %c0_i32_1 = arith.constant 0 : i32
    %c0_i32_2 = arith.constant 0 : i32
    return %c0_i32, %c0_i32_0, %c0_i32_1 : i32, i32, i32
  }
  func.func @transform_8(%arg0: i32) -> (i32, i32, i32) {
    %c0_i32 = arith.constant 0 : i32
    %c0_i32_0 = arith.constant 0 : i32
    %c0_i32_1 = arith.constant 0 : i32
    %c0_i32_2 = arith.constant 0 : i32
    return %c0_i32, %c0_i32_0, %c0_i32_1 : i32, i32, i32
  }
  func.func @transform_9(%arg0: i32) -> (i32, i32) {
    %c0_i32 = arith.constant 0 : i32
    %c0_i32_0 = arith.constant 0 : i32
    %c0_i32_1 = arith.constant 0 : i32
    return %c0_i32, %c0_i32_0 : i32, i32
  }
  func.func @transform_10(%arg0: i32) -> (i32, i32, i32) {
    %c0_i32 = arith.constant 0 : i32
    %c0_i32_0 = arith.constant 0 : i32
    %c0_i32_1 = arith.constant 0 : i32
    %c0_i32_2 = arith.constant 0 : i32
    return %c0_i32, %c0_i32_0, %c0_i32_1 : i32, i32, i32
  }
  func.func @transform_11(%arg0: i32) -> (i32, i32, i32) {
    %c0_i32 = arith.constant 0 : i32
    %c0_i32_0 = arith.constant 0 : i32
    %c0_i32_1 = arith.constant 0 : i32
    %c0_i32_2 = arith.constant 0 : i32
    return %c0_i32, %c0_i32_0, %c0_i32_1 : i32, i32, i32
  }
  func.func @transform_12(%arg0: i32) -> (i32, i32) {
    %c0_i32 = arith.constant 0 : i32
    %c0_i32_0 = arith.constant 0 : i32
    %c0_i32_1 = arith.constant 0 : i32
    return %c0_i32, %c0_i32_0 : i32, i32
  }
  func.func @transform_13(%arg0: i32) -> (i32, i32, i32) {
    %c0_i32 = arith.constant 0 : i32
    %c0_i32_0 = arith.constant 0 : i32
    %c0_i32_1 = arith.constant 0 : i32
    return %arg0, %c0_i32, %c0_i32_0 : i32, i32, i32
  }
}

</mosaic_0001>

<llo_original>
// kernel: forward.1
$region0: #{forward.1}
  #allocation0 [shape = 'u32[]', space=smem, size = 0x4, offset = 0x4, fixed_abs, tag = 'smem constant byte address 0x4 - core index']
  #allocation1 [shape = 'u32[144,128]{1,0:T(1,128)}', space=vmem, size = 0x12000, scoped, tag = 'internal scratch']
  %s0 = inlined_call_operand.vmem [shape: f32[2,16,64], index: 0, kind: input, shape index: {}]
  %s1 = inlined_call_operand.vmem [shape: f32[4,8,16], index: 1, kind: input, shape index: {}]
  %s2 = inlined_call_operand.vmem [shape: f32[4,64,64], index: 2, kind: input, shape index: {}]
  %s3 = inlined_call_operand.vmem [shape: f32[1,64], index: 3, kind: input, shape index: {}]
  %s4 = inlined_call_operand.hbm [shape: f32[4,4,8], index: 4, kind: input, shape index: {}]
  %s5 = inlined_call_operand.vmem [shape: f32[4,64,64], index: 5, kind: input, shape index: {}]
  %s6 = inlined_call_operand.vmem [shape: f32[1,64], index: 6, kind: input, shape index: {}]
  %s7 = inlined_call_operand.vmem [shape: f32[4,8,4], index: 7, kind: input, shape index: {}]
  %s8 = inlined_call_operand.hbm [shape: f32[4,64,64], index: 8, kind: input, shape index: {}]
  %s9 = inlined_call_operand.hbm [shape: f32[1,64], index: 9, kind: input, shape index: {}]
  %s10 = inlined_call_operand.vmem [shape: f32[4,16,8], index: 10, kind: input, shape index: {}]
  %s11 = inlined_call_operand.hbm [shape: f32[4,64,64], index: 11, kind: input, shape index: {}]
  %s12 = inlined_call_operand.vmem [shape: f32[1,64], index: 12, kind: input, shape index: {}]
  %s13 = inlined_call_operand.vmem [shape: f32[2,16,64], index: 13, kind: output, shape index: {}]
  %s14 = sld [smem:[#allocation0]]
  $region101: #{forward.1} parent=0
    _
  %s16 = ssub.s32 1, %s14
  %s17 = scalar_select 0, %s16, %s14
  $region1: #{forward.1} parent=0
    #allocation2 [shape = 'u8[8192]{0}', space=vmem, size = 0x2000, scoped, tag = 'input window, operand 4, single buffered']
    #allocation3 [shape = 's32[2]{0}', space=sflag, size = 0x8, scoped, tag = 'scoped memory for forward.1']
    #allocation4 [shape = 'u8[131072]{0}', space=vmem, size = 0x20000, scoped, tag = 'input window, operand 8, single buffered']
    #allocation5 [shape = 's32[1]{0}', space=sflag, size = 0x4, scoped, tag = 'scoped memory for forward.1']
    #allocation6 [shape = 'u8[512]{0}', space=vmem, size = 0x400, scoped, tag = 'input window, operand 9, single buffered']
    #allocation7 [shape = 'u8[131072]{0}', space=vmem, size = 0x20000, scoped, tag = 'input window, operand 11, single buffered']
    #allocation8 [shape = 's32[1]{0}', space=sflag, size = 0x4, scoped, tag = 'scoped memory for forward.1']
    %18 = vsyncpa [#allocation3], 0
    %19 = vsyncpa [#allocation5], 0
    %20 = vsyncpa [#allocation8], 0
    loop: start=0, step=1, limit=4
    $region2: #{forward.1} parent=1 // loop_pre_header
      _
    $region3: #{forward.1} parent=1 // loop_header
      %s22 = sphi 0, %s26
      %p23 = scmp.ge.s32.totalorder %s22, 4
      %s32 = sphi 0, %s34
      %s35 = sphi 0, %s32
      %s36 = sphi 0, %s35
      %s52 = sphi 0, %s36
      %s56 = sphi 0, %s56
      %s58 = sphi 0, %s56
      %s59 = sphi 0, %s58
      %s73 = sphi 0, %s59
      %s77 = sphi 0, %s77
      %s79 = sphi 0, %s77
      %s80 = sphi 0, %s79
      %s94 = sphi 0, %s80
      %s98 = sphi 0, %s98
      %s100 = sphi 0, %s98
      %s101 = sphi 0, %s100
      %s115 = sphi 0, %s101
      %s119 = sphi 0, %s119
      %s121 = sphi 0, %s119
      %s122 = sphi 0, %s121
      %s136 = sphi 0, %s122
      %s140 = sphi 0, %s140
      %s142 = sphi 0, %s140
      %s143 = sphi 0, %s142
      %s157 = sphi 0, %s143
      %s161 = sphi 0, %s161
      %s163 = sphi 0, %s161
      %s164 = sphi 0, %s163
      %s178 = sphi 0, %s164
      %s182 = sphi 0, %s182
      %s184 = sphi 0, %s182
      %s185 = sphi 0, %s184
      %s199 = sphi 0, %s185
      %s203 = sphi 0, %s203
      %s205 = sphi 0, %s203
      %s206 = sphi 0, %s205
      %s220 = sphi 0, %s206
      %s224 = sphi 0, %s224
      %s226 = sphi 0, %s224
      %s227 = sphi 0, %s226
      %s241 = sphi 0, %s227
      %s245 = sphi 0, %s245
      %s247 = sphi 0, %s245
      %s248 = sphi 0, %s247
      %s262 = sphi 0, %s248
      %s266 = sphi 0, %s266
      %s268 = sphi 0, %s266
      %s269 = sphi 0, %s268
      %s283 = sphi 0, %s269
      %s287 = sphi 0, %s287
      %s289 = sphi 0, %s287
      %s290 = sphi 0, %s289
      %s304 = sphi 0, %s290
      %s310 = sphi 0, %s312
      %s313 = sphi 0, %s310
      %s314 = sphi 0, %s313
      %s330 = sphi 0, %s314
    $region4: #{forward.1} parent=1 // loop_header_branch
      %25 = sbr.rel (%p23) target = $region8
    $region5: #{forward.1} parent=1 // loop_body
      %s27 = ssub.s32 %s22, 1
      %s28 = ssub.s32 %s22, 2
      %s29 = sadd.s32 %s22, 1
      %s30 = ssub.s32 %s22, %s29
      %p31 = scmp.eq.s32.totalorder %s30, 0
      %s33 = sadd.s32 %s32, 1
      %s34 = scalar_select %p31, %s32, %s33
      %p37 = pneg %p31
      %p38 = scmp.eq.s32.totalorder %s22, 1
      %p39 = por %p37, %p38
      %p40 = scmp.ne.s32.totalorder %s32, %s35
      %p41 = scmp.eq.s32.totalorder %s22, 0
      %p42 = por %p40, %p41
      %p43 = scmp.ne.s32.totalorder %s32, %s35
      %p44 = scmp.eq.s32.totalorder %s27, 1
      %p45 = por %p43, %p44
      %p46 = scmp.ne.s32.totalorder %s35, %s36
      %p47 = scmp.eq.s32.totalorder %s27, 0
      %p48 = por %p46, %p47
      %p49 = scmp.ne.s32.totalorder %s35, %s36
      %p50 = scmp.eq.s32.totalorder %s28, 1
      %p51 = por %p49, %p50
      %p53 = scmp.ne.s32.totalorder %s36, %s52
      %p54 = scmp.eq.s32.totalorder %s28, 0
      %p55 = por %p53, %p54
      %s57 = sadd.s32 %s56, 1
      %p60 = scmp.eq.s32.totalorder %s22, 1
      %p61 = scmp.ne.s32.totalorder %s56, %s58
      %p62 = scmp.eq.s32.totalorder %s22, 0
      %p63 = por %p61, %p62
      %p64 = scmp.ne.s32.totalorder %s56, %s58
      %p65 = scmp.eq.s32.totalorder %s27, 1
      %p66 = por %p64, %p65
      %p67 = scmp.ne.s32.totalorder %s58, %s59
      %p68 = scmp.eq.s32.totalorder %s27, 0
      %p69 = por %p67, %p68
      %p70 = scmp.ne.s32.totalorder %s58, %s59
      %p71 = scmp.eq.s32.totalorder %s28, 1
      %p72 = por %p70, %p71
      %p74 = scmp.ne.s32.totalorder %s59, %s73
      %p75 = scmp.eq.s32.totalorder %s28, 0
      %p76 = por %p74, %p75
      %s78 = sadd.s32 %s77, 1
      %p81 = scmp.eq.s32.totalorder %s22, 1
      %p82 = scmp.ne.s32.totalorder %s77, %s79
      %p83 = scmp.eq.s32.totalorder %s22, 0
      %p84 = por %p82, %p83
      %p85 = scmp.ne.s32.totalorder %s77, %s79
      %p86 = scmp.eq.s32.totalorder %s27, 1
      %p87 = por %p85, %p86
      %p88 = scmp.ne.s32.totalorder %s79, %s80
      %p89 = scmp.eq.s32.totalorder %s27, 0
      %p90 = por %p88, %p89
      %p91 = scmp.ne.s32.totalorder %s79, %s80
      %p92 = scmp.eq.s32.totalorder %s28, 1
      %p93 = por %p91, %p92
      %p95 = scmp.ne.s32.totalorder %s80, %s94
      %p96 = scmp.eq.s32.totalorder %s28, 0
      %p97 = por %p95, %p96
      %s99 = sadd.s32 %s98, 1
      %p102 = scmp.eq.s32.totalorder %s22, 1
      %p103 = scmp.ne.s32.totalorder %s98, %s100
      %p104 = scmp.eq.s32.totalorder %s22, 0
      %p105 = por %p103, %p104
      %p106 = scmp.ne.s32.totalorder %s98, %s100
      %p107 = scmp.eq.s32.totalorder %s27, 1
      %p108 = por %p106, %p107
      %p109 = scmp.ne.s32.totalorder %s100, %s101
      %p110 = scmp.eq.s32.totalorder %s27, 0
      %p111 = por %p109, %p110
      %p112 = scmp.ne.s32.totalorder %s100, %s101
      %p113 = scmp.eq.s32.totalorder %s28, 1
      %p114 = por %p112, %p113
      %p116 = scmp.ne.s32.totalorder %s101, %s115
      %p117 = scmp.eq.s32.totalorder %s28, 0
      %p118 = por %p116, %p117
      %s120 = sadd.s32 %s119, 1
      %p123 = scmp.eq.s32.totalorder %s22, 1
      %p124 = scmp.ne.s32.totalorder %s119, %s121
      %p125 = scmp.eq.s32.totalorder %s22, 0
      %p126 = por %p124, %p125
      %p127 = scmp.ne.s32.totalorder %s119, %s121
      %p128 = scmp.eq.s32.totalorder %s27, 1
      %p129 = por %p127, %p128
      %p130 = scmp.ne.s32.totalorder %s121, %s122
      %p131 = scmp.eq.s32.totalorder %s27, 0
      %p132 = por %p130, %p131
      %p133 = scmp.ne.s32.totalorder %s121, %s122
      %p134 = scmp.eq.s32.totalorder %s28, 1
      %p135 = por %p133, %p134
      %p137 = scmp.ne.s32.totalorder %s122, %s136
      %p138 = scmp.eq.s32.totalorder %s28, 0
      %p139 = por %p137, %p138
      %s141 = sadd.s32 %s140, 1
      %p144 = scmp.eq.s32.totalorder %s22, 1
      %p145 = scmp.ne.s32.totalorder %s140, %s142
      %p146 = scmp.eq.s32.totalorder %s22, 0
      %p147 = por %p145, %p146
      %p148 = scmp.ne.s32.totalorder %s140, %s142
      %p149 = scmp.eq.s32.totalorder %s27, 1
      %p150 = por %p148, %p149
      %p151 = scmp.ne.s32.totalorder %s142, %s143
      %p152 = scmp.eq.s32.totalorder %s27, 0
      %p153 = por %p151, %p152
      %p154 = scmp.ne.s32.totalorder %s142, %s143
      %p155 = scmp.eq.s32.totalorder %s28, 1
      %p156 = por %p154, %p155
      %p158 = scmp.ne.s32.totalorder %s143, %s157
      %p159 = scmp.eq.s32.totalorder %s28, 0
      %p160 = por %p158, %p159
      %s162 = sadd.s32 %s161, 1
      %p165 = scmp.eq.s32.totalorder %s22, 1
      %p166 = scmp.ne.s32.totalorder %s161, %s163
      %p167 = scmp.eq.s32.totalorder %s22, 0
      %p168 = por %p166, %p167
      %p169 = scmp.ne.s32.totalorder %s161, %s163
      %p170 = scmp.eq.s32.totalorder %s27, 1
      %p171 = por %p169, %p170
      %p172 = scmp.ne.s32.totalorder %s163, %s164
      %p173 = scmp.eq.s32.totalorder %s27, 0
      %p174 = por %p172, %p173
      %p175 = scmp.ne.s32.totalorder %s163, %s164
      %p176 = scmp.eq.s32.totalorder %s28, 1
      %p177 = por %p175, %p176
      %p179 = scmp.ne.s32.totalorder %s164, %s178
      %p180 = scmp.eq.s32.totalorder %s28, 0
      %p181 = por %p179, %p180
      %s183 = sadd.s32 %s182, 1
      %p186 = scmp.eq.s32.totalorder %s22, 1
      %p187 = scmp.ne.s32.totalorder %s182, %s184
      %p188 = scmp.eq.s32.totalorder %s22, 0
      %p189 = por %p187, %p188
      %p190 = scmp.ne.s32.totalorder %s182, %s184
      %p191 = scmp.eq.s32.totalorder %s27, 1
      %p192 = por %p190, %p191
      %p193 = scmp.ne.s32.totalorder %s184, %s185
      %p194 = scmp.eq.s32.totalorder %s27, 0
      %p195 = por %p193, %p194
      %p196 = scmp.ne.s32.totalorder %s184, %s185
      %p197 = scmp.eq.s32.totalorder %s28, 1
      %p198 = por %p196, %p197
      %p200 = scmp.ne.s32.totalorder %s185, %s199
      %p201 = scmp.eq.s32.totalorder %s28, 0
      %p202 = por %p200, %p201
      %s204 = sadd.s32 %s203, 1
      %p207 = scmp.eq.s32.totalorder %s22, 1
      %p208 = scmp.ne.s32.totalorder %s203, %s205
      %p209 = scmp.eq.s32.totalorder %s22, 0
      %p210 = por %p208, %p209
      %p211 = scmp.ne.s32.totalorder %s203, %s205
      %p212 = scmp.eq.s32.totalorder %s27, 1
      %p213 = por %p211, %p212
      %p214 = scmp.ne.s32.totalorder %s205, %s206
      %p215 = scmp.eq.s32.totalorder %s27, 0
      %p216 = por %p214, %p215
      %p217 = scmp.ne.s32.totalorder %s205, %s206
      %p218 = scmp.eq.s32.totalorder %s28, 1
      %p219 = por %p217, %p218
      %p221 = scmp.ne.s32.totalorder %s206, %s220
      %p222 = scmp.eq.s32.totalorder %s28, 0
      %p223 = por %p221, %p222
      %s225 = sadd.s32 %s224, 1
      %p228 = scmp.eq.s32.totalorder %s22, 1
      %p229 = scmp.ne.s32.totalorder %s224, %s226
      %p230 = scmp.eq.s32.totalorder %s22, 0
      %p231 = por %p229, %p230
      %p232 = scmp.ne.s32.totalorder %s224, %s226
      %p233 = scmp.eq.s32.totalorder %s27, 1
      %p234 = por %p232, %p233
      %p235 = scmp.ne.s32.totalorder %s226, %s227
      %p236 = scmp.eq.s32.totalorder %s27, 0
      %p237 = por %p235, %p236
      %p238 = scmp.ne.s32.totalorder %s226, %s227
      %p239 = scmp.eq.s32.totalorder %s28, 1
      %p240 = por %p238, %p239
      %p242 = scmp.ne.s32.totalorder %s227, %s241
      %p243 = scmp.eq.s32.totalorder %s28, 0
      %p244 = por %p242, %p243
      %s246 = sadd.s32 %s245, 1
      %p249 = scmp.eq.s32.totalorder %s22, 1
      %p250 = scmp.ne.s32.totalorder %s245, %s247
      %p251 = scmp.eq.s32.totalorder %s22, 0
      %p252 = por %p250, %p251
      %p253 = scmp.ne.s32.totalorder %s245, %s247
      %p254 = scmp.eq.s32.totalorder %s27, 1
      %p255 = por %p253, %p254
      %p256 = scmp.ne.s32.totalorder %s247, %s248
      %p257 = scmp.eq.s32.totalorder %s27, 0
      %p258 = por %p256, %p257
      %p259 = scmp.ne.s32.totalorder %s247, %s248
      %p260 = scmp.eq.s32.totalorder %s28, 1
      %p261 = por %p259, %p260
      %p263 = scmp.ne.s32.totalorder %s248, %s262
      %p264 = scmp.eq.s32.totalorder %s28, 0
      %p265 = por %p263, %p264
      %s267 = sadd.s32 %s266, 1
      %p270 = scmp.eq.s32.totalorder %s22, 1
      %p271 = scmp.ne.s32.totalorder %s266, %s268
      %p272 = scmp.eq.s32.totalorder %s22, 0
      %p273 = por %p271, %p272
      %p274 = scmp.ne.s32.totalorder %s266, %s268
      %p275 = scmp.eq.s32.totalorder %s27, 1
      %p276 = por %p274, %p275
      %p277 = scmp.ne.s32.totalorder %s268, %s269
      %p278 = scmp.eq.s32.totalorder %s27, 0
      %p279 = por %p277, %p278
      %p280 = scmp.ne.s32.totalorder %s268, %s269
      %p281 = scmp.eq.s32.totalorder %s28, 1
      %p282 = por %p280, %p281
      %p284 = scmp.ne.s32.totalorder %s269, %s283
      %p285 = scmp.eq.s32.totalorder %s28, 0
      %p286 = por %p284, %p285
      %s288 = sadd.s32 %s287, 1
      %p291 = scmp.eq.s32.totalorder %s22, 1
      %p292 = scmp.ne.s32.totalorder %s287, %s289
      %p293 = scmp.eq.s32.totalorder %s22, 0
      %p294 = por %p292, %p293
      %p295 = scmp.ne.s32.totalorder %s287, %s289
      %p296 = scmp.eq.s32.totalorder %s27, 1
      %p297 = por %p295, %p296
      %p298 = scmp.ne.s32.totalorder %s289, %s290
      %p299 = scmp.eq.s32.totalorder %s27, 0
      %p300 = por %p298, %p299
      %p301 = scmp.ne.s32.totalorder %s289, %s290
      %p302 = scmp.eq.s32.totalorder %s28, 1
      %p303 = por %p301, %p302
      %p305 = scmp.ne.s32.totalorder %s290, %s304
      %p306 = scmp.eq.s32.totalorder %s28, 0
      %p307 = por %p305, %p306
      %s308 = ssub.s32 %s22, %s29
      %p309 = scmp.eq.s32.totalorder %s308, 0
      %s311 = sadd.s32 %s310, 1
      %s312 = scalar_select %p309, %s310, %s311
      %p315 = pneg %p309
      %p316 = scmp.eq.s32.totalorder %s22, 1
      %p317 = por %p315, %p316
      %p318 = scmp.ne.s32.totalorder %s310, %s313
      %p319 = scmp.eq.s32.totalorder %s22, 0
      %p320 = por %p318, %p319
      %p321 = scmp.ne.s32.totalorder %s310, %s313
      %p322 = scmp.eq.s32.totalorder %s27, 1
      %p323 = por %p321, %p322
      %p324 = scmp.ne.s32.totalorder %s313, %s314
      %p325 = scmp.eq.s32.totalorder %s27, 0
      %p326 = por %p324, %p325
      %p327 = scmp.ne.s32.totalorder %s313, %s314
      %p328 = scmp.eq.s32.totalorder %s28, 1
      %p329 = por %p327, %p328
      %p331 = scmp.ne.s32.totalorder %s314, %s330
      %p332 = scmp.eq.s32.totalorder %s28, 0
      %p333 = por %p331, %p332
      %p334 = scmp.le.s32.totalorder 1, %s22
      %p335 = scmp.lt.s32.totalorder %s22, 3
      %p336 = pnand %p334, %p335
      %p337 = pneg %p336
      // Predicated region
      $region9: #{forward.1} parent=5 // pred_check
        _
      $region10: #{forward.1} parent=5 // pred_check_branch
        %339 = sbr.rel (%p336) target = $region12
      $region11: #{forward.1} parent=5 // pred_region
        %s340 = ssub.s32 %s22, 1
        // Predicated region
        $region13: #{forward.1} parent=11 // pred_check
          %p341 = pneg %p69
        $region14: #{forward.1} parent=11 // pred_check_branch
          %343 = sbr.rel (%p341) target = $region16
        $region15: #{forward.1} parent=11 // pred_region
          _
        $region16: #{forward.1} parent=11 // pred_fallthru
          _
        // Predicated region
        $region17: #{forward.1} parent=11 // pred_check
          %p344 = pneg %p90
        $region18: #{forward.1} parent=11 // pred_check_branch
          %346 = sbr.rel (%p344) target = $region20
        $region19: #{forward.1} parent=11 // pred_region
          _
        $region20: #{forward.1} parent=11 // pred_fallthru
          _
        // Predicated region
        $region21: #{forward.1} parent=11 // pred_check
          %p347 = pneg %p111
        $region22: #{forward.1} parent=11 // pred_check_branch
          %349 = sbr.rel (%p347) target = $region24
        $region23: #{forward.1} parent=11 // pred_region
          _
        $region24: #{forward.1} parent=11 // pred_fallthru
          _
        // Predicated region
        $region25: #{forward.1} parent=11 // pred_check
          %p350 = pneg %p132
        $region26: #{forward.1} parent=11 // pred_check_branch
          %352 = sbr.rel (%p350) target = $region28
        $region27: #{forward.1} parent=11 // pred_region
          %s354 = ssub.s32 256, 256
          %355 = vsyncadd [#allocation3], %s354
          %s356 = sshll.u32 [#allocation2], 4
          %s357 = int_to_ptr.vmem [resolvable:$true] %s356
          %362 = dma.hbm_to_vmem [thread:$0]  %s4, 256, %s357, [#allocation3], 64, 64, 4
        $region28: #{forward.1} parent=11 // pred_fallthru
          _
        // Predicated region
        $region29: #{forward.1} parent=11 // pred_check
          %p363 = pneg %p153
        $region30: #{forward.1} parent=11 // pred_check_branch
          %365 = sbr.rel (%p363) target = $region32
        $region31: #{forward.1} parent=11 // pred_region
          _
        $region32: #{forward.1} parent=11 // pred_fallthru
          _
        // Predicated region
        $region33: #{forward.1} parent=11 // pred_check
          %p366 = pneg %p174
        $region34: #{forward.1} parent=11 // pred_check_branch
          %368 = sbr.rel (%p366) target = $region36
        $region35: #{forward.1} parent=11 // pred_region
          _
        $region36: #{forward.1} parent=11 // pred_fallthru
          _
        // Predicated region
        $region37: #{forward.1} parent=11 // pred_check
          %p369 = pneg %p195
        $region38: #{forward.1} parent=11 // pred_check_branch
          %371 = sbr.rel (%p369) target = $region40
        $region39: #{forward.1} parent=11 // pred_region
          _
        $region40: #{forward.1} parent=11 // pred_fallthru
          _
        // Predicated region
        $region41: #{forward.1} parent=11 // pred_check
          %p372 = pneg %p216
        $region42: #{forward.1} parent=11 // pred_check_branch
          %374 = sbr.rel (%p372) target = $region44
        $region43: #{forward.1} parent=11 // pred_region
          %s376 = ssub.s32 4096, 4096
          %377 = vsyncadd [#allocation5], %s376
          %s378 = sshll.u32 [#allocation4], 4
          %s379 = int_to_ptr.vmem [resolvable:$true] %s378
          %384 = dma.hbm_to_vmem [thread:$0]  %s8, 4096, %s379, [#allocation5], 128, 128, 8
        $region44: #{forward.1} parent=11 // pred_fallthru
          _
        // Predicated region
        $region45: #{forward.1} parent=11 // pred_check
          %p385 = pneg %p237
        $region46: #{forward.1} parent=11 // pred_check_branch
          %387 = sbr.rel (%p385) target = $region48
        $region47: #{forward.1} parent=11 // pred_region
          %s389 = ssub.s32 16, 16
          %390 = vsyncadd [#allocation5], %s389
          %s392 = sshll.u32 [#allocation6], 4
          %s393 = int_to_ptr.vmem [resolvable:$true] %s392
          %395 = dma.hbm_to_vmem [thread:$0]  %s9, 16, %s393, [#allocation5]
        $region48: #{forward.1} parent=11 // pred_fallthru
          _
        // Predicated region
        $region49: #{forward.1} parent=11 // pred_check
          %p396 = pneg %p258
        $region50: #{forward.1} parent=11 // pred_check_branch
          %398 = sbr.rel (%p396) target = $region52
        $region51: #{forward.1} parent=11 // pred_region
          _
        $region52: #{forward.1} parent=11 // pred_fallthru
          _
        // Predicated region
        $region53: #{forward.1} parent=11 // pred_check
          %p399 = pneg %p279
        $region54: #{forward.1} parent=11 // pred_check_branch
          %401 = sbr.rel (%p399) target = $region56
        $region55: #{forward.1} parent=11 // pred_region
          %s403 = ssub.s32 4096, 4096
          %404 = vsyncadd [#allocation8], %s403
          %s405 = sshll.u32 [#allocation7], 4
          %s406 = int_to_ptr.vmem [resolvable:$true] %s405
          %411 = dma.hbm_to_vmem [thread:$0]  %s11, 4096, %s406, [#allocation8], 128, 128, 8
        $region56: #{forward.1} parent=11 // pred_fallthru
          _
        // Predicated region
        $region57: #{forward.1} parent=11 // pred_check
          %p412 = pneg %p300
        $region58: #{forward.1} parent=11 // pred_check_branch
          %414 = sbr.rel (%p412) target = $region60
        $region59: #{forward.1} parent=11 // pred_region
          _
        $region60: #{forward.1} parent=11 // pred_fallthru
          _
      $region12: #{forward.1} parent=5 // pred_fallthru
        _
      %p415 = scmp.lt.s32.totalorder %s22, 2
      // Predicated region
      $region61: #{forward.1} parent=5 // pred_check
        %p416 = pneg %p415
      $region62: #{forward.1} parent=5 // pred_check_branch
        %418 = sbr.rel (%p416) target = $region64
      $region63: #{forward.1} parent=5 // pred_region
        // Predicated region
        $region65: #{forward.1} parent=63 // pred_check
          %p419 = pneg %p42
        $region66: #{forward.1} parent=63 // pred_check_branch
          %421 = sbr.rel (%p419) target = $region68
        $region67: #{forward.1} parent=63 // pred_region
          %p422 = scmp.lt.s32.totalorder %s22, 1
          %s423 = scalar_select %p422, %s22, 1
          %s424 = smul.addr %s423, 2
          %s425 = smul.addr %s424, 8
          %s426 = scalar_lea.vmem %s0, %s425
        $region68: #{forward.1} parent=63 // pred_fallthru
          _
      $region64: #{forward.1} parent=5 // pred_fallthru
        _
      %p427 = scmp.le.s32.totalorder 1, %s22
      %p428 = scmp.lt.s32.totalorder %s22, 3
      %p429 = pnand %p427, %p428
      %p430 = pneg %p429
      // Predicated region
      $region69: #{forward.1} parent=5 // pred_check
        _
      $region70: #{forward.1} parent=5 // pred_check_branch
        %432 = sbr.rel (%p429) target = $region72
      $region71: #{forward.1} parent=5 // pred_region
        %s433 = ssub.s32 %s22, 1
        // Predicated region
        $region73: #{forward.1} parent=71 // pred_check
          %p434 = pneg %p132
        $region74: #{forward.1} parent=71 // pred_check_branch
          %436 = sbr.rel (%p434) target = $region76
        $region75: #{forward.1} parent=71 // pred_region
          %437 = dma.done [#allocation3], 256
        $region76: #{forward.1} parent=71 // pred_fallthru
          _
        // Predicated region
        $region77: #{forward.1} parent=71 // pred_check
          %p438 = pneg %p216
        $region78: #{forward.1} parent=71 // pred_check_branch
          %440 = sbr.rel (%p438) target = $region80
        $region79: #{forward.1} parent=71 // pred_region
          %441 = dma.done [#allocation5], 4096
        $region80: #{forward.1} parent=71 // pred_fallthru
          _
        // Predicated region
        $region81: #{forward.1} parent=71 // pred_check
          %p442 = pneg %p237
        $region82: #{forward.1} parent=71 // pred_check_branch
          %444 = sbr.rel (%p442) target = $region84
        $region83: #{forward.1} parent=71 // pred_region
          %445 = dma.done [#allocation5], 16
        $region84: #{forward.1} parent=71 // pred_fallthru
          _
        // Predicated region
        $region85: #{forward.1} parent=71 // pred_check
          %p446 = pneg %p279
        $region86: #{forward.1} parent=71 // pred_check_branch
          %448 = sbr.rel (%p446) target = $region88
        $region87: #{forward.1} parent=71 // pred_region
          %449 = dma.done [#allocation8], 4096
        $region88: #{forward.1} parent=71 // pred_fallthru
          _
        %p450 = scmp.lt.s32.totalorder %s27, 1
        %s451 = scalar_select %p450, %s27, 1
        %s452 = smul.addr %s451, 2
        %s453 = smul.addr %s452, 8
        %s454 = scalar_lea.vmem %s0, %s453
        %p455 = pneg %p48
        %p456 = pneg %p45
        %p457 = pneg %p69
        %p458 = pneg %p66
        %p459 = pneg %p90
        %p460 = pneg %p87
        %p461 = pneg %p111
        %p462 = pneg %p108
        %p463 = pneg %p132
        %p464 = pneg %p129
        %p465 = pneg %p153
        %p466 = pneg %p150
        %p467 = pneg %p174
        %p468 = pneg %p171
        %p469 = pneg %p195
        %p470 = pneg %p192
        %p471 = pneg %p216
        %p472 = pneg %p213
        %p473 = pneg %p237
        %p474 = pneg %p234
        %p475 = pneg %p258
        %p476 = pneg %p255
        %p477 = pneg %p279
        %p478 = pneg %p276
        %p479 = pneg %p300
        %p480 = pneg %p297
        %p481 = pneg %p326
        %p482 = pneg %p323
        %p483 = scmp.lt.s32.totalorder %s27, 1
        %s484 = scalar_select %p483, %s27, 1
        %s485 = smul.addr %s484, 2
        %s486 = smul.addr %s485, 8
        %s487 = scalar_lea.vmem %s13, %s486
        %p488 = scmp.lt.s32.totalorder %s27, 1
        %s489 = scalar_select %p488, %s27, 1
        %s490 = smul.addr %s489, 2
        %s491 = smul.addr %s490, 8
        %s492 = scalar_lea.vmem %s0, %s491
        %p493 = scmp.lt.s32.totalorder %s27, 1
        %s494 = scalar_select %p493, %s27, 1
        %s495 = smul.addr %s494, 2
        %s496 = smul.addr %s495, 8
        %s497 = scalar_lea.vmem %s13, %s496
        %v498 = vld [vmem:[%s492] sm:$0xff]
        %v499 = vld [vmem:[%s492 + $0x8] sm:$0xff]
        %v500 = vld [vmem:[%s1] sm:$0xff]
        %vm501 = vcmask 130048
        %v503 = vsel %vm501, %v500, 0
        %505 = vmatprep.subr.mxu0 0.0
        %506 = vmatpush1.msra.mxu0 0.0
        %507 = vmatprep.subr.mxu0 0.0
        %508 = vmatpush1.msra.mxu0 0.0
        %509 = vmatprep.subr.mxu0 0.0
        %510 = vmatpush1.msra.mxu0 0.0
        %511 = vmatprep.subr.mxu0 0.0
        %512 = vmatpush1.msra.mxu0 0.0
        %513 = vmatprep.subr.mxu0 0.0
        %514 = vmatpush1.msra.mxu0 0.0
        %515 = vmatprep.subr.mxu0 0.0
        %516 = vmatpush1.msra.mxu0 0.0
        %517 = vmatprep.subr.mxu0 0.0
        %518 = vmatpush1.msra.mxu0 0.0
        %519 = vmatprep.subr.mxu0 0.0
        %520 = vmatpush1.msra.mxu0 0.0
        %521 = vmatprep.subr.mxu0 0.0
        %522 = vmatpush1.msra.mxu0 0.0
        %523 = vmatprep.subr.mxu0 0.0
        %524 = vmatpush1.msra.mxu0 0.0
        %525 = vmatprep.subr.mxu0 0.0
        %526 = vmatpush1.msra.mxu0 0.0
        %527 = vmatprep.subr.mxu0 0.0
        %528 = vmatpush1.msra.mxu0 0.0
        %529 = vmatprep.subr.mxu0 0.0
        %530 = vmatpush1.msra.mxu0 0.0
        %531 = vmatprep.subr.mxu0 0.0
        %532 = vmatpush1.msra.mxu0 0.0
        %533 = vmatprep.subr.mxu0 0.0
        %534 = vmatpush1.msra.mxu0 %v499
        %535 = vmatprep.subr.mxu0 0.0
        %536 = vmatpush1.msra.mxu0 %v498
        %537 = vmatprep.subr.mxu0 0.0
        %538 = vmatpush2.msra.mxu0 0.0
        %539 = vmatprep.subr.mxu0 0.0
        %540 = vmatpush2.msra.mxu0 0.0
        %541 = vmatprep.subr.mxu0 0.0
        %542 = vmatpush2.msra.mxu0 0.0
        %543 = vmatprep.subr.mxu0 0.0
        %544 = vmatpush2.msra.mxu0 0.0
        %545 = vmatprep.subr.mxu0 0.0
        %546 = vmatpush2.msra.mxu0 0.0
        %547 = vmatprep.subr.mxu0 0.0
        %548 = vmatpush2.msra.mxu0 0.0
        %549 = vmatprep.subr.mxu0 0.0
        %550 = vmatpush2.msra.mxu0 0.0
        %551 = vmatprep.subr.mxu0 0.0
        %552 = vmatpush2.msra.mxu0 0.0
        %553 = vmatprep.subr.mxu0 0.0
        %554 = vmatpush2.msra.mxu0 0.0
        %555 = vmatprep.subr.mxu0 0.0
        %556 = vmatpush2.msra.mxu0 0.0
        %557 = vmatprep.subr.mxu0 0.0
        %558 = vmatpush2.msra.mxu0 0.0
        %559 = vmatprep.subr.mxu0 0.0
        %560 = vmatpush2.msra.mxu0 0.0
        %561 = vmatprep.subr.mxu0 0.0
        %562 = vmatpush2.msra.mxu0 0.0
        %563 = vmatprep.subr.mxu0 0.0
        %564 = vmatpush2.msra.mxu0 0.0
        %565 = vmatprep.subr.mxu0 0.0
        %566 = vmatpush2.msra.mxu0 0.0
        %567 = vmatprep.subr.mxu0 0.0
        %568 = vmatpush2.msra.mxu0 0.0
        %569 = vmatprep.mubr.f32.mxu0 0.0
        %570 = vmatmul.mubr.f32.gmra.mxu0 %v503
        %v571 = vpop.f32.mrf.mxu0
        %v572 = vadd.f32 0.0, %v571
        %v573 = vpop.f32.mrf.mxu0
        %574 = vdwg.mxu0
        %v575 = vld [vmem:[%s2] sm:$0xff]
        %v576 = vld [vmem:[%s2 + $0x8] sm:$0xff]
        %v577 = vld [vmem:[%s2 + $0x10] sm:$0xff]
        %v578 = vld [vmem:[%s2 + $0x18] sm:$0xff]
        %v579 = vld [vmem:[%s2 + $0x20] sm:$0xff]
        %v580 = vld [vmem:[%s2 + $0x28] sm:$0xff]
        %v581 = vld [vmem:[%s2 + $0x30] sm:$0xff]
        %v582 = vld [vmem:[%s2 + $0x38] sm:$0xff]
        %s583 = scalar_lea.vmem %s1, 8
        %v584 = vld [vmem:[%s583] sm:$0xff]
        %v586 = vsel %vm501, %v584, 0
        %588 = vmatprep.subr.mxu0 0.0
        %589 = vmatpush1.msra.mxu0 0.0
        %590 = vmatprep.subr.mxu0 0.0
        %591 = vmatpush1.msra.mxu0 0.0
        %592 = vmatprep.subr.mxu0 0.0
        %593 = vmatpush1.msra.mxu0 0.0
        %594 = vmatprep.subr.mxu0 0.0
        %595 = vmatpush1.msra.mxu0 0.0
        %596 = vmatprep.subr.mxu0 0.0
        %597 = vmatpush1.msra.mxu0 0.0
        %598 = vmatprep.subr.mxu0 0.0
        %599 = vmatpush1.msra.mxu0 0.0
        %600 = vmatprep.subr.mxu0 0.0
        %601 = vmatpush1.msra.mxu0 0.0
        %602 = vmatprep.subr.mxu0 0.0
        %603 = vmatpush1.msra.mxu0 0.0
        %604 = vmatprep.subr.mxu0 0.0
        %605 = vmatpush1.msra.mxu0 0.0
        %606 = vmatprep.subr.mxu0 0.0
        %607 = vmatpush1.msra.mxu0 0.0
        %608 = vmatprep.subr.mxu0 0.0
        %609 = vmatpush1.msra.mxu0 0.0
        %610 = vmatprep.subr.mxu0 0.0
        %611 = vmatpush1.msra.mxu0 0.0
        %612 = vmatprep.subr.mxu0 0.0
        %613 = vmatpush1.msra.mxu0 0.0
        %614 = vmatprep.subr.mxu0 0.0
        %615 = vmatpush1.msra.mxu0 0.0
        %616 = vmatprep.subr.mxu0 0.0
        %617 = vmatpush1.msra.mxu0 %v499
        %618 = vmatprep.subr.mxu0 0.0
        %619 = vmatpush1.msra.mxu0 %v498
        %620 = vmatprep.subr.mxu0 0.0
        %621 = vmatpush2.msra.mxu0 0.0
        %622 = vmatprep.subr.mxu0 0.0
        %623 = vmatpush2.msra.mxu0 0.0
        %624 = vmatprep.subr.mxu0 0.0
        %625 = vmatpush2.msra.mxu0 0.0
        %626 = vmatprep.subr.mxu0 0.0
        %627 = vmatpush2.msra.mxu0 0.0
        %628 = vmatprep.subr.mxu0 0.0
        %629 = vmatpush2.msra.mxu0 0.0
        %630 = vmatprep.subr.mxu0 0.0
        %631 = vmatpush2.msra.mxu0 0.0
        %632 = vmatprep.subr.mxu0 0.0
        %633 = vmatpush2.msra.mxu0 0.0
        %634 = vmatprep.subr.mxu0 0.0
        %635 = vmatpush2.msra.mxu0 0.0
        %636 = vmatprep.subr.mxu0 0.0
        %637 = vmatpush2.msra.mxu0 0.0
        %638 = vmatprep.subr.mxu0 0.0
        %639 = vmatpush2.msra.mxu0 0.0
        %640 = vmatprep.subr.mxu0 0.0
        %641 = vmatpush2.msra.mxu0 0.0
        %642 = vmatprep.subr.mxu0 0.0
        %643 = vmatpush2.msra.mxu0 0.0
        %644 = vmatprep.subr.mxu0 0.0
        %645 = vmatpush2.msra.mxu0 0.0
        %646 = vmatprep.subr.mxu0 0.0
        %647 = vmatpush2.msra.mxu0 0.0
        %648 = vmatprep.subr.mxu0 0.0
        %649 = vmatpush2.msra.mxu0 0.0
        %650 = vmatprep.subr.mxu0 0.0
        %651 = vmatpush2.msra.mxu0 0.0
        %652 = vmatprep.mubr.f32.mxu0 0.0
        %653 = vmatmul.mubr.f32.gmra.mxu0 %v586
        %v654 = vpop.f32.mrf.mxu0
        %v655 = vadd.f32 0.0, %v654
        %v656 = vpop.f32.mrf.mxu0
        %657 = vdwg.mxu0
        %s658 = scalar_lea.vmem %s2, 64
        %v659 = vld [vmem:[%s658] sm:$0xff]
        %v660 = vld [vmem:[%s658 + $0x8] sm:$0xff]
        %v661 = vld [vmem:[%s658 + $0x10] sm:$0xff]
        %v662 = vld [vmem:[%s658 + $0x18] sm:$0xff]
        %v663 = vld [vmem:[%s658 + $0x20] sm:$0xff]
        %v664 = vld [vmem:[%s658 + $0x28] sm:$0xff]
        %v665 = vld [vmem:[%s658 + $0x30] sm:$0xff]
        %v666 = vld [vmem:[%s658 + $0x38] sm:$0xff]
        %vm667 = vcmask 523264
        %v669 = vsel %vm667, %v655, 0
        %671 = vmatprep.subr.mxu0 0.0
        %672 = vmatpush1.msra.mxu0 0.0
        %673 = vmatprep.subr.mxu0 0.0
        %674 = vmatpush1.msra.mxu0 0.0
        %675 = vmatprep.subr.mxu0 0.0
        %676 = vmatpush1.msra.mxu0 0.0
        %677 = vmatprep.subr.mxu0 0.0
        %678 = vmatpush1.msra.mxu0 0.0
        %679 = vmatprep.subr.mxu0 0.0
        %680 = vmatpush1.msra.mxu0 0.0
        %681 = vmatprep.subr.mxu0 0.0
        %682 = vmatpush1.msra.mxu0 0.0
        %683 = vmatprep.subr.mxu0 0.0
        %684 = vmatpush1.msra.mxu0 0.0
        %685 = vmatprep.subr.mxu0 0.0
        %686 = vmatpush1.msra.mxu0 0.0
        %687 = vmatprep.subr.mxu0 0.0
        %688 = vmatpush1.msra.mxu0 %v666
        %689 = vmatprep.subr.mxu0 0.0
        %690 = vmatpush1.msra.mxu0 %v665
        %691 = vmatprep.subr.mxu0 0.0
        %692 = vmatpush1.msra.mxu0 %v664
        %693 = vmatprep.subr.mxu0 0.0
        %694 = vmatpush1.msra.mxu0 %v663
        %695 = vmatprep.subr.mxu0 0.0
        %696 = vmatpush1.msra.mxu0 %v662
        %697 = vmatprep.subr.mxu0 0.0
        %698 = vmatpush1.msra.mxu0 %v661
        %699 = vmatprep.subr.mxu0 0.0
        %700 = vmatpush1.msra.mxu0 %v660
        %701 = vmatprep.subr.mxu0 0.0
        %702 = vmatpush1.msra.mxu0 %v659
        %703 = vmatprep.subr.mxu0 0.0
        %704 = vmatpush2.msra.mxu0 0.0
        %705 = vmatprep.subr.mxu0 0.0
        %706 = vmatpush2.msra.mxu0 0.0
        %707 = vmatprep.subr.mxu0 0.0
        %708 = vmatpush2.msra.mxu0 0.0
        %709 = vmatprep.subr.mxu0 0.0
        %710 = vmatpush2.msra.mxu0 0.0
        %711 = vmatprep.subr.mxu0 0.0
        %712 = vmatpush2.msra.mxu0 0.0
        %713 = vmatprep.subr.mxu0 0.0
        %714 = vmatpush2.msra.mxu0 0.0
        %715 = vmatprep.subr.mxu0 0.0
        %716 = vmatpush2.msra.mxu0 0.0
        %717 = vmatprep.subr.mxu0 0.0
        %718 = vmatpush2.msra.mxu0 0.0
        %719 = vmatprep.subr.mxu0 0.0
        %720 = vmatpush2.msra.mxu0 0.0
        %721 = vmatprep.subr.mxu0 0.0
        %722 = vmatpush2.msra.mxu0 0.0
        %723 = vmatprep.subr.mxu0 0.0
        %724 = vmatpush2.msra.mxu0 0.0
        %725 = vmatprep.subr.mxu0 0.0
        %726 = vmatpush2.msra.mxu0 0.0
        %727 = vmatprep.subr.mxu0 0.0
        %728 = vmatpush2.msra.mxu0 0.0
        %729 = vmatprep.subr.mxu0 0.0
        %730 = vmatpush2.msra.mxu0 0.0
        %731 = vmatprep.subr.mxu0 0.0
        %732 = vmatpush2.msra.mxu0 0.0
        %733 = vmatprep.subr.mxu0 0.0
        %734 = vmatpush2.msra.mxu0 0.0
        %735 = vmatprep.mubr.f32.mxu0 0.0
        %736 = vmatmul.mubr.f32.gmra.mxu0 %v669
        %v737 = vpop.f32.mrf.mxu0
        %v738 = vadd.f32 0.0, %v737
        %v739 = vpop.f32.mrf.mxu0
        %740 = vdwg.mxu0
        %v742 = vsel %vm667, %v572, 0
        %744 = vmatprep.subr.mxu0 0.0
        %745 = vmatpush1.msra.mxu0 0.0
        %746 = vmatprep.subr.mxu0 0.0
        %747 = vmatpush1.msra.mxu0 0.0
        %748 = vmatprep.subr.mxu0 0.0
        %749 = vmatpush1.msra.mxu0 0.0
        %750 = vmatprep.subr.mxu0 0.0
        %751 = vmatpush1.msra.mxu0 0.0
        %752 = vmatprep.subr.mxu0 0.0
        %753 = vmatpush1.msra.mxu0 0.0
        %754 = vmatprep.subr.mxu0 0.0
        %755 = vmatpush1.msra.mxu0 0.0
        %756 = vmatprep.subr.mxu0 0.0
        %757 = vmatpush1.msra.mxu0 0.0
        %758 = vmatprep.subr.mxu0 0.0
        %759 = vmatpush1.msra.mxu0 0.0
        %760 = vmatprep.subr.mxu0 0.0
        %761 = vmatpush1.msra.mxu0 %v582
        %762 = vmatprep.subr.mxu0 0.0
        %763 = vmatpush1.msra.mxu0 %v581
        %764 = vmatprep.subr.mxu0 0.0
        %765 = vmatpush1.msra.mxu0 %v580
        %766 = vmatprep.subr.mxu0 0.0
        %767 = vmatpush1.msra.mxu0 %v579
        %768 = vmatprep.subr.mxu0 0.0
        %769 = vmatpush1.msra.mxu0 %v578
        %770 = vmatprep.subr.mxu0 0.0
        %771 = vmatpush1.msra.mxu0 %v577
        %772 = vmatprep.subr.mxu0 0.0
        %773 = vmatpush1.msra.mxu0 %v576
        %774 = vmatprep.subr.mxu0 0.0
        %775 = vmatpush1.msra.mxu0 %v575
        %776 = vmatprep.subr.mxu0 0.0
        %777 = vmatpush2.msra.mxu0 0.0
        %778 = vmatprep.subr.mxu0 0.0
        %779 = vmatpush2.msra.mxu0 0.0
        %780 = vmatprep.subr.mxu0 0.0
        %781 = vmatpush2.msra.mxu0 0.0
        %782 = vmatprep.subr.mxu0 0.0
        %783 = vmatpush2.msra.mxu0 0.0
        %784 = vmatprep.subr.mxu0 0.0
        %785 = vmatpush2.msra.mxu0 0.0
        %786 = vmatprep.subr.mxu0 0.0
        %787 = vmatpush2.msra.mxu0 0.0
        %788 = vmatprep.subr.mxu0 0.0
        %789 = vmatpush2.msra.mxu0 0.0
        %790 = vmatprep.subr.mxu0 0.0
        %791 = vmatpush2.msra.mxu0 0.0
        %792 = vmatprep.subr.mxu0 0.0
        %793 = vmatpush2.msra.mxu0 0.0
        %794 = vmatprep.subr.mxu0 0.0
        %795 = vmatpush2.msra.mxu0 0.0
        %796 = vmatprep.subr.mxu0 0.0
        %797 = vmatpush2.msra.mxu0 0.0
        %798 = vmatprep.subr.mxu0 0.0
        %799 = vmatpush2.msra.mxu0 0.0
        %800 = vmatprep.subr.mxu0 0.0
        %801 = vmatpush2.msra.mxu0 0.0
        %802 = vmatprep.subr.mxu0 0.0
        %803 = vmatpush2.msra.mxu0 0.0
        %804 = vmatprep.subr.mxu0 0.0
        %805 = vmatpush2.msra.mxu0 0.0
        %806 = vmatprep.subr.mxu0 0.0
        %807 = vmatpush2.msra.mxu0 0.0
        %808 = vmatprep.mubr.f32.mxu0 0.0
        %809 = vmatmul.mubr.f32.gmra.mxu0 %v742
        %v810 = vpop.f32.mrf.mxu0
        %v811 = vadd.f32 %v738, %v810
        %v812 = vpop.f32.mrf.mxu0
        %813 = vdwg.mxu0
        %s814 = scalar_lea.vmem %s1, 16
        %v815 = vld [vmem:[%s814] sm:$0xff]
        %v817 = vsel %vm501, %v815, 0
        %819 = vmatprep.subr.mxu0 0.0
        %820 = vmatpush1.msra.mxu0 0.0
        %821 = vmatprep.subr.mxu0 0.0
        %822 = vmatpush1.msra.mxu0 0.0
        %823 = vmatprep.subr.mxu0 0.0
        %824 = vmatpush1.msra.mxu0 0.0
        %825 = vmatprep.subr.mxu0 0.0
        %826 = vmatpush1.msra.mxu0 0.0
        %827 = vmatprep.subr.mxu0 0.0
        %828 = vmatpush1.msra.mxu0 0.0
        %829 = vmatprep.subr.mxu0 0.0
        %830 = vmatpush1.msra.mxu0 0.0
        %831 = vmatprep.subr.mxu0 0.0
        %832 = vmatpush1.msra.mxu0 0.0
        %833 = vmatprep.subr.mxu0 0.0
        %834 = vmatpush1.msra.mxu0 0.0
        %835 = vmatprep.subr.mxu0 0.0
        %836 = vmatpush1.msra.mxu0 0.0
        %837 = vmatprep.subr.mxu0 0.0
        %838 = vmatpush1.msra.mxu0 0.0
        %839 = vmatprep.subr.mxu0 0.0
        %840 = vmatpush1.msra.mxu0 0.0
        %841 = vmatprep.subr.mxu0 0.0
        %842 = vmatpush1.msra.mxu0 0.0
        %843 = vmatprep.subr.mxu0 0.0
        %844 = vmatpush1.msra.mxu0 0.0
        %845 = vmatprep.subr.mxu0 0.0
        %846 = vmatpush1.msra.mxu0 0.0
        %847 = vmatprep.subr.mxu0 0.0
        %848 = vmatpush1.msra.mxu0 %v499
        %849 = vmatprep.subr.mxu0 0.0
        %850 = vmatpush1.msra.mxu0 %v498
        %851 = vmatprep.subr.mxu0 0.0
        %852 = vmatpush2.msra.mxu0 0.0
        %853 = vmatprep.subr.mxu0 0.0
        %854 = vmatpush2.msra.mxu0 0.0
        %855 = vmatprep.subr.mxu0 0.0
        %856 = vmatpush2.msra.mxu0 0.0
        %857 = vmatprep.subr.mxu0 0.0
        %858 = vmatpush2.msra.mxu0 0.0
        %859 = vmatprep.subr.mxu0 0.0
        %860 = vmatpush2.msra.mxu0 0.0
        %861 = vmatprep.subr.mxu0 0.0
        %862 = vmatpush2.msra.mxu0 0.0
        %863 = vmatprep.subr.mxu0 0.0
        %864 = vmatpush2.msra.mxu0 0.0
        %865 = vmatprep.subr.mxu0 0.0
        %866 = vmatpush2.msra.mxu0 0.0
        %867 = vmatprep.subr.mxu0 0.0
        %868 = vmatpush2.msra.mxu0 0.0
        %869 = vmatprep.subr.mxu0 0.0
        %870 = vmatpush2.msra.mxu0 0.0
        %871 = vmatprep.subr.mxu0 0.0
        %872 = vmatpush2.msra.mxu0 0.0
        %873 = vmatprep.subr.mxu0 0.0
        %874 = vmatpush2.msra.mxu0 0.0
        %875 = vmatprep.subr.mxu0 0.0
        %876 = vmatpush2.msra.mxu0 0.0
        %877 = vmatprep.subr.mxu0 0.0
        %878 = vmatpush2.msra.mxu0 0.0
        %879 = vmatprep.subr.mxu0 0.0
        %880 = vmatpush2.msra.mxu0 0.0
        %881 = vmatprep.subr.mxu0 0.0
        %882 = vmatpush2.msra.mxu0 0.0
        %883 = vmatprep.mubr.f32.mxu0 0.0
        %884 = vmatmul.mubr.f32.gmra.mxu0 %v817
        %v885 = vpop.f32.mrf.mxu0
        %v886 = vadd.f32 0.0, %v885
        %v887 = vpop.f32.mrf.mxu0
        %888 = vdwg.mxu0
        %s889 = scalar_lea.vmem %s2, 128
        %v890 = vld [vmem:[%s889] sm:$0xff]
        %v891 = vld [vmem:[%s889 + $0x8] sm:$0xff]
        %v892 = vld [vmem:[%s889 + $0x10] sm:$0xff]
        %v893 = vld [vmem:[%s889 + $0x18] sm:$0xff]
        %v894 = vld [vmem:[%s889 + $0x20] sm:$0xff]
        %v895 = vld [vmem:[%s889 + $0x28] sm:$0xff]
        %v896 = vld [vmem:[%s889 + $0x30] sm:$0xff]
        %v897 = vld [vmem:[%s889 + $0x38] sm:$0xff]
        %v899 = vsel %vm667, %v886, 0
        %901 = vmatprep.subr.mxu0 0.0
        %902 = vmatpush1.msra.mxu0 0.0
        %903 = vmatprep.subr.mxu0 0.0
        %904 = vmatpush1.msra.mxu0 0.0
        %905 = vmatprep.subr.mxu0 0.0
        %906 = vmatpush1.msra.mxu0 0.0
        %907 = vmatprep.subr.mxu0 0.0
        %908 = vmatpush1.msra.mxu0 0.0
        %909 = vmatprep.subr.mxu0 0.0
        %910 = vmatpush1.msra.mxu0 0.0
        %911 = vmatprep.subr.mxu0 0.0
        %912 = vmatpush1.msra.mxu0 0.0
        %913 = vmatprep.subr.mxu0 0.0
        %914 = vmatpush1.msra.mxu0 0.0
        %915 = vmatprep.subr.mxu0 0.0
        %916 = vmatpush1.msra.mxu0 0.0
        %917 = vmatprep.subr.mxu0 0.0
        %918 = vmatpush1.msra.mxu0 %v897
        %919 = vmatprep.subr.mxu0 0.0
        %920 = vmatpush1.msra.mxu0 %v896
        %921 = vmatprep.subr.mxu0 0.0
        %922 = vmatpush1.msra.mxu0 %v895
        %923 = vmatprep.subr.mxu0 0.0
        %924 = vmatpush1.msra.mxu0 %v894
        %925 = vmatprep.subr.mxu0 0.0
        %926 = vmatpush1.msra.mxu0 %v893
        %927 = vmatprep.subr.mxu0 0.0
        %928 = vmatpush1.msra.mxu0 %v892
        %929 = vmatprep.subr.mxu0 0.0
        %930 = vmatpush1.msra.mxu0 %v891
        %931 = vmatprep.subr.mxu0 0.0
        %932 = vmatpush1.msra.mxu0 %v890
        %933 = vmatprep.subr.mxu0 0.0
        %934 = vmatpush2.msra.mxu0 0.0
        %935 = vmatprep.subr.mxu0 0.0
        %936 = vmatpush2.msra.mxu0 0.0
        %937 = vmatprep.subr.mxu0 0.0
        %938 = vmatpush2.msra.mxu0 0.0
        %939 = vmatprep.subr.mxu0 0.0
        %940 = vmatpush2.msra.mxu0 0.0
        %941 = vmatprep.subr.mxu0 0.0
        %942 = vmatpush2.msra.mxu0 0.0
        %943 = vmatprep.subr.mxu0 0.0
        %944 = vmatpush2.msra.mxu0 0.0
        %945 = vmatprep.subr.mxu0 0.0
        %946 = vmatpush2.msra.mxu0 0.0
        %947 = vmatprep.subr.mxu0 0.0
        %948 = vmatpush2.msra.mxu0 0.0
        %949 = vmatprep.subr.mxu0 0.0
        %950 = vmatpush2.msra.mxu0 0.0
        %951 = vmatprep.subr.mxu0 0.0
        %952 = vmatpush2.msra.mxu0 0.0
        %953 = vmatprep.subr.mxu0 0.0
        %954 = vmatpush2.msra.mxu0 0.0
        %955 = vmatprep.subr.mxu0 0.0
        %956 = vmatpush2.msra.mxu0 0.0
        %957 = vmatprep.subr.mxu0 0.0
        %958 = vmatpush2.msra.mxu0 0.0
        %959 = vmatprep.subr.mxu0 0.0
        %960 = vmatpush2.msra.mxu0 0.0
        %961 = vmatprep.subr.mxu0 0.0
        %962 = vmatpush2.msra.mxu0 0.0
        %963 = vmatprep.subr.mxu0 0.0
        %964 = vmatpush2.msra.mxu0 0.0
        %965 = vmatprep.mubr.f32.mxu0 0.0
        %966 = vmatmul.mubr.f32.gmra.mxu0 %v899
        %v967 = vpop.f32.mrf.mxu0
        %v968 = vadd.f32 0.0, %v967
        %v969 = vpop.f32.mrf.mxu0
        %970 = vdwg.mxu0
        %v971 = vadd.f32 %v811, %v968
        %s972 = scalar_lea.vmem %s1, 24
        %v973 = vld [vmem:[%s972] sm:$0xff]
        %v975 = vsel %vm501, %v973, 0
        %977 = vmatprep.subr.mxu0 0.0
        %978 = vmatpush1.msra.mxu0 0.0
        %979 = vmatprep.subr.mxu0 0.0
        %980 = vmatpush1.msra.mxu0 0.0
        %981 = vmatprep.subr.mxu0 0.0
        %982 = vmatpush1.msra.mxu0 0.0
        %983 = vmatprep.subr.mxu0 0.0
        %984 = vmatpush1.msra.mxu0 0.0
        %985 = vmatprep.subr.mxu0 0.0
        %986 = vmatpush1.msra.mxu0 0.0
        %987 = vmatprep.subr.mxu0 0.0
        %988 = vmatpush1.msra.mxu0 0.0
        %989 = vmatprep.subr.mxu0 0.0
        %990 = vmatpush1.msra.mxu0 0.0
        %991 = vmatprep.subr.mxu0 0.0
        %992 = vmatpush1.msra.mxu0 0.0
        %993 = vmatprep.subr.mxu0 0.0
        %994 = vmatpush1.msra.mxu0 0.0
        %995 = vmatprep.subr.mxu0 0.0
        %996 = vmatpush1.msra.mxu0 0.0
        %997 = vmatprep.subr.mxu0 0.0
        %998 = vmatpush1.msra.mxu0 0.0
        %999 = vmatprep.subr.mxu0 0.0
        %1000 = vmatpush1.msra.mxu0 0.0
        %1001 = vmatprep.subr.mxu0 0.0
        %1002 = vmatpush1.msra.mxu0 0.0
        %1003 = vmatprep.subr.mxu0 0.0
        %1004 = vmatpush1.msra.mxu0 0.0
        %1005 = vmatprep.subr.mxu0 0.0
        %1006 = vmatpush1.msra.mxu0 %v499
        %1007 = vmatprep.subr.mxu0 0.0
        %1008 = vmatpush1.msra.mxu0 %v498
        %1009 = vmatprep.subr.mxu0 0.0
        %1010 = vmatpush2.msra.mxu0 0.0
        %1011 = vmatprep.subr.mxu0 0.0
        %1012 = vmatpush2.msra.mxu0 0.0
        %1013 = vmatprep.subr.mxu0 0.0
        %1014 = vmatpush2.msra.mxu0 0.0
        %1015 = vmatprep.subr.mxu0 0.0
        %1016 = vmatpush2.msra.mxu0 0.0
        %1017 = vmatprep.subr.mxu0 0.0
        %1018 = vmatpush2.msra.mxu0 0.0
        %1019 = vmatprep.subr.mxu0 0.0
        %1020 = vmatpush2.msra.mxu0 0.0
        %1021 = vmatprep.subr.mxu0 0.0
        %1022 = vmatpush2.msra.mxu0 0.0
        %1023 = vmatprep.subr.mxu0 0.0
        %1024 = vmatpush2.msra.mxu0 0.0
        %1025 = vmatprep.subr.mxu0 0.0
        %1026 = vmatpush2.msra.mxu0 0.0
        %1027 = vmatprep.subr.mxu0 0.0
        %1028 = vmatpush2.msra.mxu0 0.0
        %1029 = vmatprep.subr.mxu0 0.0
        %1030 = vmatpush2.msra.mxu0 0.0
        %1031 = vmatprep.subr.mxu0 0.0
        %1032 = vmatpush2.msra.mxu0 0.0
        %1033 = vmatprep.subr.mxu0 0.0
        %1034 = vmatpush2.msra.mxu0 0.0
        %1035 = vmatprep.subr.mxu0 0.0
        %1036 = vmatpush2.msra.mxu0 0.0
        %1037 = vmatprep.subr.mxu0 0.0
        %1038 = vmatpush2.msra.mxu0 0.0
        %1039 = vmatprep.subr.mxu0 0.0
        %1040 = vmatpush2.msra.mxu0 0.0
        %1041 = vmatprep.mubr.f32.mxu0 0.0
        %1042 = vmatmul.mubr.f32.gmra.mxu0 %v975
        %v1043 = vpop.f32.mrf.mxu0
        %v1044 = vadd.f32 0.0, %v1043
        %v1045 = vpop.f32.mrf.mxu0
        %1046 = vdwg.mxu0
        %s1047 = scalar_lea.vmem %s2, 192
        %v1048 = vld [vmem:[%s1047] sm:$0xff]
        %v1049 = vld [vmem:[%s1047 + $0x8] sm:$0xff]
        %v1050 = vld [vmem:[%s1047 + $0x10] sm:$0xff]
        %v1051 = vld [vmem:[%s1047 + $0x18] sm:$0xff]
        %v1052 = vld [vmem:[%s1047 + $0x20] sm:$0xff]
        %v1053 = vld [vmem:[%s1047 + $0x28] sm:$0xff]
        %v1054 = vld [vmem:[%s1047 + $0x30] sm:$0xff]
        %v1055 = vld [vmem:[%s1047 + $0x38] sm:$0xff]
        %v1057 = vsel %vm667, %v1044, 0
        %1059 = vmatprep.subr.mxu0 0.0
        %1060 = vmatpush1.msra.mxu0 0.0
        %1061 = vmatprep.subr.mxu0 0.0
        %1062 = vmatpush1.msra.mxu0 0.0
        %1063 = vmatprep.subr.mxu0 0.0
        %1064 = vmatpush1.msra.mxu0 0.0
        %1065 = vmatprep.subr.mxu0 0.0
        %1066 = vmatpush1.msra.mxu0 0.0
        %1067 = vmatprep.subr.mxu0 0.0
        %1068 = vmatpush1.msra.mxu0 0.0
        %1069 = vmatprep.subr.mxu0 0.0
        %1070 = vmatpush1.msra.mxu0 0.0
        %1071 = vmatprep.subr.mxu0 0.0
        %1072 = vmatpush1.msra.mxu0 0.0
        %1073 = vmatprep.subr.mxu0 0.0
        %1074 = vmatpush1.msra.mxu0 0.0
        %1075 = vmatprep.subr.mxu0 0.0
        %1076 = vmatpush1.msra.mxu0 %v1055
        %1077 = vmatprep.subr.mxu0 0.0
        %1078 = vmatpush1.msra.mxu0 %v1054
        %1079 = vmatprep.subr.mxu0 0.0
        %1080 = vmatpush1.msra.mxu0 %v1053
        %1081 = vmatprep.subr.mxu0 0.0
        %1082 = vmatpush1.msra.mxu0 %v1052
        %1083 = vmatprep.subr.mxu0 0.0
        %1084 = vmatpush1.msra.mxu0 %v1051
        %1085 = vmatprep.subr.mxu0 0.0
        %1086 = vmatpush1.msra.mxu0 %v1050
        %1087 = vmatprep.subr.mxu0 0.0
        %1088 = vmatpush1.msra.mxu0 %v1049
        %1089 = vmatprep.subr.mxu0 0.0
        %1090 = vmatpush1.msra.mxu0 %v1048
        %1091 = vmatprep.subr.mxu0 0.0
        %1092 = vmatpush2.msra.mxu0 0.0
        %1093 = vmatprep.subr.mxu0 0.0
        %1094 = vmatpush2.msra.mxu0 0.0
        %1095 = vmatprep.subr.mxu0 0.0
        %1096 = vmatpush2.msra.mxu0 0.0
        %1097 = vmatprep.subr.mxu0 0.0
        %1098 = vmatpush2.msra.mxu0 0.0
        %1099 = vmatprep.subr.mxu0 0.0
        %1100 = vmatpush2.msra.mxu0 0.0
        %1101 = vmatprep.subr.mxu0 0.0
        %1102 = vmatpush2.msra.mxu0 0.0
        %1103 = vmatprep.subr.mxu0 0.0
        %1104 = vmatpush2.msra.mxu0 0.0
        %1105 = vmatprep.subr.mxu0 0.0
        %1106 = vmatpush2.msra.mxu0 0.0
        %1107 = vmatprep.subr.mxu0 0.0
        %1108 = vmatpush2.msra.mxu0 0.0
        %1109 = vmatprep.subr.mxu0 0.0
        %1110 = vmatpush2.msra.mxu0 0.0
        %1111 = vmatprep.subr.mxu0 0.0
        %1112 = vmatpush2.msra.mxu0 0.0
        %1113 = vmatprep.subr.mxu0 0.0
        %1114 = vmatpush2.msra.mxu0 0.0
        %1115 = vmatprep.subr.mxu0 0.0
        %1116 = vmatpush2.msra.mxu0 0.0
        %1117 = vmatprep.subr.mxu0 0.0
        %1118 = vmatpush2.msra.mxu0 0.0
        %1119 = vmatprep.subr.mxu0 0.0
        %1120 = vmatpush2.msra.mxu0 0.0
        %1121 = vmatprep.subr.mxu0 0.0
        %1122 = vmatpush2.msra.mxu0 0.0
        %1123 = vmatprep.mubr.f32.mxu0 0.0
        %1124 = vmatmul.mubr.f32.gmra.mxu0 %v1057
        %v1125 = vpop.f32.mrf.mxu0
        %v1126 = vadd.f32 0.0, %v1125
        %v1127 = vpop.f32.mrf.mxu0
        %1128 = vdwg.mxu0
        %v1129 = vadd.f32 %v971, %v1126
        %v1130 = vld [vmem:[%s3] sm:$0x1]
        %v1132 = vlaneseq
        %v1133 = vshrl.u32 %v1132, 7
        %v1134 = vsub.s32 0, %v1133
        %v1135 = vrot.slane %v1130, %v1134
        %v1137 = vadd.f32 %v1129, %v1135
        %v1138 = vmax.f32 %v1137, 0.0
        %v1139 = vld [vmem:[#allocation2] sm:$0xf]
        %vm1140 = vcmask 64512
        %v1142 = vsel %vm1140, %v1139, 0
        %1144 = vmatprep.subr.mxu0 0.0
        %1145 = vmatpush1.msra.mxu0 0.0
        %1146 = vmatprep.subr.mxu0 0.0
        %1147 = vmatpush1.msra.mxu0 0.0
        %1148 = vmatprep.subr.mxu0 0.0
        %1149 = vmatpush1.msra.mxu0 0.0
        %1150 = vmatprep.subr.mxu0 0.0
        %1151 = vmatpush1.msra.mxu0 0.0
        %1152 = vmatprep.subr.mxu0 0.0
        %1153 = vmatpush1.msra.mxu0 0.0
        %1154 = vmatprep.subr.mxu0 0.0
        %1155 = vmatpush1.msra.mxu0 0.0
        %1156 = vmatprep.subr.mxu0 0.0
        %1157 = vmatpush1.msra.mxu0 0.0
        %1158 = vmatprep.subr.mxu0 0.0
        %1159 = vmatpush1.msra.mxu0 0.0
        %1160 = vmatprep.subr.mxu0 0.0
        %1161 = vmatpush1.msra.mxu0 0.0
        %1162 = vmatprep.subr.mxu0 0.0
        %1163 = vmatpush1.msra.mxu0 0.0
        %1164 = vmatprep.subr.mxu0 0.0
        %1165 = vmatpush1.msra.mxu0 0.0
        %1166 = vmatprep.subr.mxu0 0.0
        %1167 = vmatpush1.msra.mxu0 0.0
        %1168 = vmatprep.subr.mxu0 0.0
        %1169 = vmatpush1.msra.mxu0 0.0
        %1170 = vmatprep.subr.mxu0 0.0
        %1171 = vmatpush1.msra.mxu0 0.0
        %1172 = vmatprep.subr.mxu0 0.0
        %1173 = vmatpush1.msra.mxu0 0.0
        %1174 = vmatprep.subr.mxu0 0.0
        %1175 = vmatpush1.msra.mxu0 %v1138
        %1176 = vmatprep.subr.mxu0 0.0
        %1177 = vmatpush2.msra.mxu0 0.0
        %1178 = vmatprep.subr.mxu0 0.0
        %1179 = vmatpush2.msra.mxu0 0.0
        %1180 = vmatprep.subr.mxu0 0.0
        %1181 = vmatpush2.msra.mxu0 0.0
        %1182 = vmatprep.subr.mxu0 0.0
        %1183 = vmatpush2.msra.mxu0 0.0
        %1184 = vmatprep.subr.mxu0 0.0
        %1185 = vmatpush2.msra.mxu0 0.0
        %1186 = vmatprep.subr.mxu0 0.0
        %1187 = vmatpush2.msra.mxu0 0.0
        %1188 = vmatprep.subr.mxu0 0.0
        %1189 = vmatpush2.msra.mxu0 0.0
        %1190 = vmatprep.subr.mxu0 0.0
        %1191 = vmatpush2.msra.mxu0 0.0
        %1192 = vmatprep.subr.mxu0 0.0
        %1193 = vmatpush2.msra.mxu0 0.0
        %1194 = vmatprep.subr.mxu0 0.0
        %1195 = vmatpush2.msra.mxu0 0.0
        %1196 = vmatprep.subr.mxu0 0.0
        %1197 = vmatpush2.msra.mxu0 0.0
        %1198 = vmatprep.subr.mxu0 0.0
        %1199 = vmatpush2.msra.mxu0 0.0
        %1200 = vmatprep.subr.mxu0 0.0
        %1201 = vmatpush2.msra.mxu0 0.0
        %1202 = vmatprep.subr.mxu0 0.0
        %1203 = vmatpush2.msra.mxu0 0.0
        %1204 = vmatprep.subr.mxu0 0.0
        %1205 = vmatpush2.msra.mxu0 0.0
        %1206 = vmatprep.subr.mxu0 0.0
        %1207 = vmatpush2.msra.mxu0 0.0
        %1208 = vmatprep.mubr.f32.mxu0 0.0
        %1209 = vmatmul.mubr.f32.gmra.mxu0 %v1142
        %v1210 = vpop.f32.mrf.mxu0
        %v1211 = vadd.f32 0.0, %v1210
        %v1212 = vpop.f32.mrf.mxu0
        %1213 = vdwg.mxu0
        %v1214 = vld [vmem:[%s5] sm:$0xff]
        %v1215 = vld [vmem:[%s5 + $0x8] sm:$0xff]
        %v1216 = vld [vmem:[%s5 + $0x10] sm:$0xff]
        %v1217 = vld [vmem:[%s5 + $0x18] sm:$0xff]
        %v1218 = vld [vmem:[%s5 + $0x20] sm:$0xff]
        %v1219 = vld [vmem:[%s5 + $0x28] sm:$0xff]
        %v1220 = vld [vmem:[%s5 + $0x30] sm:$0xff]
        %v1221 = vld [vmem:[%s5 + $0x38] sm:$0xff]
        %s1222 = scalar_lea.vmem [#allocation2], 4
        %v1223 = vld [vmem:[%s1222] sm:$0xf]
        %v1225 = vsel %vm1140, %v1223, 0
        %1227 = vmatprep.subr.mxu0 0.0
        %1228 = vmatpush1.msra.mxu0 0.0
        %1229 = vmatprep.subr.mxu0 0.0
        %1230 = vmatpush1.msra.mxu0 0.0
        %1231 = vmatprep.subr.mxu0 0.0
        %1232 = vmatpush1.msra.mxu0 0.0
        %1233 = vmatprep.subr.mxu0 0.0
        %1234 = vmatpush1.msra.mxu0 0.0
        %1235 = vmatprep.subr.mxu0 0.0
        %1236 = vmatpush1.msra.mxu0 0.0
        %1237 = vmatprep.subr.mxu0 0.0
        %1238 = vmatpush1.msra.mxu0 0.0
        %1239 = vmatprep.subr.mxu0 0.0
        %1240 = vmatpush1.msra.mxu0 0.0
        %1241 = vmatprep.subr.mxu0 0.0
        %1242 = vmatpush1.msra.mxu0 0.0
        %1243 = vmatprep.subr.mxu0 0.0
        %1244 = vmatpush1.msra.mxu0 0.0
        %1245 = vmatprep.subr.mxu0 0.0
        %1246 = vmatpush1.msra.mxu0 0.0
        %1247 = vmatprep.subr.mxu0 0.0
        %1248 = vmatpush1.msra.mxu0 0.0
        %1249 = vmatprep.subr.mxu0 0.0
        %1250 = vmatpush1.msra.mxu0 0.0
        %1251 = vmatprep.subr.mxu0 0.0
        %1252 = vmatpush1.msra.mxu0 0.0
        %1253 = vmatprep.subr.mxu0 0.0
        %1254 = vmatpush1.msra.mxu0 0.0
        %1255 = vmatprep.subr.mxu0 0.0
        %1256 = vmatpush1.msra.mxu0 0.0
        %1257 = vmatprep.subr.mxu0 0.0
        %1258 = vmatpush1.msra.mxu0 %v1138
        %1259 = vmatprep.subr.mxu0 0.0
        %1260 = vmatpush2.msra.mxu0 0.0
        %1261 = vmatprep.subr.mxu0 0.0
        %1262 = vmatpush2.msra.mxu0 0.0
        %1263 = vmatprep.subr.mxu0 0.0
        %1264 = vmatpush2.msra.mxu0 0.0
        %1265 = vmatprep.subr.mxu0 0.0
        %1266 = vmatpush2.msra.mxu0 0.0
        %1267 = vmatprep.subr.mxu0 0.0
        %1268 = vmatpush2.msra.mxu0 0.0
        %1269 = vmatprep.subr.mxu0 0.0
        %1270 = vmatpush2.msra.mxu0 0.0
        %1271 = vmatprep.subr.mxu0 0.0
        %1272 = vmatpush2.msra.mxu0 0.0
        %1273 = vmatprep.subr.mxu0 0.0
        %1274 = vmatpush2.msra.mxu0 0.0
        %1275 = vmatprep.subr.mxu0 0.0
        %1276 = vmatpush2.msra.mxu0 0.0
        %1277 = vmatprep.subr.mxu0 0.0
        %1278 = vmatpush2.msra.mxu0 0.0
        %1279 = vmatprep.subr.mxu0 0.0
        %1280 = vmatpush2.msra.mxu0 0.0
        %1281 = vmatprep.subr.mxu0 0.0
        %1282 = vmatpush2.msra.mxu0 0.0
        %1283 = vmatprep.subr.mxu0 0.0
        %1284 = vmatpush2.msra.mxu0 0.0
        %1285 = vmatprep.subr.mxu0 0.0
        %1286 = vmatpush2.msra.mxu0 0.0
        %1287 = vmatprep.subr.mxu0 0.0
        %1288 = vmatpush2.msra.mxu0 0.0
        %1289 = vmatprep.subr.mxu0 0.0
        %1290 = vmatpush2.msra.mxu0 0.0
        %1291 = vmatprep.mubr.f32.mxu0 0.0
        %1292 = vmatmul.mubr.f32.gmra.mxu0 %v1225
        %v1293 = vpop.f32.mrf.mxu0
        %v1294 = vadd.f32 0.0, %v1293
        %v1295 = vpop.f32.mrf.mxu0
        %1296 = vdwg.mxu0
        %s1297 = scalar_lea.vmem %s5, 64
        %v1298 = vld [vmem:[%s1297] sm:$0xff]
        %v1299 = vld [vmem:[%s1297 + $0x8] sm:$0xff]
        %v1300 = vld [vmem:[%s1297 + $0x10] sm:$0xff]
        %v1301 = vld [vmem:[%s1297 + $0x18] sm:$0xff]
        %v1302 = vld [vmem:[%s1297 + $0x20] sm:$0xff]
        %v1303 = vld [vmem:[%s1297 + $0x28] sm:$0xff]
        %v1304 = vld [vmem:[%s1297 + $0x30] sm:$0xff]
        %v1305 = vld [vmem:[%s1297 + $0x38] sm:$0xff]
        %v1307 = vsel %vm667, %v1294, 0
        %1309 = vmatprep.subr.mxu0 0.0
        %1310 = vmatpush1.msra.mxu0 0.0
        %1311 = vmatprep.subr.mxu0 0.0
        %1312 = vmatpush1.msra.mxu0 0.0
        %1313 = vmatprep.subr.mxu0 0.0
        %1314 = vmatpush1.msra.mxu0 0.0
        %1315 = vmatprep.subr.mxu0 0.0
        %1316 = vmatpush1.msra.mxu0 0.0
        %1317 = vmatprep.subr.mxu0 0.0
        %1318 = vmatpush1.msra.mxu0 0.0
        %1319 = vmatprep.subr.mxu0 0.0
        %1320 = vmatpush1.msra.mxu0 0.0
        %1321 = vmatprep.subr.mxu0 0.0
        %1322 = vmatpush1.msra.mxu0 0.0
        %1323 = vmatprep.subr.mxu0 0.0
        %1324 = vmatpush1.msra.mxu0 0.0
        %1325 = vmatprep.subr.mxu0 0.0
        %1326 = vmatpush1.msra.mxu0 %v1305
        %1327 = vmatprep.subr.mxu0 0.0
        %1328 = vmatpush1.msra.mxu0 %v1304
        %1329 = vmatprep.subr.mxu0 0.0
        %1330 = vmatpush1.msra.mxu0 %v1303
        %1331 = vmatprep.subr.mxu0 0.0
        %1332 = vmatpush1.msra.mxu0 %v1302
        %1333 = vmatprep.subr.mxu0 0.0
        %1334 = vmatpush1.msra.mxu0 %v1301
        %1335 = vmatprep.subr.mxu0 0.0
        %1336 = vmatpush1.msra.mxu0 %v1300
        %1337 = vmatprep.subr.mxu0 0.0
        %1338 = vmatpush1.msra.mxu0 %v1299
        %1339 = vmatprep.subr.mxu0 0.0
        %1340 = vmatpush1.msra.mxu0 %v1298
        %1341 = vmatprep.subr.mxu0 0.0
        %1342 = vmatpush2.msra.mxu0 0.0
        %1343 = vmatprep.subr.mxu0 0.0
        %1344 = vmatpush2.msra.mxu0 0.0
        %1345 = vmatprep.subr.mxu0 0.0
        %1346 = vmatpush2.msra.mxu0 0.0
        %1347 = vmatprep.subr.mxu0 0.0
        %1348 = vmatpush2.msra.mxu0 0.0
        %1349 = vmatprep.subr.mxu0 0.0
        %1350 = vmatpush2.msra.mxu0 0.0
        %1351 = vmatprep.subr.mxu0 0.0
        %1352 = vmatpush2.msra.mxu0 0.0
        %1353 = vmatprep.subr.mxu0 0.0
        %1354 = vmatpush2.msra.mxu0 0.0
        %1355 = vmatprep.subr.mxu0 0.0
        %1356 = vmatpush2.msra.mxu0 0.0
        %1357 = vmatprep.subr.mxu0 0.0
        %1358 = vmatpush2.msra.mxu0 0.0
        %1359 = vmatprep.subr.mxu0 0.0
        %1360 = vmatpush2.msra.mxu0 0.0
        %1361 = vmatprep.subr.mxu0 0.0
        %1362 = vmatpush2.msra.mxu0 0.0
        %1363 = vmatprep.subr.mxu0 0.0
        %1364 = vmatpush2.msra.mxu0 0.0
        %1365 = vmatprep.subr.mxu0 0.0
        %1366 = vmatpush2.msra.mxu0 0.0
        %1367 = vmatprep.subr.mxu0 0.0
        %1368 = vmatpush2.msra.mxu0 0.0
        %1369 = vmatprep.subr.mxu0 0.0
        %1370 = vmatpush2.msra.mxu0 0.0
        %1371 = vmatprep.subr.mxu0 0.0
        %1372 = vmatpush2.msra.mxu0 0.0
        %1373 = vmatprep.mubr.f32.mxu0 0.0
        %1374 = vmatmul.mubr.f32.gmra.mxu0 %v1307
        %v1375 = vpop.f32.mrf.mxu0
        %v1376 = vadd.f32 0.0, %v1375
        %v1377 = vpop.f32.mrf.mxu0
        %1378 = vdwg.mxu0
        %v1380 = vsel %vm667, %v1211, 0
        %1382 = vmatprep.subr.mxu0 0.0
        %1383 = vmatpush1.msra.mxu0 0.0
        %1384 = vmatprep.subr.mxu0 0.0
        %1385 = vmatpush1.msra.mxu0 0.0
        %1386 = vmatprep.subr.mxu0 0.0
        %1387 = vmatpush1.msra.mxu0 0.0
        %1388 = vmatprep.subr.mxu0 0.0
        %1389 = vmatpush1.msra.mxu0 0.0
        %1390 = vmatprep.subr.mxu0 0.0
        %1391 = vmatpush1.msra.mxu0 0.0
        %1392 = vmatprep.subr.mxu0 0.0
        %1393 = vmatpush1.msra.mxu0 0.0
        %1394 = vmatprep.subr.mxu0 0.0
        %1395 = vmatpush1.msra.mxu0 0.0
        %1396 = vmatprep.subr.mxu0 0.0
        %1397 = vmatpush1.msra.mxu0 0.0
        %1398 = vmatprep.subr.mxu0 0.0
        %1399 = vmatpush1.msra.mxu0 %v1221
        %1400 = vmatprep.subr.mxu0 0.0
        %1401 = vmatpush1.msra.mxu0 %v1220
        %1402 = vmatprep.subr.mxu0 0.0
        %1403 = vmatpush1.msra.mxu0 %v1219
        %1404 = vmatprep.subr.mxu0 0.0
        %1405 = vmatpush1.msra.mxu0 %v1218
        %1406 = vmatprep.subr.mxu0 0.0
        %1407 = vmatpush1.msra.mxu0 %v1217
        %1408 = vmatprep.subr.mxu0 0.0
        %1409 = vmatpush1.msra.mxu0 %v1216
        %1410 = vmatprep.subr.mxu0 0.0
        %1411 = vmatpush1.msra.mxu0 %v1215
        %1412 = vmatprep.subr.mxu0 0.0
        %1413 = vmatpush1.msra.mxu0 %v1214
        %1414 = vmatprep.subr.mxu0 0.0
        %1415 = vmatpush2.msra.mxu0 0.0
        %1416 = vmatprep.subr.mxu0 0.0
        %1417 = vmatpush2.msra.mxu0 0.0
        %1418 = vmatprep.subr.mxu0 0.0
        %1419 = vmatpush2.msra.mxu0 0.0
        %1420 = vmatprep.subr.mxu0 0.0
        %1421 = vmatpush2.msra.mxu0 0.0
        %1422 = vmatprep.subr.mxu0 0.0
        %1423 = vmatpush2.msra.mxu0 0.0
        %1424 = vmatprep.subr.mxu0 0.0
        %1425 = vmatpush2.msra.mxu0 0.0
        %1426 = vmatprep.subr.mxu0 0.0
        %1427 = vmatpush2.msra.mxu0 0.0
        %1428 = vmatprep.subr.mxu0 0.0
        %1429 = vmatpush2.msra.mxu0 0.0
        %1430 = vmatprep.subr.mxu0 0.0
        %1431 = vmatpush2.msra.mxu0 0.0
        %1432 = vmatprep.subr.mxu0 0.0
        %1433 = vmatpush2.msra.mxu0 0.0
        %1434 = vmatprep.subr.mxu0 0.0
        %1435 = vmatpush2.msra.mxu0 0.0
        %1436 = vmatprep.subr.mxu0 0.0
        %1437 = vmatpush2.msra.mxu0 0.0
        %1438 = vmatprep.subr.mxu0 0.0
        %1439 = vmatpush2.msra.mxu0 0.0
        %1440 = vmatprep.subr.mxu0 0.0
        %1441 = vmatpush2.msra.mxu0 0.0
        %1442 = vmatprep.subr.mxu0 0.0
        %1443 = vmatpush2.msra.mxu0 0.0
        %1444 = vmatprep.subr.mxu0 0.0
        %1445 = vmatpush2.msra.mxu0 0.0
        %1446 = vmatprep.mubr.f32.mxu0 0.0
        %1447 = vmatmul.mubr.f32.gmra.mxu0 %v1380
        %v1448 = vpop.f32.mrf.mxu0
        %v1449 = vadd.f32 %v1376, %v1448
        %v1450 = vpop.f32.mrf.mxu0
        %1451 = vdwg.mxu0
        %s1452 = scalar_lea.vmem [#allocation2], 8
        %v1453 = vld [vmem:[%s1452] sm:$0xf]
        %v1455 = vsel %vm1140, %v1453, 0
        %1457 = vmatprep.subr.mxu0 0.0
        %1458 = vmatpush1.msra.mxu0 0.0
        %1459 = vmatprep.subr.mxu0 0.0
        %1460 = vmatpush1.msra.mxu0 0.0
        %1461 = vmatprep.subr.mxu0 0.0
        %1462 = vmatpush1.msra.mxu0 0.0
        %1463 = vmatprep.subr.mxu0 0.0
        %1464 = vmatpush1.msra.mxu0 0.0
        %1465 = vmatprep.subr.mxu0 0.0
        %1466 = vmatpush1.msra.mxu0 0.0
        %1467 = vmatprep.subr.mxu0 0.0
        %1468 = vmatpush1.msra.mxu0 0.0
        %1469 = vmatprep.subr.mxu0 0.0
        %1470 = vmatpush1.msra.mxu0 0.0
        %1471 = vmatprep.subr.mxu0 0.0
        %1472 = vmatpush1.msra.mxu0 0.0
        %1473 = vmatprep.subr.mxu0 0.0
        %1474 = vmatpush1.msra.mxu0 0.0
        %1475 = vmatprep.subr.mxu0 0.0
        %1476 = vmatpush1.msra.mxu0 0.0
        %1477 = vmatprep.subr.mxu0 0.0
        %1478 = vmatpush1.msra.mxu0 0.0
        %1479 = vmatprep.subr.mxu0 0.0
        %1480 = vmatpush1.msra.mxu0 0.0
        %1481 = vmatprep.subr.mxu0 0.0
        %1482 = vmatpush1.msra.mxu0 0.0
        %1483 = vmatprep.subr.mxu0 0.0
        %1484 = vmatpush1.msra.mxu0 0.0
        %1485 = vmatprep.subr.mxu0 0.0
        %1486 = vmatpush1.msra.mxu0 0.0
        %1487 = vmatprep.subr.mxu0 0.0
        %1488 = vmatpush1.msra.mxu0 %v1138
        %1489 = vmatprep.subr.mxu0 0.0
        %1490 = vmatpush2.msra.mxu0 0.0
        %1491 = vmatprep.subr.mxu0 0.0
        %1492 = vmatpush2.msra.mxu0 0.0
        %1493 = vmatprep.subr.mxu0 0.0
        %1494 = vmatpush2.msra.mxu0 0.0
        %1495 = vmatprep.subr.mxu0 0.0
        %1496 = vmatpush2.msra.mxu0 0.0
        %1497 = vmatprep.subr.mxu0 0.0
        %1498 = vmatpush2.msra.mxu0 0.0
        %1499 = vmatprep.subr.mxu0 0.0
        %1500 = vmatpush2.msra.mxu0 0.0
        %1501 = vmatprep.subr.mxu0 0.0
        %1502 = vmatpush2.msra.mxu0 0.0
        %1503 = vmatprep.subr.mxu0 0.0
        %1504 = vmatpush2.msra.mxu0 0.0
        %1505 = vmatprep.subr.mxu0 0.0
        %1506 = vmatpush2.msra.mxu0 0.0
        %1507 = vmatprep.subr.mxu0 0.0
        %1508 = vmatpush2.msra.mxu0 0.0
        %1509 = vmatprep.subr.mxu0 0.0
        %1510 = vmatpush2.msra.mxu0 0.0
        %1511 = vmatprep.subr.mxu0 0.0
        %1512 = vmatpush2.msra.mxu0 0.0
        %1513 = vmatprep.subr.mxu0 0.0
        %1514 = vmatpush2.msra.mxu0 0.0
        %1515 = vmatprep.subr.mxu0 0.0
        %1516 = vmatpush2.msra.mxu0 0.0
        %1517 = vmatprep.subr.mxu0 0.0
        %1518 = vmatpush2.msra.mxu0 0.0
        %1519 = vmatprep.subr.mxu0 0.0
        %1520 = vmatpush2.msra.mxu0 0.0
        %1521 = vmatprep.mubr.f32.mxu0 0.0
        %1522 = vmatmul.mubr.f32.gmra.mxu0 %v1455
        %v1523 = vpop.f32.mrf.mxu0
        %v1524 = vadd.f32 0.0, %v1523
        %v1525 = vpop.f32.mrf.mxu0
        %1526 = vdwg.mxu0
        %s1527 = scalar_lea.vmem %s5, 128
        %v1528 = vld [vmem:[%s1527] sm:$0xff]
        %v1529 = vld [vmem:[%s1527 + $0x8] sm:$0xff]
        %v1530 = vld [vmem:[%s1527 + $0x10] sm:$0xff]
        %v1531 = vld [vmem:[%s1527 + $0x18] sm:$0xff]
        %v1532 = vld [vmem:[%s1527 + $0x20] sm:$0xff]
        %v1533 = vld [vmem:[%s1527 + $0x28] sm:$0xff]
        %v1534 = vld [vmem:[%s1527 + $0x30] sm:$0xff]
        %v1535 = vld [vmem:[%s1527 + $0x38] sm:$0xff]
        %v1537 = vsel %vm667, %v1524, 0
        %1539 = vmatprep.subr.mxu0 0.0
        %1540 = vmatpush1.msra.mxu0 0.0
        %1541 = vmatprep.subr.mxu0 0.0
        %1542 = vmatpush1.msra.mxu0 0.0
        %1543 = vmatprep.subr.mxu0 0.0
        %1544 = vmatpush1.msra.mxu0 0.0
        %1545 = vmatprep.subr.mxu0 0.0
        %1546 = vmatpush1.msra.mxu0 0.0
        %1547 = vmatprep.subr.mxu0 0.0
        %1548 = vmatpush1.msra.mxu0 0.0
        %1549 = vmatprep.subr.mxu0 0.0
        %1550 = vmatpush1.msra.mxu0 0.0
        %1551 = vmatprep.subr.mxu0 0.0
        %1552 = vmatpush1.msra.mxu0 0.0
        %1553 = vmatprep.subr.mxu0 0.0
        %1554 = vmatpush1.msra.mxu0 0.0
        %1555 = vmatprep.subr.mxu0 0.0
        %1556 = vmatpush1.msra.mxu0 %v1535
        %1557 = vmatprep.subr.mxu0 0.0
        %1558 = vmatpush1.msra.mxu0 %v1534
        %1559 = vmatprep.subr.mxu0 0.0
        %1560 = vmatpush1.msra.mxu0 %v1533
        %1561 = vmatprep.subr.mxu0 0.0
        %1562 = vmatpush1.msra.mxu0 %v1532
        %1563 = vmatprep.subr.mxu0 0.0
        %1564 = vmatpush1.msra.mxu0 %v1531
        %1565 = vmatprep.subr.mxu0 0.0
        %1566 = vmatpush1.msra.mxu0 %v1530
        %1567 = vmatprep.subr.mxu0 0.0
        %1568 = vmatpush1.msra.mxu0 %v1529
        %1569 = vmatprep.subr.mxu0 0.0
        %1570 = vmatpush1.msra.mxu0 %v1528
        %1571 = vmatprep.subr.mxu0 0.0
        %1572 = vmatpush2.msra.mxu0 0.0
        %1573 = vmatprep.subr.mxu0 0.0
        %1574 = vmatpush2.msra.mxu0 0.0
        %1575 = vmatprep.subr.mxu0 0.0
        %1576 = vmatpush2.msra.mxu0 0.0
        %1577 = vmatprep.subr.mxu0 0.0
        %1578 = vmatpush2.msra.mxu0 0.0
        %1579 = vmatprep.subr.mxu0 0.0
        %1580 = vmatpush2.msra.mxu0 0.0
        %1581 = vmatprep.subr.mxu0 0.0
        %1582 = vmatpush2.msra.mxu0 0.0
        %1583 = vmatprep.subr.mxu0 0.0
        %1584 = vmatpush2.msra.mxu0 0.0
        %1585 = vmatprep.subr.mxu0 0.0
        %1586 = vmatpush2.msra.mxu0 0.0
        %1587 = vmatprep.subr.mxu0 0.0
        %1588 = vmatpush2.msra.mxu0 0.0
        %1589 = vmatprep.subr.mxu0 0.0
        %1590 = vmatpush2.msra.mxu0 0.0
        %1591 = vmatprep.subr.mxu0 0.0
        %1592 = vmatpush2.msra.mxu0 0.0
        %1593 = vmatprep.subr.mxu0 0.0
        %1594 = vmatpush2.msra.mxu0 0.0
        %1595 = vmatprep.subr.mxu0 0.0
        %1596 = vmatpush2.msra.mxu0 0.0
        %1597 = vmatprep.subr.mxu0 0.0
        %1598 = vmatpush2.msra.mxu0 0.0
        %1599 = vmatprep.subr.mxu0 0.0
        %1600 = vmatpush2.msra.mxu0 0.0
        %1601 = vmatprep.subr.mxu0 0.0
        %1602 = vmatpush2.msra.mxu0 0.0
        %1603 = vmatprep.mubr.f32.mxu0 0.0
        %1604 = vmatmul.mubr.f32.gmra.mxu0 %v1537
        %v1605 = vpop.f32.mrf.mxu0
        %v1606 = vadd.f32 0.0, %v1605
        %v1607 = vpop.f32.mrf.mxu0
        %1608 = vdwg.mxu0
        %v1609 = vadd.f32 %v1449, %v1606
        %s1610 = scalar_lea.vmem [#allocation2], 12
        %v1611 = vld [vmem:[%s1610] sm:$0xf]
        %v1613 = vsel %vm1140, %v1611, 0
        %1615 = vmatprep.subr.mxu0 0.0
        %1616 = vmatpush1.msra.mxu0 0.0
        %1617 = vmatprep.subr.mxu0 0.0
        %1618 = vmatpush1.msra.mxu0 0.0
        %1619 = vmatprep.subr.mxu0 0.0
        %1620 = vmatpush1.msra.mxu0 0.0
        %1621 = vmatprep.subr.mxu0 0.0
        %1622 = vmatpush1.msra.mxu0 0.0
        %1623 = vmatprep.subr.mxu0 0.0
        %1624 = vmatpush1.msra.mxu0 0.0
        %1625 = vmatprep.subr.mxu0 0.0
        %1626 = vmatpush1.msra.mxu0 0.0
        %1627 = vmatprep.subr.mxu0 0.0
        %1628 = vmatpush1.msra.mxu0 0.0
        %1629 = vmatprep.subr.mxu0 0.0
        %1630 = vmatpush1.msra.mxu0 0.0
        %1631 = vmatprep.subr.mxu0 0.0
        %1632 = vmatpush1.msra.mxu0 0.0
        %1633 = vmatprep.subr.mxu0 0.0
        %1634 = vmatpush1.msra.mxu0 0.0
        %1635 = vmatprep.subr.mxu0 0.0
        %1636 = vmatpush1.msra.mxu0 0.0
        %1637 = vmatprep.subr.mxu0 0.0
        %1638 = vmatpush1.msra.mxu0 0.0
        %1639 = vmatprep.subr.mxu0 0.0
        %1640 = vmatpush1.msra.mxu0 0.0
        %1641 = vmatprep.subr.mxu0 0.0
        %1642 = vmatpush1.msra.mxu0 0.0
        %1643 = vmatprep.subr.mxu0 0.0
        %1644 = vmatpush1.msra.mxu0 0.0
        %1645 = vmatprep.subr.mxu0 0.0
        %1646 = vmatpush1.msra.mxu0 %v1138
        %1647 = vmatprep.subr.mxu0 0.0
        %1648 = vmatpush2.msra.mxu0 0.0
        %1649 = vmatprep.subr.mxu0 0.0
        %1650 = vmatpush2.msra.mxu0 0.0
        %1651 = vmatprep.subr.mxu0 0.0
        %1652 = vmatpush2.msra.mxu0 0.0
        %1653 = vmatprep.subr.mxu0 0.0
        %1654 = vmatpush2.msra.mxu0 0.0
        %1655 = vmatprep.subr.mxu0 0.0
        %1656 = vmatpush2.msra.mxu0 0.0
        %1657 = vmatprep.subr.mxu0 0.0
        %1658 = vmatpush2.msra.mxu0 0.0
        %1659 = vmatprep.subr.mxu0 0.0
        %1660 = vmatpush2.msra.mxu0 0.0
        %1661 = vmatprep.subr.mxu0 0.0
        %1662 = vmatpush2.msra.mxu0 0.0
        %1663 = vmatprep.subr.mxu0 0.0
        %1664 = vmatpush2.msra.mxu0 0.0
        %1665 = vmatprep.subr.mxu0 0.0
        %1666 = vmatpush2.msra.mxu0 0.0
        %1667 = vmatprep.subr.mxu0 0.0
        %1668 = vmatpush2.msra.mxu0 0.0
        %1669 = vmatprep.subr.mxu0 0.0
        %1670 = vmatpush2.msra.mxu0 0.0
        %1671 = vmatprep.subr.mxu0 0.0
        %1672 = vmatpush2.msra.mxu0 0.0
        %1673 = vmatprep.subr.mxu0 0.0
        %1674 = vmatpush2.msra.mxu0 0.0
        %1675 = vmatprep.subr.mxu0 0.0
        %1676 = vmatpush2.msra.mxu0 0.0
        %1677 = vmatprep.subr.mxu0 0.0
        %1678 = vmatpush2.msra.mxu0 0.0
        %1679 = vmatprep.mubr.f32.mxu0 0.0
        %1680 = vmatmul.mubr.f32.gmra.mxu0 %v1613
        %v1681 = vpop.f32.mrf.mxu0
        %v1682 = vadd.f32 0.0, %v1681
        %v1683 = vpop.f32.mrf.mxu0
        %1684 = vdwg.mxu0
        %s1685 = scalar_lea.vmem %s5, 192
        %v1686 = vld [vmem:[%s1685] sm:$0xff]
        %v1687 = vld [vmem:[%s1685 + $0x8] sm:$0xff]
        %v1688 = vld [vmem:[%s1685 + $0x10] sm:$0xff]
        %v1689 = vld [vmem:[%s1685 + $0x18] sm:$0xff]
        %v1690 = vld [vmem:[%s1685 + $0x20] sm:$0xff]
        %v1691 = vld [vmem:[%s1685 + $0x28] sm:$0xff]
        %v1692 = vld [vmem:[%s1685 + $0x30] sm:$0xff]
        %v1693 = vld [vmem:[%s1685 + $0x38] sm:$0xff]
        %v1695 = vsel %vm667, %v1682, 0
        %1697 = vmatprep.subr.mxu0 0.0
        %1698 = vmatpush1.msra.mxu0 0.0
        %1699 = vmatprep.subr.mxu0 0.0
        %1700 = vmatpush1.msra.mxu0 0.0
        %1701 = vmatprep.subr.mxu0 0.0
        %1702 = vmatpush1.msra.mxu0 0.0
        %1703 = vmatprep.subr.mxu0 0.0
        %1704 = vmatpush1.msra.mxu0 0.0
        %1705 = vmatprep.subr.mxu0 0.0
        %1706 = vmatpush1.msra.mxu0 0.0
        %1707 = vmatprep.subr.mxu0 0.0
        %1708 = vmatpush1.msra.mxu0 0.0
        %1709 = vmatprep.subr.mxu0 0.0
        %1710 = vmatpush1.msra.mxu0 0.0
        %1711 = vmatprep.subr.mxu0 0.0
        %1712 = vmatpush1.msra.mxu0 0.0
        %1713 = vmatprep.subr.mxu0 0.0
        %1714 = vmatpush1.msra.mxu0 %v1693
        %1715 = vmatprep.subr.mxu0 0.0
        %1716 = vmatpush1.msra.mxu0 %v1692
        %1717 = vmatprep.subr.mxu0 0.0
        %1718 = vmatpush1.msra.mxu0 %v1691
        %1719 = vmatprep.subr.mxu0 0.0
        %1720 = vmatpush1.msra.mxu0 %v1690
        %1721 = vmatprep.subr.mxu0 0.0
        %1722 = vmatpush1.msra.mxu0 %v1689
        %1723 = vmatprep.subr.mxu0 0.0
        %1724 = vmatpush1.msra.mxu0 %v1688
        %1725 = vmatprep.subr.mxu0 0.0
        %1726 = vmatpush1.msra.mxu0 %v1687
        %1727 = vmatprep.subr.mxu0 0.0
        %1728 = vmatpush1.msra.mxu0 %v1686
        %1729 = vmatprep.subr.mxu0 0.0
        %1730 = vmatpush2.msra.mxu0 0.0
        %1731 = vmatprep.subr.mxu0 0.0
        %1732 = vmatpush2.msra.mxu0 0.0
        %1733 = vmatprep.subr.mxu0 0.0
        %1734 = vmatpush2.msra.mxu0 0.0
        %1735 = vmatprep.subr.mxu0 0.0
        %1736 = vmatpush2.msra.mxu0 0.0
        %1737 = vmatprep.subr.mxu0 0.0
        %1738 = vmatpush2.msra.mxu0 0.0
        %1739 = vmatprep.subr.mxu0 0.0
        %1740 = vmatpush2.msra.mxu0 0.0
        %1741 = vmatprep.subr.mxu0 0.0
        %1742 = vmatpush2.msra.mxu0 0.0
        %1743 = vmatprep.subr.mxu0 0.0
        %1744 = vmatpush2.msra.mxu0 0.0
        %1745 = vmatprep.subr.mxu0 0.0
        %1746 = vmatpush2.msra.mxu0 0.0
        %1747 = vmatprep.subr.mxu0 0.0
        %1748 = vmatpush2.msra.mxu0 0.0
        %1749 = vmatprep.subr.mxu0 0.0
        %1750 = vmatpush2.msra.mxu0 0.0
        %1751 = vmatprep.subr.mxu0 0.0
        %1752 = vmatpush2.msra.mxu0 0.0
        %1753 = vmatprep.subr.mxu0 0.0
        %1754 = vmatpush2.msra.mxu0 0.0
        %1755 = vmatprep.subr.mxu0 0.0
        %1756 = vmatpush2.msra.mxu0 0.0
        %1757 = vmatprep.subr.mxu0 0.0
        %1758 = vmatpush2.msra.mxu0 0.0
        %1759 = vmatprep.subr.mxu0 0.0
        %1760 = vmatpush2.msra.mxu0 0.0
        %1761 = vmatprep.mubr.f32.mxu0 0.0
        %1762 = vmatmul.mubr.f32.gmra.mxu0 %v1695
        %v1763 = vpop.f32.mrf.mxu0
        %v1764 = vadd.f32 0.0, %v1763
        %v1765 = vpop.f32.mrf.mxu0
        %1766 = vdwg.mxu0
        %v1767 = vadd.f32 %v1609, %v1764
        %v1768 = vld [vmem:[%s6] sm:$0x1]
        %v1770 = vlaneseq
        %v1771 = vshrl.u32 %v1770, 7
        %v1772 = vsub.s32 0, %v1771
        %v1773 = vrot.slane %v1768, %v1772
        %v1775 = vadd.f32 %v1767, %v1773
        %v1776 = vmax.f32 %v1775, 0.0
        %v1777 = vld [vmem:[%s7] sm:$0xff]
        %vm1778 = vcmask 31744
        %v1780 = vsel %vm1778, %v1777, 0
        %vm1782 = vcmask 1043456
        %v1784 = vsel %vm1782, %v1776, 0
        %1786 = vmatprep.subr.mxu0 0.0
        %1787 = vmatpush1.msra.mxu0 0.0
        %1788 = vmatprep.subr.mxu0 0.0
        %1789 = vmatpush1.msra.mxu0 0.0
        %1790 = vmatprep.subr.mxu0 0.0
        %1791 = vmatpush1.msra.mxu0 0.0
        %1792 = vmatprep.subr.mxu0 0.0
        %1793 = vmatpush1.msra.mxu0 0.0
        %1794 = vmatprep.subr.mxu0 0.0
        %1795 = vmatpush1.msra.mxu0 0.0
        %1796 = vmatprep.subr.mxu0 0.0
        %1797 = vmatpush1.msra.mxu0 0.0
        %1798 = vmatprep.subr.mxu0 0.0
        %1799 = vmatpush1.msra.mxu0 0.0
        %1800 = vmatprep.subr.mxu0 0.0
        %1801 = vmatpush1.msra.mxu0 0.0
        %1802 = vmatprep.subr.mxu0 0.0
        %1803 = vmatpush1.msra.mxu0 0.0
        %1804 = vmatprep.subr.mxu0 0.0
        %1805 = vmatpush1.msra.mxu0 0.0
        %1806 = vmatprep.subr.mxu0 0.0
        %1807 = vmatpush1.msra.mxu0 0.0
        %1808 = vmatprep.subr.mxu0 0.0
        %1809 = vmatpush1.msra.mxu0 0.0
        %1810 = vmatprep.subr.mxu0 0.0
        %1811 = vmatpush1.msra.mxu0 0.0
        %1812 = vmatprep.subr.mxu0 0.0
        %1813 = vmatpush1.msra.mxu0 0.0
        %1814 = vmatprep.subr.mxu0 0.0
        %1815 = vmatpush1.msra.mxu0 0.0
        %1816 = vmatprep.subr.mxu0 0.0
        %1817 = vmatpush1.msra.mxu0 %v1784
        %1818 = vmatprep.subr.mxu0 0.0
        %1819 = vmatpush2.msra.mxu0 0.0
        %1820 = vmatprep.subr.mxu0 0.0
        %1821 = vmatpush2.msra.mxu0 0.0
        %1822 = vmatprep.subr.mxu0 0.0
        %1823 = vmatpush2.msra.mxu0 0.0
        %1824 = vmatprep.subr.mxu0 0.0
        %1825 = vmatpush2.msra.mxu0 0.0
        %1826 = vmatprep.subr.mxu0 0.0
        %1827 = vmatpush2.msra.mxu0 0.0
        %1828 = vmatprep.subr.mxu0 0.0
        %1829 = vmatpush2.msra.mxu0 0.0
        %1830 = vmatprep.subr.mxu0 0.0
        %1831 = vmatpush2.msra.mxu0 0.0
        %1832 = vmatprep.subr.mxu0 0.0
        %1833 = vmatpush2.msra.mxu0 0.0
        %1834 = vmatprep.subr.mxu0 0.0
        %1835 = vmatpush2.msra.mxu0 0.0
        %1836 = vmatprep.subr.mxu0 0.0
        %1837 = vmatpush2.msra.mxu0 0.0
        %1838 = vmatprep.subr.mxu0 0.0
        %1839 = vmatpush2.msra.mxu0 0.0
        %1840 = vmatprep.subr.mxu0 0.0
        %1841 = vmatpush2.msra.mxu0 0.0
        %1842 = vmatprep.subr.mxu0 0.0
        %1843 = vmatpush2.msra.mxu0 0.0
        %1844 = vmatprep.subr.mxu0 0.0
        %1845 = vmatpush2.msra.mxu0 0.0
        %1846 = vmatprep.subr.mxu0 0.0
        %1847 = vmatpush2.msra.mxu0 0.0
        %1848 = vmatprep.subr.mxu0 0.0
        %1849 = vmatpush2.msra.mxu0 0.0
        %1850 = vmatprep.mubr.f32.mxu0 0.0
        %1851 = vmatmul.mubr.f32.gmra.mxu0 %v1780
        %v1852 = vpop.f32.mrf.mxu0
        %v1853 = vadd.f32 0.0, %v1852
        %v1854 = vpop.f32.mrf.mxu0
        %1855 = vdwg.mxu0
        %v1856 = vld [vmem:[#allocation4] sm:$0xff]
        %v1857 = vld [vmem:[#allocation4 + $0x8] sm:$0xff]
        %v1858 = vld [vmem:[#allocation4 + $0x10] sm:$0xff]
        %v1859 = vld [vmem:[#allocation4 + $0x18] sm:$0xff]
        %v1860 = vld [vmem:[#allocation4 + $0x20] sm:$0xff]
        %v1861 = vld [vmem:[#allocation4 + $0x28] sm:$0xff]
        %v1862 = vld [vmem:[#allocation4 + $0x30] sm:$0xff]
        %v1863 = vld [vmem:[#allocation4 + $0x38] sm:$0xff]
        %s1864 = scalar_lea.vmem %s7, 8
        %v1865 = vld [vmem:[%s1864] sm:$0xff]
        %v1867 = vsel %vm1778, %v1865, 0
        %1869 = vmatprep.subr.mxu0 0.0
        %1870 = vmatpush1.msra.mxu0 0.0
        %1871 = vmatprep.subr.mxu0 0.0
        %1872 = vmatpush1.msra.mxu0 0.0
        %1873 = vmatprep.subr.mxu0 0.0
        %1874 = vmatpush1.msra.mxu0 0.0
        %1875 = vmatprep.subr.mxu0 0.0
        %1876 = vmatpush1.msra.mxu0 0.0
        %1877 = vmatprep.subr.mxu0 0.0
        %1878 = vmatpush1.msra.mxu0 0.0
        %1879 = vmatprep.subr.mxu0 0.0
        %1880 = vmatpush1.msra.mxu0 0.0
        %1881 = vmatprep.subr.mxu0 0.0
        %1882 = vmatpush1.msra.mxu0 0.0
        %1883 = vmatprep.subr.mxu0 0.0
        %1884 = vmatpush1.msra.mxu0 0.0
        %1885 = vmatprep.subr.mxu0 0.0
        %1886 = vmatpush1.msra.mxu0 0.0
        %1887 = vmatprep.subr.mxu0 0.0
        %1888 = vmatpush1.msra.mxu0 0.0
        %1889 = vmatprep.subr.mxu0 0.0
        %1890 = vmatpush1.msra.mxu0 0.0
        %1891 = vmatprep.subr.mxu0 0.0
        %1892 = vmatpush1.msra.mxu0 0.0
        %1893 = vmatprep.subr.mxu0 0.0
        %1894 = vmatpush1.msra.mxu0 0.0
        %1895 = vmatprep.subr.mxu0 0.0
        %1896 = vmatpush1.msra.mxu0 0.0
        %1897 = vmatprep.subr.mxu0 0.0
        %1898 = vmatpush1.msra.mxu0 0.0
        %1899 = vmatprep.subr.mxu0 0.0
        %1900 = vmatpush1.msra.mxu0 %v1784
        %1901 = vmatprep.subr.mxu0 0.0
        %1902 = vmatpush2.msra.mxu0 0.0
        %1903 = vmatprep.subr.mxu0 0.0
        %1904 = vmatpush2.msra.mxu0 0.0
        %1905 = vmatprep.subr.mxu0 0.0
        %1906 = vmatpush2.msra.mxu0 0.0
        %1907 = vmatprep.subr.mxu0 0.0
        %1908 = vmatpush2.msra.mxu0 0.0
        %1909 = vmatprep.subr.mxu0 0.0
        %1910 = vmatpush2.msra.mxu0 0.0
        %1911 = vmatprep.subr.mxu0 0.0
        %1912 = vmatpush2.msra.mxu0 0.0
        %1913 = vmatprep.subr.mxu0 0.0
        %1914 = vmatpush2.msra.mxu0 0.0
        %1915 = vmatprep.subr.mxu0 0.0
        %1916 = vmatpush2.msra.mxu0 0.0
        %1917 = vmatprep.subr.mxu0 0.0
        %1918 = vmatpush2.msra.mxu0 0.0
        %1919 = vmatprep.subr.mxu0 0.0
        %1920 = vmatpush2.msra.mxu0 0.0
        %1921 = vmatprep.subr.mxu0 0.0
        %1922 = vmatpush2.msra.mxu0 0.0
        %1923 = vmatprep.subr.mxu0 0.0
        %1924 = vmatpush2.msra.mxu0 0.0
        %1925 = vmatprep.subr.mxu0 0.0
        %1926 = vmatpush2.msra.mxu0 0.0
        %1927 = vmatprep.subr.mxu0 0.0
        %1928 = vmatpush2.msra.mxu0 0.0
        %1929 = vmatprep.subr.mxu0 0.0
        %1930 = vmatpush2.msra.mxu0 0.0
        %1931 = vmatprep.subr.mxu0 0.0
        %1932 = vmatpush2.msra.mxu0 0.0
        %1933 = vmatprep.mubr.f32.mxu0 0.0
        %1934 = vmatmul.mubr.f32.gmra.mxu0 %v1867
        %v1935 = vpop.f32.mrf.mxu0
        %v1936 = vadd.f32 0.0, %v1935
        %v1937 = vpop.f32.mrf.mxu0
        %1938 = vdwg.mxu0
        %s1939 = scalar_lea.vmem [#allocation4], 64
        %v1940 = vld [vmem:[%s1939] sm:$0xff]
        %v1941 = vld [vmem:[%s1939 + $0x8] sm:$0xff]
        %v1942 = vld [vmem:[%s1939 + $0x10] sm:$0xff]
        %v1943 = vld [vmem:[%s1939 + $0x18] sm:$0xff]
        %v1944 = vld [vmem:[%s1939 + $0x20] sm:$0xff]
        %v1945 = vld [vmem:[%s1939 + $0x28] sm:$0xff]
        %v1946 = vld [vmem:[%s1939 + $0x30] sm:$0xff]
        %v1947 = vld [vmem:[%s1939 + $0x38] sm:$0xff]
        %v1949 = vsel %vm667, %v1936, 0
        %1951 = vmatprep.subr.mxu0 0.0
        %1952 = vmatpush1.msra.mxu0 0.0
        %1953 = vmatprep.subr.mxu0 0.0
        %1954 = vmatpush1.msra.mxu0 0.0
        %1955 = vmatprep.subr.mxu0 0.0
        %1956 = vmatpush1.msra.mxu0 0.0
        %1957 = vmatprep.subr.mxu0 0.0
        %1958 = vmatpush1.msra.mxu0 0.0
        %1959 = vmatprep.subr.mxu0 0.0
        %1960 = vmatpush1.msra.mxu0 0.0
        %1961 = vmatprep.subr.mxu0 0.0
        %1962 = vmatpush1.msra.mxu0 0.0
        %1963 = vmatprep.subr.mxu0 0.0
        %1964 = vmatpush1.msra.mxu0 0.0
        %1965 = vmatprep.subr.mxu0 0.0
        %1966 = vmatpush1.msra.mxu0 0.0
        %1967 = vmatprep.subr.mxu0 0.0
        %1968 = vmatpush1.msra.mxu0 %v1947
        %1969 = vmatprep.subr.mxu0 0.0
        %1970 = vmatpush1.msra.mxu0 %v1946
        %1971 = vmatprep.subr.mxu0 0.0
        %1972 = vmatpush1.msra.mxu0 %v1945
        %1973 = vmatprep.subr.mxu0 0.0
        %1974 = vmatpush1.msra.mxu0 %v1944
        %1975 = vmatprep.subr.mxu0 0.0
        %1976 = vmatpush1.msra.mxu0 %v1943
        %1977 = vmatprep.subr.mxu0 0.0
        %1978 = vmatpush1.msra.mxu0 %v1942
        %1979 = vmatprep.subr.mxu0 0.0
        %1980 = vmatpush1.msra.mxu0 %v1941
        %1981 = vmatprep.subr.mxu0 0.0
        %1982 = vmatpush1.msra.mxu0 %v1940
        %1983 = vmatprep.subr.mxu0 0.0
        %1984 = vmatpush2.msra.mxu0 0.0
        %1985 = vmatprep.subr.mxu0 0.0
        %1986 = vmatpush2.msra.mxu0 0.0
        %1987 = vmatprep.subr.mxu0 0.0
        %1988 = vmatpush2.msra.mxu0 0.0
        %1989 = vmatprep.subr.mxu0 0.0
        %1990 = vmatpush2.msra.mxu0 0.0
        %1991 = vmatprep.subr.mxu0 0.0
        %1992 = vmatpush2.msra.mxu0 0.0
        %1993 = vmatprep.subr.mxu0 0.0
        %1994 = vmatpush2.msra.mxu0 0.0
        %1995 = vmatprep.subr.mxu0 0.0
        %1996 = vmatpush2.msra.mxu0 0.0
        %1997 = vmatprep.subr.mxu0 0.0
        %1998 = vmatpush2.msra.mxu0 0.0
        %1999 = vmatprep.subr.mxu0 0.0
        %2000 = vmatpush2.msra.mxu0 0.0
        %2001 = vmatprep.subr.mxu0 0.0
        %2002 = vmatpush2.msra.mxu0 0.0
        %2003 = vmatprep.subr.mxu0 0.0
        %2004 = vmatpush2.msra.mxu0 0.0
        %2005 = vmatprep.subr.mxu0 0.0
        %2006 = vmatpush2.msra.mxu0 0.0
        %2007 = vmatprep.subr.mxu0 0.0
        %2008 = vmatpush2.msra.mxu0 0.0
        %2009 = vmatprep.subr.mxu0 0.0
        %2010 = vmatpush2.msra.mxu0 0.0
        %2011 = vmatprep.subr.mxu0 0.0
        %2012 = vmatpush2.msra.mxu0 0.0
        %2013 = vmatprep.subr.mxu0 0.0
        %2014 = vmatpush2.msra.mxu0 0.0
        %2015 = vmatprep.mubr.f32.mxu0 0.0
        %2016 = vmatmul.mubr.f32.gmra.mxu0 %v1949
        %v2017 = vpop.f32.mrf.mxu0
        %v2018 = vadd.f32 0.0, %v2017
        %v2019 = vpop.f32.mrf.mxu0
        %2020 = vdwg.mxu0
        %v2022 = vsel %vm667, %v1853, 0
        %2024 = vmatprep.subr.mxu0 0.0
        %2025 = vmatpush1.msra.mxu0 0.0
        %2026 = vmatprep.subr.mxu0 0.0
        %2027 = vmatpush1.msra.mxu0 0.0
        %2028 = vmatprep.subr.mxu0 0.0
        %2029 = vmatpush1.msra.mxu0 0.0
        %2030 = vmatprep.subr.mxu0 0.0
        %2031 = vmatpush1.msra.mxu0 0.0
        %2032 = vmatprep.subr.mxu0 0.0
        %2033 = vmatpush1.msra.mxu0 0.0
        %2034 = vmatprep.subr.mxu0 0.0
        %2035 = vmatpush1.msra.mxu0 0.0
        %2036 = vmatprep.subr.mxu0 0.0
        %2037 = vmatpush1.msra.mxu0 0.0
        %2038 = vmatprep.subr.mxu0 0.0
        %2039 = vmatpush1.msra.mxu0 0.0
        %2040 = vmatprep.subr.mxu0 0.0
        %2041 = vmatpush1.msra.mxu0 %v1863
        %2042 = vmatprep.subr.mxu0 0.0
        %2043 = vmatpush1.msra.mxu0 %v1862
        %2044 = vmatprep.subr.mxu0 0.0
        %2045 = vmatpush1.msra.mxu0 %v1861
        %2046 = vmatprep.subr.mxu0 0.0
        %2047 = vmatpush1.msra.mxu0 %v1860
        %2048 = vmatprep.subr.mxu0 0.0
        %2049 = vmatpush1.msra.mxu0 %v1859
        %2050 = vmatprep.subr.mxu0 0.0
        %2051 = vmatpush1.msra.mxu0 %v1858
        %2052 = vmatprep.subr.mxu0 0.0
        %2053 = vmatpush1.msra.mxu0 %v1857
        %2054 = vmatprep.subr.mxu0 0.0
        %2055 = vmatpush1.msra.mxu0 %v1856
        %2056 = vmatprep.subr.mxu0 0.0
        %2057 = vmatpush2.msra.mxu0 0.0
        %2058 = vmatprep.subr.mxu0 0.0
        %2059 = vmatpush2.msra.mxu0 0.0
        %2060 = vmatprep.subr.mxu0 0.0
        %2061 = vmatpush2.msra.mxu0 0.0
        %2062 = vmatprep.subr.mxu0 0.0
        %2063 = vmatpush2.msra.mxu0 0.0
        %2064 = vmatprep.subr.mxu0 0.0
        %2065 = vmatpush2.msra.mxu0 0.0
        %2066 = vmatprep.subr.mxu0 0.0
        %2067 = vmatpush2.msra.mxu0 0.0
        %2068 = vmatprep.subr.mxu0 0.0
        %2069 = vmatpush2.msra.mxu0 0.0
        %2070 = vmatprep.subr.mxu0 0.0
        %2071 = vmatpush2.msra.mxu0 0.0
        %2072 = vmatprep.subr.mxu0 0.0
        %2073 = vmatpush2.msra.mxu0 0.0
        %2074 = vmatprep.subr.mxu0 0.0
        %2075 = vmatpush2.msra.mxu0 0.0
        %2076 = vmatprep.subr.mxu0 0.0
        %2077 = vmatpush2.msra.mxu0 0.0
        %2078 = vmatprep.subr.mxu0 0.0
        %2079 = vmatpush2.msra.mxu0 0.0
        %2080 = vmatprep.subr.mxu0 0.0
        %2081 = vmatpush2.msra.mxu0 0.0
        %2082 = vmatprep.subr.mxu0 0.0
        %2083 = vmatpush2.msra.mxu0 0.0
        %2084 = vmatprep.subr.mxu0 0.0
        %2085 = vmatpush2.msra.mxu0 0.0
        %2086 = vmatprep.subr.mxu0 0.0
        %2087 = vmatpush2.msra.mxu0 0.0
        %2088 = vmatprep.mubr.f32.mxu0 0.0
        %2089 = vmatmul.mubr.f32.gmra.mxu0 %v2022
        %v2090 = vpop.f32.mrf.mxu0
        %v2091 = vadd.f32 %v2018, %v2090
        %v2092 = vpop.f32.mrf.mxu0
        %2093 = vdwg.mxu0
        %s2094 = scalar_lea.vmem %s7, 16
        %v2095 = vld [vmem:[%s2094] sm:$0xff]
        %v2097 = vsel %vm1778, %v2095, 0
        %2099 = vmatprep.subr.mxu0 0.0
        %2100 = vmatpush1.msra.mxu0 0.0
        %2101 = vmatprep.subr.mxu0 0.0
        %2102 = vmatpush1.msra.mxu0 0.0
        %2103 = vmatprep.subr.mxu0 0.0
        %2104 = vmatpush1.msra.mxu0 0.0
        %2105 = vmatprep.subr.mxu0 0.0
        %2106 = vmatpush1.msra.mxu0 0.0
        %2107 = vmatprep.subr.mxu0 0.0
        %2108 = vmatpush1.msra.mxu0 0.0
        %2109 = vmatprep.subr.mxu0 0.0
        %2110 = vmatpush1.msra.mxu0 0.0
        %2111 = vmatprep.subr.mxu0 0.0
        %2112 = vmatpush1.msra.mxu0 0.0
        %2113 = vmatprep.subr.mxu0 0.0
        %2114 = vmatpush1.msra.mxu0 0.0
        %2115 = vmatprep.subr.mxu0 0.0
        %2116 = vmatpush1.msra.mxu0 0.0
        %2117 = vmatprep.subr.mxu0 0.0
        %2118 = vmatpush1.msra.mxu0 0.0
        %2119 = vmatprep.subr.mxu0 0.0
        %2120 = vmatpush1.msra.mxu0 0.0
        %2121 = vmatprep.subr.mxu0 0.0
        %2122 = vmatpush1.msra.mxu0 0.0
        %2123 = vmatprep.subr.mxu0 0.0
        %2124 = vmatpush1.msra.mxu0 0.0
        %2125 = vmatprep.subr.mxu0 0.0
        %2126 = vmatpush1.msra.mxu0 0.0
        %2127 = vmatprep.subr.mxu0 0.0
        %2128 = vmatpush1.msra.mxu0 0.0
        %2129 = vmatprep.subr.mxu0 0.0
        %2130 = vmatpush1.msra.mxu0 %v1784
        %2131 = vmatprep.subr.mxu0 0.0
        %2132 = vmatpush2.msra.mxu0 0.0
        %2133 = vmatprep.subr.mxu0 0.0
        %2134 = vmatpush2.msra.mxu0 0.0
        %2135 = vmatprep.subr.mxu0 0.0
        %2136 = vmatpush2.msra.mxu0 0.0
        %2137 = vmatprep.subr.mxu0 0.0
        %2138 = vmatpush2.msra.mxu0 0.0
        %2139 = vmatprep.subr.mxu0 0.0
        %2140 = vmatpush2.msra.mxu0 0.0
        %2141 = vmatprep.subr.mxu0 0.0
        %2142 = vmatpush2.msra.mxu0 0.0
        %2143 = vmatprep.subr.mxu0 0.0
        %2144 = vmatpush2.msra.mxu0 0.0
        %2145 = vmatprep.subr.mxu0 0.0
        %2146 = vmatpush2.msra.mxu0 0.0
        %2147 = vmatprep.subr.mxu0 0.0
        %2148 = vmatpush2.msra.mxu0 0.0
        %2149 = vmatprep.subr.mxu0 0.0
        %2150 = vmatpush2.msra.mxu0 0.0
        %2151 = vmatprep.subr.mxu0 0.0
        %2152 = vmatpush2.msra.mxu0 0.0
        %2153 = vmatprep.subr.mxu0 0.0
        %2154 = vmatpush2.msra.mxu0 0.0
        %2155 = vmatprep.subr.mxu0 0.0
        %2156 = vmatpush2.msra.mxu0 0.0
        %2157 = vmatprep.subr.mxu0 0.0
        %2158 = vmatpush2.msra.mxu0 0.0
        %2159 = vmatprep.subr.mxu0 0.0
        %2160 = vmatpush2.msra.mxu0 0.0
        %2161 = vmatprep.subr.mxu0 0.0
        %2162 = vmatpush2.msra.mxu0 0.0
        %2163 = vmatprep.mubr.f32.mxu0 0.0
        %2164 = vmatmul.mubr.f32.gmra.mxu0 %v2097
        %v2165 = vpop.f32.mrf.mxu0
        %v2166 = vadd.f32 0.0, %v2165
        %v2167 = vpop.f32.mrf.mxu0
        %2168 = vdwg.mxu0
        %s2169 = scalar_lea.vmem [#allocation4], 128
        %v2170 = vld [vmem:[%s2169] sm:$0xff]
        %v2171 = vld [vmem:[%s2169 + $0x8] sm:$0xff]
        %v2172 = vld [vmem:[%s2169 + $0x10] sm:$0xff]
        %v2173 = vld [vmem:[%s2169 + $0x18] sm:$0xff]
        %v2174 = vld [vmem:[%s2169 + $0x20] sm:$0xff]
        %v2175 = vld [vmem:[%s2169 + $0x28] sm:$0xff]
        %v2176 = vld [vmem:[%s2169 + $0x30] sm:$0xff]
        %v2177 = vld [vmem:[%s2169 + $0x38] sm:$0xff]
        %v2179 = vsel %vm667, %v2166, 0
        %2181 = vmatprep.subr.mxu0 0.0
        %2182 = vmatpush1.msra.mxu0 0.0
        %2183 = vmatprep.subr.mxu0 0.0
        %2184 = vmatpush1.msra.mxu0 0.0
        %2185 = vmatprep.subr.mxu0 0.0
        %2186 = vmatpush1.msra.mxu0 0.0
        %2187 = vmatprep.subr.mxu0 0.0
        %2188 = vmatpush1.msra.mxu0 0.0
        %2189 = vmatprep.subr.mxu0 0.0
        %2190 = vmatpush1.msra.mxu0 0.0
        %2191 = vmatprep.subr.mxu0 0.0
        %2192 = vmatpush1.msra.mxu0 0.0
        %2193 = vmatprep.subr.mxu0 0.0
        %2194 = vmatpush1.msra.mxu0 0.0
        %2195 = vmatprep.subr.mxu0 0.0
        %2196 = vmatpush1.msra.mxu0 0.0
        %2197 = vmatprep.subr.mxu0 0.0
        %2198 = vmatpush1.msra.mxu0 %v2177
        %2199 = vmatprep.subr.mxu0 0.0
        %2200 = vmatpush1.msra.mxu0 %v2176
        %2201 = vmatprep.subr.mxu0 0.0
        %2202 = vmatpush1.msra.mxu0 %v2175
        %2203 = vmatprep.subr.mxu0 0.0
        %2204 = vmatpush1.msra.mxu0 %v2174
        %2205 = vmatprep.subr.mxu0 0.0
        %2206 = vmatpush1.msra.mxu0 %v2173
        %2207 = vmatprep.subr.mxu0 0.0
        %2208 = vmatpush1.msra.mxu0 %v2172
        %2209 = vmatprep.subr.mxu0 0.0
        %2210 = vmatpush1.msra.mxu0 %v2171
        %2211 = vmatprep.subr.mxu0 0.0
        %2212 = vmatpush1.msra.mxu0 %v2170
        %2213 = vmatprep.subr.mxu0 0.0
        %2214 = vmatpush2.msra.mxu0 0.0
        %2215 = vmatprep.subr.mxu0 0.0
        %2216 = vmatpush2.msra.mxu0 0.0
        %2217 = vmatprep.subr.mxu0 0.0
        %2218 = vmatpush2.msra.mxu0 0.0
        %2219 = vmatprep.subr.mxu0 0.0
        %2220 = vmatpush2.msra.mxu0 0.0
        %2221 = vmatprep.subr.mxu0 0.0
        %2222 = vmatpush2.msra.mxu0 0.0
        %2223 = vmatprep.subr.mxu0 0.0
        %2224 = vmatpush2.msra.mxu0 0.0
        %2225 = vmatprep.subr.mxu0 0.0
        %2226 = vmatpush2.msra.mxu0 0.0
        %2227 = vmatprep.subr.mxu0 0.0
        %2228 = vmatpush2.msra.mxu0 0.0
        %2229 = vmatprep.subr.mxu0 0.0
        %2230 = vmatpush2.msra.mxu0 0.0
        %2231 = vmatprep.subr.mxu0 0.0
        %2232 = vmatpush2.msra.mxu0 0.0
        %2233 = vmatprep.subr.mxu0 0.0
        %2234 = vmatpush2.msra.mxu0 0.0
        %2235 = vmatprep.subr.mxu0 0.0
        %2236 = vmatpush2.msra.mxu0 0.0
        %2237 = vmatprep.subr.mxu0 0.0
        %2238 = vmatpush2.msra.mxu0 0.0
        %2239 = vmatprep.subr.mxu0 0.0
        %2240 = vmatpush2.msra.mxu0 0.0
        %2241 = vmatprep.subr.mxu0 0.0
        %2242 = vmatpush2.msra.mxu0 0.0
        %2243 = vmatprep.subr.mxu0 0.0
        %2244 = vmatpush2.msra.mxu0 0.0
        %2245 = vmatprep.mubr.f32.mxu0 0.0
        %2246 = vmatmul.mubr.f32.gmra.mxu0 %v2179
        %v2247 = vpop.f32.mrf.mxu0
        %v2248 = vadd.f32 0.0, %v2247
        %v2249 = vpop.f32.mrf.mxu0
        %2250 = vdwg.mxu0
        %v2251 = vadd.f32 %v2091, %v2248
        %s2252 = scalar_lea.vmem %s7, 24
        %v2253 = vld [vmem:[%s2252] sm:$0xff]
        %v2255 = vsel %vm1778, %v2253, 0
        %2257 = vmatprep.subr.mxu0 0.0
        %2258 = vmatpush1.msra.mxu0 0.0
        %2259 = vmatprep.subr.mxu0 0.0
        %2260 = vmatpush1.msra.mxu0 0.0
        %2261 = vmatprep.subr.mxu0 0.0
        %2262 = vmatpush1.msra.mxu0 0.0
        %2263 = vmatprep.subr.mxu0 0.0
        %2264 = vmatpush1.msra.mxu0 0.0
        %2265 = vmatprep.subr.mxu0 0.0
        %2266 = vmatpush1.msra.mxu0 0.0
        %2267 = vmatprep.subr.mxu0 0.0
        %2268 = vmatpush1.msra.mxu0 0.0
        %2269 = vmatprep.subr.mxu0 0.0
        %2270 = vmatpush1.msra.mxu0 0.0
        %2271 = vmatprep.subr.mxu0 0.0
        %2272 = vmatpush1.msra.mxu0 0.0
        %2273 = vmatprep.subr.mxu0 0.0
        %2274 = vmatpush1.msra.mxu0 0.0
        %2275 = vmatprep.subr.mxu0 0.0
        %2276 = vmatpush1.msra.mxu0 0.0
        %2277 = vmatprep.subr.mxu0 0.0
        %2278 = vmatpush1.msra.mxu0 0.0
        %2279 = vmatprep.subr.mxu0 0.0
        %2280 = vmatpush1.msra.mxu0 0.0
        %2281 = vmatprep.subr.mxu0 0.0
        %2282 = vmatpush1.msra.mxu0 0.0
        %2283 = vmatprep.subr.mxu0 0.0
        %2284 = vmatpush1.msra.mxu0 0.0
        %2285 = vmatprep.subr.mxu0 0.0
        %2286 = vmatpush1.msra.mxu0 0.0
        %2287 = vmatprep.subr.mxu0 0.0
        %2288 = vmatpush1.msra.mxu0 %v1784
        %2289 = vmatprep.subr.mxu0 0.0
        %2290 = vmatpush2.msra.mxu0 0.0
        %2291 = vmatprep.subr.mxu0 0.0
        %2292 = vmatpush2.msra.mxu0 0.0
        %2293 = vmatprep.subr.mxu0 0.0
        %2294 = vmatpush2.msra.mxu0 0.0
        %2295 = vmatprep.subr.mxu0 0.0
        %2296 = vmatpush2.msra.mxu0 0.0
        %2297 = vmatprep.subr.mxu0 0.0
        %2298 = vmatpush2.msra.mxu0 0.0
        %2299 = vmatprep.subr.mxu0 0.0
        %2300 = vmatpush2.msra.mxu0 0.0
        %2301 = vmatprep.subr.mxu0 0.0
        %2302 = vmatpush2.msra.mxu0 0.0
        %2303 = vmatprep.subr.mxu0 0.0
        %2304 = vmatpush2.msra.mxu0 0.0
        %2305 = vmatprep.subr.mxu0 0.0
        %2306 = vmatpush2.msra.mxu0 0.0
        %2307 = vmatprep.subr.mxu0 0.0
        %2308 = vmatpush2.msra.mxu0 0.0
        %2309 = vmatprep.subr.mxu0 0.0
        %2310 = vmatpush2.msra.mxu0 0.0
        %2311 = vmatprep.subr.mxu0 0.0
        %2312 = vmatpush2.msra.mxu0 0.0
        %2313 = vmatprep.subr.mxu0 0.0
        %2314 = vmatpush2.msra.mxu0 0.0
        %2315 = vmatprep.subr.mxu0 0.0
        %2316 = vmatpush2.msra.mxu0 0.0
        %2317 = vmatprep.subr.mxu0 0.0
        %2318 = vmatpush2.msra.mxu0 0.0
        %2319 = vmatprep.subr.mxu0 0.0
        %2320 = vmatpush2.msra.mxu0 0.0
        %2321 = vmatprep.mubr.f32.mxu0 0.0
        %2322 = vmatmul.mubr.f32.gmra.mxu0 %v2255
        %v2323 = vpop.f32.mrf.mxu0
        %v2324 = vadd.f32 0.0, %v2323
        %v2325 = vpop.f32.mrf.mxu0
        %2326 = vdwg.mxu0
        %s2327 = scalar_lea.vmem [#allocation4], 192
        %v2328 = vld [vmem:[%s2327] sm:$0xff]
        %v2329 = vld [vmem:[%s2327 + $0x8] sm:$0xff]
        %v2330 = vld [vmem:[%s2327 + $0x10] sm:$0xff]
        %v2331 = vld [vmem:[%s2327 + $0x18] sm:$0xff]
        %v2332 = vld [vmem:[%s2327 + $0x20] sm:$0xff]
        %v2333 = vld [vmem:[%s2327 + $0x28] sm:$0xff]
        %v2334 = vld [vmem:[%s2327 + $0x30] sm:$0xff]
        %v2335 = vld [vmem:[%s2327 + $0x38] sm:$0xff]
        %v2337 = vsel %vm667, %v2324, 0
        %2339 = vmatprep.subr.mxu0 0.0
        %2340 = vmatpush1.msra.mxu0 0.0
        %2341 = vmatprep.subr.mxu0 0.0
        %2342 = vmatpush1.msra.mxu0 0.0
        %2343 = vmatprep.subr.mxu0 0.0
        %2344 = vmatpush1.msra.mxu0 0.0
        %2345 = vmatprep.subr.mxu0 0.0
        %2346 = vmatpush1.msra.mxu0 0.0
        %2347 = vmatprep.subr.mxu0 0.0
        %2348 = vmatpush1.msra.mxu0 0.0
        %2349 = vmatprep.subr.mxu0 0.0
        %2350 = vmatpush1.msra.mxu0 0.0
        %2351 = vmatprep.subr.mxu0 0.0
        %2352 = vmatpush1.msra.mxu0 0.0
        %2353 = vmatprep.subr.mxu0 0.0
        %2354 = vmatpush1.msra.mxu0 0.0
        %2355 = vmatprep.subr.mxu0 0.0
        %2356 = vmatpush1.msra.mxu0 %v2335
        %2357 = vmatprep.subr.mxu0 0.0
        %2358 = vmatpush1.msra.mxu0 %v2334
        %2359 = vmatprep.subr.mxu0 0.0
        %2360 = vmatpush1.msra.mxu0 %v2333
        %2361 = vmatprep.subr.mxu0 0.0
        %2362 = vmatpush1.msra.mxu0 %v2332
        %2363 = vmatprep.subr.mxu0 0.0
        %2364 = vmatpush1.msra.mxu0 %v2331
        %2365 = vmatprep.subr.mxu0 0.0
        %2366 = vmatpush1.msra.mxu0 %v2330
        %2367 = vmatprep.subr.mxu0 0.0
        %2368 = vmatpush1.msra.mxu0 %v2329
        %2369 = vmatprep.subr.mxu0 0.0
        %2370 = vmatpush1.msra.mxu0 %v2328
        %2371 = vmatprep.subr.mxu0 0.0
        %2372 = vmatpush2.msra.mxu0 0.0
        %2373 = vmatprep.subr.mxu0 0.0
        %2374 = vmatpush2.msra.mxu0 0.0
        %2375 = vmatprep.subr.mxu0 0.0
        %2376 = vmatpush2.msra.mxu0 0.0
        %2377 = vmatprep.subr.mxu0 0.0
        %2378 = vmatpush2.msra.mxu0 0.0
        %2379 = vmatprep.subr.mxu0 0.0
        %2380 = vmatpush2.msra.mxu0 0.0
        %2381 = vmatprep.subr.mxu0 0.0
        %2382 = vmatpush2.msra.mxu0 0.0
        %2383 = vmatprep.subr.mxu0 0.0
        %2384 = vmatpush2.msra.mxu0 0.0
        %2385 = vmatprep.subr.mxu0 0.0
        %2386 = vmatpush2.msra.mxu0 0.0
        %2387 = vmatprep.subr.mxu0 0.0
        %2388 = vmatpush2.msra.mxu0 0.0
        %2389 = vmatprep.subr.mxu0 0.0
        %2390 = vmatpush2.msra.mxu0 0.0
        %2391 = vmatprep.subr.mxu0 0.0
        %2392 = vmatpush2.msra.mxu0 0.0
        %2393 = vmatprep.subr.mxu0 0.0
        %2394 = vmatpush2.msra.mxu0 0.0
        %2395 = vmatprep.subr.mxu0 0.0
        %2396 = vmatpush2.msra.mxu0 0.0
        %2397 = vmatprep.subr.mxu0 0.0
        %2398 = vmatpush2.msra.mxu0 0.0
        %2399 = vmatprep.subr.mxu0 0.0
        %2400 = vmatpush2.msra.mxu0 0.0
        %2401 = vmatprep.subr.mxu0 0.0
        %2402 = vmatpush2.msra.mxu0 0.0
        %2403 = vmatprep.mubr.f32.mxu0 0.0
        %2404 = vmatmul.mubr.f32.gmra.mxu0 %v2337
        %v2405 = vpop.f32.mrf.mxu0
        %v2406 = vadd.f32 0.0, %v2405
        %v2407 = vpop.f32.mrf.mxu0
        %2408 = vdwg.mxu0
        %v2409 = vadd.f32 %v2251, %v2406
        %v2410 = vld [vmem:[#allocation6] sm:$0x1]
        %v2412 = vlaneseq
        %v2413 = vshrl.u32 %v2412, 7
        %v2414 = vsub.s32 0, %v2413
        %v2415 = vrot.slane %v2410, %v2414
        %v2417 = vadd.f32 %v2409, %v2415
        %v2418 = vmax.f32 %v2417, 0.0
        %v2419 = vld [vmem:[%s10] sm:$0xff]
        %v2420 = vld [vmem:[%s10 + $0x8] sm:$0xff]
        %v2422 = vsel %vm1140, %v2419, 0
        %v2425 = vsel %vm1140, %v2420, 0
        %2427 = vmatprep.subr.mxu0 0.0
        %2428 = vmatpush1.msra.mxu0 0.0
        %2429 = vmatprep.subr.mxu0 0.0
        %2430 = vmatpush1.msra.mxu0 0.0
        %2431 = vmatprep.subr.mxu0 0.0
        %2432 = vmatpush1.msra.mxu0 0.0
        %2433 = vmatprep.subr.mxu0 0.0
        %2434 = vmatpush1.msra.mxu0 0.0
        %2435 = vmatprep.subr.mxu0 0.0
        %2436 = vmatpush1.msra.mxu0 0.0
        %2437 = vmatprep.subr.mxu0 0.0
        %2438 = vmatpush1.msra.mxu0 0.0
        %2439 = vmatprep.subr.mxu0 0.0
        %2440 = vmatpush1.msra.mxu0 0.0
        %2441 = vmatprep.subr.mxu0 0.0
        %2442 = vmatpush1.msra.mxu0 0.0
        %2443 = vmatprep.subr.mxu0 0.0
        %2444 = vmatpush1.msra.mxu0 0.0
        %2445 = vmatprep.subr.mxu0 0.0
        %2446 = vmatpush1.msra.mxu0 0.0
        %2447 = vmatprep.subr.mxu0 0.0
        %2448 = vmatpush1.msra.mxu0 0.0
        %2449 = vmatprep.subr.mxu0 0.0
        %2450 = vmatpush1.msra.mxu0 0.0
        %2451 = vmatprep.subr.mxu0 0.0
        %2452 = vmatpush1.msra.mxu0 0.0
        %2453 = vmatprep.subr.mxu0 0.0
        %2454 = vmatpush1.msra.mxu0 0.0
        %2455 = vmatprep.subr.mxu0 0.0
        %2456 = vmatpush1.msra.mxu0 0.0
        %2457 = vmatprep.subr.mxu0 0.0
        %2458 = vmatpush1.msra.mxu0 %v2418
        %2459 = vmatprep.subr.mxu0 0.0
        %2460 = vmatpush2.msra.mxu0 0.0
        %2461 = vmatprep.subr.mxu0 0.0
        %2462 = vmatpush2.msra.mxu0 0.0
        %2463 = vmatprep.subr.mxu0 0.0
        %2464 = vmatpush2.msra.mxu0 0.0
        %2465 = vmatprep.subr.mxu0 0.0
        %2466 = vmatpush2.msra.mxu0 0.0
        %2467 = vmatprep.subr.mxu0 0.0
        %2468 = vmatpush2.msra.mxu0 0.0
        %2469 = vmatprep.subr.mxu0 0.0
        %2470 = vmatpush2.msra.mxu0 0.0
        %2471 = vmatprep.subr.mxu0 0.0
        %2472 = vmatpush2.msra.mxu0 0.0
        %2473 = vmatprep.subr.mxu0 0.0
        %2474 = vmatpush2.msra.mxu0 0.0
        %2475 = vmatprep.subr.mxu0 0.0
        %2476 = vmatpush2.msra.mxu0 0.0
        %2477 = vmatprep.subr.mxu0 0.0
        %2478 = vmatpush2.msra.mxu0 0.0
        %2479 = vmatprep.subr.mxu0 0.0
        %2480 = vmatpush2.msra.mxu0 0.0
        %2481 = vmatprep.subr.mxu0 0.0
        %2482 = vmatpush2.msra.mxu0 0.0
        %2483 = vmatprep.subr.mxu0 0.0
        %2484 = vmatpush2.msra.mxu0 0.0
        %2485 = vmatprep.subr.mxu0 0.0
        %2486 = vmatpush2.msra.mxu0 0.0
        %2487 = vmatprep.subr.mxu0 0.0
        %2488 = vmatpush2.msra.mxu0 0.0
        %2489 = vmatprep.subr.mxu0 0.0
        %2490 = vmatpush2.msra.mxu0 0.0
        %2491 = vmatprep.mubr.f32.mxu0 0.0
        %2492 = vmatmul.mubr.f32.gmra.mxu0 %v2422
        %v2493 = vpop.f32.mrf.mxu0
        %v2494 = vadd.f32 0.0, %v2493
        %v2495 = vpop.f32.mrf.mxu0
        %2496 = vmatprep.mubr.f32.mxu0 0.0
        %2497 = vmatmul.mubr.f32.gmra.mxu0 %v2425
        %v2498 = vpop.f32.mrf.mxu0
        %v2499 = vadd.f32 0.0, %v2498
        %v2500 = vpop.f32.mrf.mxu0
        %2501 = vdwg.mxu0
        %v2502 = vld [vmem:[#allocation7] sm:$0xff]
        %v2503 = vld [vmem:[#allocation7 + $0x8] sm:$0xff]
        %v2504 = vld [vmem:[#allocation7 + $0x10] sm:$0xff]
        %v2505 = vld [vmem:[#allocation7 + $0x18] sm:$0xff]
        %v2506 = vld [vmem:[#allocation7 + $0x20] sm:$0xff]
        %v2507 = vld [vmem:[#allocation7 + $0x28] sm:$0xff]
        %v2508 = vld [vmem:[#allocation7 + $0x30] sm:$0xff]
        %v2509 = vld [vmem:[#allocation7 + $0x38] sm:$0xff]
        %s2510 = scalar_lea.vmem %s10, 16
        %v2511 = vld [vmem:[%s2510] sm:$0xff]
        %v2512 = vld [vmem:[%s2510 + $0x8] sm:$0xff]
        %v2514 = vsel %vm1140, %v2511, 0
        %v2517 = vsel %vm1140, %v2512, 0
        %2519 = vmatprep.subr.mxu0 0.0
        %2520 = vmatpush1.msra.mxu0 0.0
        %2521 = vmatprep.subr.mxu0 0.0
        %2522 = vmatpush1.msra.mxu0 0.0
        %2523 = vmatprep.subr.mxu0 0.0
        %2524 = vmatpush1.msra.mxu0 0.0
        %2525 = vmatprep.subr.mxu0 0.0
        %2526 = vmatpush1.msra.mxu0 0.0
        %2527 = vmatprep.subr.mxu0 0.0
        %2528 = vmatpush1.msra.mxu0 0.0
        %2529 = vmatprep.subr.mxu0 0.0
        %2530 = vmatpush1.msra.mxu0 0.0
        %2531 = vmatprep.subr.mxu0 0.0
        %2532 = vmatpush1.msra.mxu0 0.0
        %2533 = vmatprep.subr.mxu0 0.0
        %2534 = vmatpush1.msra.mxu0 0.0
        %2535 = vmatprep.subr.mxu0 0.0
        %2536 = vmatpush1.msra.mxu0 0.0
        %2537 = vmatprep.subr.mxu0 0.0
        %2538 = vmatpush1.msra.mxu0 0.0
        %2539 = vmatprep.subr.mxu0 0.0
        %2540 = vmatpush1.msra.mxu0 0.0
        %2541 = vmatprep.subr.mxu0 0.0
        %2542 = vmatpush1.msra.mxu0 0.0
        %2543 = vmatprep.subr.mxu0 0.0
        %2544 = vmatpush1.msra.mxu0 0.0
        %2545 = vmatprep.subr.mxu0 0.0
        %2546 = vmatpush1.msra.mxu0 0.0
        %2547 = vmatprep.subr.mxu0 0.0
        %2548 = vmatpush1.msra.mxu0 0.0
        %2549 = vmatprep.subr.mxu0 0.0
        %2550 = vmatpush1.msra.mxu0 %v2418
        %2551 = vmatprep.subr.mxu0 0.0
        %2552 = vmatpush2.msra.mxu0 0.0
        %2553 = vmatprep.subr.mxu0 0.0
        %2554 = vmatpush2.msra.mxu0 0.0
        %2555 = vmatprep.subr.mxu0 0.0
        %2556 = vmatpush2.msra.mxu0 0.0
        %2557 = vmatprep.subr.mxu0 0.0
        %2558 = vmatpush2.msra.mxu0 0.0
        %2559 = vmatprep.subr.mxu0 0.0
        %2560 = vmatpush2.msra.mxu0 0.0
        %2561 = vmatprep.subr.mxu0 0.0
        %2562 = vmatpush2.msra.mxu0 0.0
        %2563 = vmatprep.subr.mxu0 0.0
        %2564 = vmatpush2.msra.mxu0 0.0
        %2565 = vmatprep.subr.mxu0 0.0
        %2566 = vmatpush2.msra.mxu0 0.0
        %2567 = vmatprep.subr.mxu0 0.0
        %2568 = vmatpush2.msra.mxu0 0.0
        %2569 = vmatprep.subr.mxu0 0.0
        %2570 = vmatpush2.msra.mxu0 0.0
        %2571 = vmatprep.subr.mxu0 0.0
        %2572 = vmatpush2.msra.mxu0 0.0
        %2573 = vmatprep.subr.mxu0 0.0
        %2574 = vmatpush2.msra.mxu0 0.0
        %2575 = vmatprep.subr.mxu0 0.0
        %2576 = vmatpush2.msra.mxu0 0.0
        %2577 = vmatprep.subr.mxu0 0.0
        %2578 = vmatpush2.msra.mxu0 0.0
        %2579 = vmatprep.subr.mxu0 0.0
        %2580 = vmatpush2.msra.mxu0 0.0
        %2581 = vmatprep.subr.mxu0 0.0
        %2582 = vmatpush2.msra.mxu0 0.0
        %2583 = vmatprep.mubr.f32.mxu0 0.0
        %2584 = vmatmul.mubr.f32.gmra.mxu0 %v2514
        %v2585 = vpop.f32.mrf.mxu0
        %v2586 = vadd.f32 0.0, %v2585
        %v2587 = vpop.f32.mrf.mxu0
        %2588 = vmatprep.mubr.f32.mxu0 0.0
        %2589 = vmatmul.mubr.f32.gmra.mxu0 %v2517
        %v2590 = vpop.f32.mrf.mxu0
        %v2591 = vadd.f32 0.0, %v2590
        %v2592 = vpop.f32.mrf.mxu0
        %2593 = vdwg.mxu0
        %s2594 = scalar_lea.vmem [#allocation7], 64
        %v2595 = vld [vmem:[%s2594] sm:$0xff]
        %v2596 = vld [vmem:[%s2594 + $0x8] sm:$0xff]
        %v2597 = vld [vmem:[%s2594 + $0x10] sm:$0xff]
        %v2598 = vld [vmem:[%s2594 + $0x18] sm:$0xff]
        %v2599 = vld [vmem:[%s2594 + $0x20] sm:$0xff]
        %v2600 = vld [vmem:[%s2594 + $0x28] sm:$0xff]
        %v2601 = vld [vmem:[%s2594 + $0x30] sm:$0xff]
        %v2602 = vld [vmem:[%s2594 + $0x38] sm:$0xff]
        %v2604 = vsel %vm667, %v2586, 0
        %v2607 = vsel %vm667, %v2591, 0
        %2609 = vmatprep.subr.mxu0 0.0
        %2610 = vmatpush1.msra.mxu0 0.0
        %2611 = vmatprep.subr.mxu0 0.0
        %2612 = vmatpush1.msra.mxu0 0.0
        %2613 = vmatprep.subr.mxu0 0.0
        %2614 = vmatpush1.msra.mxu0 0.0
        %2615 = vmatprep.subr.mxu0 0.0
        %2616 = vmatpush1.msra.mxu0 0.0
        %2617 = vmatprep.subr.mxu0 0.0
        %2618 = vmatpush1.msra.mxu0 0.0
        %2619 = vmatprep.subr.mxu0 0.0
        %2620 = vmatpush1.msra.mxu0 0.0
        %2621 = vmatprep.subr.mxu0 0.0
        %2622 = vmatpush1.msra.mxu0 0.0
        %2623 = vmatprep.subr.mxu0 0.0
        %2624 = vmatpush1.msra.mxu0 0.0
        %2625 = vmatprep.subr.mxu0 0.0
        %2626 = vmatpush1.msra.mxu0 %v2602
        %2627 = vmatprep.subr.mxu0 0.0
        %2628 = vmatpush1.msra.mxu0 %v2601
        %2629 = vmatprep.subr.mxu0 0.0
        %2630 = vmatpush1.msra.mxu0 %v2600
        %2631 = vmatprep.subr.mxu0 0.0
        %2632 = vmatpush1.msra.mxu0 %v2599
        %2633 = vmatprep.subr.mxu0 0.0
        %2634 = vmatpush1.msra.mxu0 %v2598
        %2635 = vmatprep.subr.mxu0 0.0
        %2636 = vmatpush1.msra.mxu0 %v2597
        %2637 = vmatprep.subr.mxu0 0.0
        %2638 = vmatpush1.msra.mxu0 %v2596
        %2639 = vmatprep.subr.mxu0 0.0
        %2640 = vmatpush1.msra.mxu0 %v2595
        %2641 = vmatprep.subr.mxu0 0.0
        %2642 = vmatpush2.msra.mxu0 0.0
        %2643 = vmatprep.subr.mxu0 0.0
        %2644 = vmatpush2.msra.mxu0 0.0
        %2645 = vmatprep.subr.mxu0 0.0
        %2646 = vmatpush2.msra.mxu0 0.0
        %2647 = vmatprep.subr.mxu0 0.0
        %2648 = vmatpush2.msra.mxu0 0.0
        %2649 = vmatprep.subr.mxu0 0.0
        %2650 = vmatpush2.msra.mxu0 0.0
        %2651 = vmatprep.subr.mxu0 0.0
        %2652 = vmatpush2.msra.mxu0 0.0
        %2653 = vmatprep.subr.mxu0 0.0
        %2654 = vmatpush2.msra.mxu0 0.0
        %2655 = vmatprep.subr.mxu0 0.0
        %2656 = vmatpush2.msra.mxu0 0.0
        %2657 = vmatprep.subr.mxu0 0.0
        %2658 = vmatpush2.msra.mxu0 0.0
        %2659 = vmatprep.subr.mxu0 0.0
        %2660 = vmatpush2.msra.mxu0 0.0
        %2661 = vmatprep.subr.mxu0 0.0
        %2662 = vmatpush2.msra.mxu0 0.0
        %2663 = vmatprep.subr.mxu0 0.0
        %2664 = vmatpush2.msra.mxu0 0.0
        %2665 = vmatprep.subr.mxu0 0.0
        %2666 = vmatpush2.msra.mxu0 0.0
        %2667 = vmatprep.subr.mxu0 0.0
        %2668 = vmatpush2.msra.mxu0 0.0
        %2669 = vmatprep.subr.mxu0 0.0
        %2670 = vmatpush2.msra.mxu0 0.0
        %2671 = vmatprep.subr.mxu0 0.0
        %2672 = vmatpush2.msra.mxu0 0.0
        %2673 = vmatprep.mubr.f32.mxu0 0.0
        %2674 = vmatmul.mubr.f32.gmra.mxu0 %v2604
        %v2675 = vpop.f32.mrf.mxu0
        %v2676 = vadd.f32 0.0, %v2675
        %v2677 = vpop.f32.mrf.mxu0
        %2678 = vmatprep.mubr.f32.mxu0 0.0
        %2679 = vmatmul.mubr.f32.gmra.mxu0 %v2607
        %v2680 = vpop.f32.mrf.mxu0
        %v2681 = vadd.f32 0.0, %v2680
        %v2682 = vpop.f32.mrf.mxu0
        %2683 = vdwg.mxu0
        %v2685 = vsel %vm667, %v2494, 0
        %v2688 = vsel %vm667, %v2499, 0
        %2690 = vmatprep.subr.mxu0 0.0
        %2691 = vmatpush1.msra.mxu0 0.0
        %2692 = vmatprep.subr.mxu0 0.0
        %2693 = vmatpush1.msra.mxu0 0.0
        %2694 = vmatprep.subr.mxu0 0.0
        %2695 = vmatpush1.msra.mxu0 0.0
        %2696 = vmatprep.subr.mxu0 0.0
        %2697 = vmatpush1.msra.mxu0 0.0
        %2698 = vmatprep.subr.mxu0 0.0
        %2699 = vmatpush1.msra.mxu0 0.0
        %2700 = vmatprep.subr.mxu0 0.0
        %2701 = vmatpush1.msra.mxu0 0.0
        %2702 = vmatprep.subr.mxu0 0.0
        %2703 = vmatpush1.msra.mxu0 0.0
        %2704 = vmatprep.subr.mxu0 0.0
        %2705 = vmatpush1.msra.mxu0 0.0
        %2706 = vmatprep.subr.mxu0 0.0
        %2707 = vmatpush1.msra.mxu0 %v2509
        %2708 = vmatprep.subr.mxu0 0.0
        %2709 = vmatpush1.msra.mxu0 %v2508
        %2710 = vmatprep.subr.mxu0 0.0
        %2711 = vmatpush1.msra.mxu0 %v2507
        %2712 = vmatprep.subr.mxu0 0.0
        %2713 = vmatpush1.msra.mxu0 %v2506
        %2714 = vmatprep.subr.mxu0 0.0
        %2715 = vmatpush1.msra.mxu0 %v2505
        %2716 = vmatprep.subr.mxu0 0.0
        %2717 = vmatpush1.msra.mxu0 %v2504
        %2718 = vmatprep.subr.mxu0 0.0
        %2719 = vmatpush1.msra.mxu0 %v2503
        %2720 = vmatprep.subr.mxu0 0.0
        %2721 = vmatpush1.msra.mxu0 %v2502
        %2722 = vmatprep.subr.mxu0 0.0
        %2723 = vmatpush2.msra.mxu0 0.0
        %2724 = vmatprep.subr.mxu0 0.0
        %2725 = vmatpush2.msra.mxu0 0.0
        %2726 = vmatprep.subr.mxu0 0.0
        %2727 = vmatpush2.msra.mxu0 0.0
        %2728 = vmatprep.subr.mxu0 0.0
        %2729 = vmatpush2.msra.mxu0 0.0
        %2730 = vmatprep.subr.mxu0 0.0
        %2731 = vmatpush2.msra.mxu0 0.0
        %2732 = vmatprep.subr.mxu0 0.0
        %2733 = vmatpush2.msra.mxu0 0.0
        %2734 = vmatprep.subr.mxu0 0.0
        %2735 = vmatpush2.msra.mxu0 0.0
        %2736 = vmatprep.subr.mxu0 0.0
        %2737 = vmatpush2.msra.mxu0 0.0
        %2738 = vmatprep.subr.mxu0 0.0
        %2739 = vmatpush2.msra.mxu0 0.0
        %2740 = vmatprep.subr.mxu0 0.0
        %2741 = vmatpush2.msra.mxu0 0.0
        %2742 = vmatprep.subr.mxu0 0.0
        %2743 = vmatpush2.msra.mxu0 0.0
        %2744 = vmatprep.subr.mxu0 0.0
        %2745 = vmatpush2.msra.mxu0 0.0
        %2746 = vmatprep.subr.mxu0 0.0
        %2747 = vmatpush2.msra.mxu0 0.0
        %2748 = vmatprep.subr.mxu0 0.0
        %2749 = vmatpush2.msra.mxu0 0.0
        %2750 = vmatprep.subr.mxu0 0.0
        %2751 = vmatpush2.msra.mxu0 0.0
        %2752 = vmatprep.subr.mxu0 0.0
        %2753 = vmatpush2.msra.mxu0 0.0
        %2754 = vmatprep.mubr.f32.mxu0 0.0
        %2755 = vmatmul.mubr.f32.gmra.mxu0 %v2685
        %v2756 = vpop.f32.mrf.mxu0
        %v2757 = vadd.f32 %v2676, %v2756
        %v2758 = vpop.f32.mrf.mxu0
        %2759 = vmatprep.mubr.f32.mxu0 0.0
        %2760 = vmatmul.mubr.f32.gmra.mxu0 %v2688
        %v2761 = vpop.f32.mrf.mxu0
        %v2762 = vadd.f32 %v2681, %v2761
        %v2763 = vpop.f32.mrf.mxu0
        %2764 = vdwg.mxu0
        %s2765 = scalar_lea.vmem %s10, 32
        %v2766 = vld [vmem:[%s2765] sm:$0xff]
        %v2767 = vld [vmem:[%s2765 + $0x8] sm:$0xff]
        %v2769 = vsel %vm1140, %v2766, 0
        %v2772 = vsel %vm1140, %v2767, 0
        %2774 = vmatprep.subr.mxu0 0.0
        %2775 = vmatpush1.msra.mxu0 0.0
        %2776 = vmatprep.subr.mxu0 0.0
        %2777 = vmatpush1.msra.mxu0 0.0
        %2778 = vmatprep.subr.mxu0 0.0
        %2779 = vmatpush1.msra.mxu0 0.0
        %2780 = vmatprep.subr.mxu0 0.0
        %2781 = vmatpush1.msra.mxu0 0.0
        %2782 = vmatprep.subr.mxu0 0.0
        %2783 = vmatpush1.msra.mxu0 0.0
        %2784 = vmatprep.subr.mxu0 0.0
        %2785 = vmatpush1.msra.mxu0 0.0
        %2786 = vmatprep.subr.mxu0 0.0
        %2787 = vmatpush1.msra.mxu0 0.0
        %2788 = vmatprep.subr.mxu0 0.0
        %2789 = vmatpush1.msra.mxu0 0.0
        %2790 = vmatprep.subr.mxu0 0.0
        %2791 = vmatpush1.msra.mxu0 0.0
        %2792 = vmatprep.subr.mxu0 0.0
        %2793 = vmatpush1.msra.mxu0 0.0
        %2794 = vmatprep.subr.mxu0 0.0
        %2795 = vmatpush1.msra.mxu0 0.0
        %2796 = vmatprep.subr.mxu0 0.0
        %2797 = vmatpush1.msra.mxu0 0.0
        %2798 = vmatprep.subr.mxu0 0.0
        %2799 = vmatpush1.msra.mxu0 0.0
        %2800 = vmatprep.subr.mxu0 0.0
        %2801 = vmatpush1.msra.mxu0 0.0
        %2802 = vmatprep.subr.mxu0 0.0
        %2803 = vmatpush1.msra.mxu0 0.0
        %2804 = vmatprep.subr.mxu0 0.0
        %2805 = vmatpush1.msra.mxu0 %v2418
        %2806 = vmatprep.subr.mxu0 0.0
        %2807 = vmatpush2.msra.mxu0 0.0
        %2808 = vmatprep.subr.mxu0 0.0
        %2809 = vmatpush2.msra.mxu0 0.0
        %2810 = vmatprep.subr.mxu0 0.0
        %2811 = vmatpush2.msra.mxu0 0.0
        %2812 = vmatprep.subr.mxu0 0.0
        %2813 = vmatpush2.msra.mxu0 0.0
        %2814 = vmatprep.subr.mxu0 0.0
        %2815 = vmatpush2.msra.mxu0 0.0
        %2816 = vmatprep.subr.mxu0 0.0
        %2817 = vmatpush2.msra.mxu0 0.0
        %2818 = vmatprep.subr.mxu0 0.0
        %2819 = vmatpush2.msra.mxu0 0.0
        %2820 = vmatprep.subr.mxu0 0.0
        %2821 = vmatpush2.msra.mxu0 0.0
        %2822 = vmatprep.subr.mxu0 0.0
        %2823 = vmatpush2.msra.mxu0 0.0
        %2824 = vmatprep.subr.mxu0 0.0
        %2825 = vmatpush2.msra.mxu0 0.0
        %2826 = vmatprep.subr.mxu0 0.0
        %2827 = vmatpush2.msra.mxu0 0.0
        %2828 = vmatprep.subr.mxu0 0.0
        %2829 = vmatpush2.msra.mxu0 0.0
        %2830 = vmatprep.subr.mxu0 0.0
        %2831 = vmatpush2.msra.mxu0 0.0
        %2832 = vmatprep.subr.mxu0 0.0
        %2833 = vmatpush2.msra.mxu0 0.0
        %2834 = vmatprep.subr.mxu0 0.0
        %2835 = vmatpush2.msra.mxu0 0.0
        %2836 = vmatprep.subr.mxu0 0.0
        %2837 = vmatpush2.msra.mxu0 0.0
        %2838 = vmatprep.mubr.f32.mxu0 0.0
        %2839 = vmatmul.mubr.f32.gmra.mxu0 %v2769
        %v2840 = vpop.f32.mrf.mxu0
        %v2841 = vadd.f32 0.0, %v2840
        %v2842 = vpop.f32.mrf.mxu0
        %2843 = vmatprep.mubr.f32.mxu0 0.0
        %2844 = vmatmul.mubr.f32.gmra.mxu0 %v2772
        %v2845 = vpop.f32.mrf.mxu0
        %v2846 = vadd.f32 0.0, %v2845
        %v2847 = vpop.f32.mrf.mxu0
        %2848 = vdwg.mxu0
        %s2849 = scalar_lea.vmem [#allocation7], 128
        %v2850 = vld [vmem:[%s2849] sm:$0xff]
        %v2851 = vld [vmem:[%s2849 + $0x8] sm:$0xff]
        %v2852 = vld [vmem:[%s2849 + $0x10] sm:$0xff]
        %v2853 = vld [vmem:[%s2849 + $0x18] sm:$0xff]
        %v2854 = vld [vmem:[%s2849 + $0x20] sm:$0xff]
        %v2855 = vld [vmem:[%s2849 + $0x28] sm:$0xff]
        %v2856 = vld [vmem:[%s2849 + $0x30] sm:$0xff]
        %v2857 = vld [vmem:[%s2849 + $0x38] sm:$0xff]
        %v2859 = vsel %vm667, %v2841, 0
        %v2862 = vsel %vm667, %v2846, 0
        %2864 = vmatprep.subr.mxu0 0.0
        %2865 = vmatpush1.msra.mxu0 0.0
        %2866 = vmatprep.subr.mxu0 0.0
        %2867 = vmatpush1.msra.mxu0 0.0
        %2868 = vmatprep.subr.mxu0 0.0
        %2869 = vmatpush1.msra.mxu0 0.0
        %2870 = vmatprep.subr.mxu0 0.0
        %2871 = vmatpush1.msra.mxu0 0.0
        %2872 = vmatprep.subr.mxu0 0.0
        %2873 = vmatpush1.msra.mxu0 0.0
        %2874 = vmatprep.subr.mxu0 0.0
        %2875 = vmatpush1.msra.mxu0 0.0
        %2876 = vmatprep.subr.mxu0 0.0
        %2877 = vmatpush1.msra.mxu0 0.0
        %2878 = vmatprep.subr.mxu0 0.0
        %2879 = vmatpush1.msra.mxu0 0.0
        %2880 = vmatprep.subr.mxu0 0.0
        %2881 = vmatpush1.msra.mxu0 %v2857
        %2882 = vmatprep.subr.mxu0 0.0
        %2883 = vmatpush1.msra.mxu0 %v2856
        %2884 = vmatprep.subr.mxu0 0.0
        %2885 = vmatpush1.msra.mxu0 %v2855
        %2886 = vmatprep.subr.mxu0 0.0
        %2887 = vmatpush1.msra.mxu0 %v2854
        %2888 = vmatprep.subr.mxu0 0.0
        %2889 = vmatpush1.msra.mxu0 %v2853
        %2890 = vmatprep.subr.mxu0 0.0
        %2891 = vmatpush1.msra.mxu0 %v2852
        %2892 = vmatprep.subr.mxu0 0.0
        %2893 = vmatpush1.msra.mxu0 %v2851
        %2894 = vmatprep.subr.mxu0 0.0
        %2895 = vmatpush1.msra.mxu0 %v2850
        %2896 = vmatprep.subr.mxu0 0.0
        %2897 = vmatpush2.msra.mxu0 0.0
        %2898 = vmatprep.subr.mxu0 0.0
        %2899 = vmatpush2.msra.mxu0 0.0
        %2900 = vmatprep.subr.mxu0 0.0
        %2901 = vmatpush2.msra.mxu0 0.0
        %2902 = vmatprep.subr.mxu0 0.0
        %2903 = vmatpush2.msra.mxu0 0.0
        %2904 = vmatprep.subr.mxu0 0.0
        %2905 = vmatpush2.msra.mxu0 0.0
        %2906 = vmatprep.subr.mxu0 0.0
        %2907 = vmatpush2.msra.mxu0 0.0
        %2908 = vmatprep.subr.mxu0 0.0
        %2909 = vmatpush2.msra.mxu0 0.0
        %2910 = vmatprep.subr.mxu0 0.0
        %2911 = vmatpush2.msra.mxu0 0.0
        %2912 = vmatprep.subr.mxu0 0.0
        %2913 = vmatpush2.msra.mxu0 0.0
        %2914 = vmatprep.subr.mxu0 0.0
        %2915 = vmatpush2.msra.mxu0 0.0
        %2916 = vmatprep.subr.mxu0 0.0
        %2917 = vmatpush2.msra.mxu0 0.0
        %2918 = vmatprep.subr.mxu0 0.0
        %2919 = vmatpush2.msra.mxu0 0.0
        %2920 = vmatprep.subr.mxu0 0.0
        %2921 = vmatpush2.msra.mxu0 0.0
        %2922 = vmatprep.subr.mxu0 0.0
        %2923 = vmatpush2.msra.mxu0 0.0
        %2924 = vmatprep.subr.mxu0 0.0
        %2925 = vmatpush2.msra.mxu0 0.0
        %2926 = vmatprep.subr.mxu0 0.0
        %2927 = vmatpush2.msra.mxu0 0.0
        %2928 = vmatprep.mubr.f32.mxu0 0.0
        %2929 = vmatmul.mubr.f32.gmra.mxu0 %v2859
        %v2930 = vpop.f32.mrf.mxu0
        %v2931 = vadd.f32 0.0, %v2930
        %v2932 = vpop.f32.mrf.mxu0
        %2933 = vmatprep.mubr.f32.mxu0 0.0
        %2934 = vmatmul.mubr.f32.gmra.mxu0 %v2862
        %v2935 = vpop.f32.mrf.mxu0
        %v2936 = vadd.f32 0.0, %v2935
        %v2937 = vpop.f32.mrf.mxu0
        %2938 = vdwg.mxu0
        %v2939 = vadd.f32 %v2757, %v2931
        %v2940 = vadd.f32 %v2762, %v2936
        %s2941 = scalar_lea.vmem %s10, 48
        %v2942 = vld [vmem:[%s2941] sm:$0xff]
        %v2943 = vld [vmem:[%s2941 + $0x8] sm:$0xff]
        %v2945 = vsel %vm1140, %v2942, 0
        %v2948 = vsel %vm1140, %v2943, 0
        %2950 = vmatprep.subr.mxu0 0.0
        %2951 = vmatpush1.msra.mxu0 0.0
        %2952 = vmatprep.subr.mxu0 0.0
        %2953 = vmatpush1.msra.mxu0 0.0
        %2954 = vmatprep.subr.mxu0 0.0
        %2955 = vmatpush1.msra.mxu0 0.0
        %2956 = vmatprep.subr.mxu0 0.0
        %2957 = vmatpush1.msra.mxu0 0.0
        %2958 = vmatprep.subr.mxu0 0.0
        %2959 = vmatpush1.msra.mxu0 0.0
        %2960 = vmatprep.subr.mxu0 0.0
        %2961 = vmatpush1.msra.mxu0 0.0
        %2962 = vmatprep.subr.mxu0 0.0
        %2963 = vmatpush1.msra.mxu0 0.0
        %2964 = vmatprep.subr.mxu0 0.0
        %2965 = vmatpush1.msra.mxu0 0.0
        %2966 = vmatprep.subr.mxu0 0.0
        %2967 = vmatpush1.msra.mxu0 0.0
        %2968 = vmatprep.subr.mxu0 0.0
        %2969 = vmatpush1.msra.mxu0 0.0
        %2970 = vmatprep.subr.mxu0 0.0
        %2971 = vmatpush1.msra.mxu0 0.0
        %2972 = vmatprep.subr.mxu0 0.0
        %2973 = vmatpush1.msra.mxu0 0.0
        %2974 = vmatprep.subr.mxu0 0.0
        %2975 = vmatpush1.msra.mxu0 0.0
        %2976 = vmatprep.subr.mxu0 0.0
        %2977 = vmatpush1.msra.mxu0 0.0
        %2978 = vmatprep.subr.mxu0 0.0
        %2979 = vmatpush1.msra.mxu0 0.0
        %2980 = vmatprep.subr.mxu0 0.0
        %2981 = vmatpush1.msra.mxu0 %v2418
        %2982 = vmatprep.subr.mxu0 0.0
        %2983 = vmatpush2.msra.mxu0 0.0
        %2984 = vmatprep.subr.mxu0 0.0
        %2985 = vmatpush2.msra.mxu0 0.0
        %2986 = vmatprep.subr.mxu0 0.0
        %2987 = vmatpush2.msra.mxu0 0.0
        %2988 = vmatprep.subr.mxu0 0.0
        %2989 = vmatpush2.msra.mxu0 0.0
        %2990 = vmatprep.subr.mxu0 0.0
        %2991 = vmatpush2.msra.mxu0 0.0
        %2992 = vmatprep.subr.mxu0 0.0
        %2993 = vmatpush2.msra.mxu0 0.0
        %2994 = vmatprep.subr.mxu0 0.0
        %2995 = vmatpush2.msra.mxu0 0.0
        %2996 = vmatprep.subr.mxu0 0.0
        %2997 = vmatpush2.msra.mxu0 0.0
        %2998 = vmatprep.subr.mxu0 0.0
        %2999 = vmatpush2.msra.mxu0 0.0
        %3000 = vmatprep.subr.mxu0 0.0
        %3001 = vmatpush2.msra.mxu0 0.0
        %3002 = vmatprep.subr.mxu0 0.0
        %3003 = vmatpush2.msra.mxu0 0.0
        %3004 = vmatprep.subr.mxu0 0.0
        %3005 = vmatpush2.msra.mxu0 0.0
        %3006 = vmatprep.subr.mxu0 0.0
        %3007 = vmatpush2.msra.mxu0 0.0
        %3008 = vmatprep.subr.mxu0 0.0
        %3009 = vmatpush2.msra.mxu0 0.0
        %3010 = vmatprep.subr.mxu0 0.0
        %3011 = vmatpush2.msra.mxu0 0.0
        %3012 = vmatprep.subr.mxu0 0.0
        %3013 = vmatpush2.msra.mxu0 0.0
        %3014 = vmatprep.mubr.f32.mxu0 0.0
        %3015 = vmatmul.mubr.f32.gmra.mxu0 %v2945
        %v3016 = vpop.f32.mrf.mxu0
        %v3017 = vadd.f32 0.0, %v3016
        %v3018 = vpop.f32.mrf.mxu0
        %3019 = vmatprep.mubr.f32.mxu0 0.0
        %3020 = vmatmul.mubr.f32.gmra.mxu0 %v2948
        %v3021 = vpop.f32.mrf.mxu0
        %v3022 = vadd.f32 0.0, %v3021
        %v3023 = vpop.f32.mrf.mxu0
        %3024 = vdwg.mxu0
        %s3025 = scalar_lea.vmem [#allocation7], 192
        %v3026 = vld [vmem:[%s3025] sm:$0xff]
        %v3027 = vld [vmem:[%s3025 + $0x8] sm:$0xff]
        %v3028 = vld [vmem:[%s3025 + $0x10] sm:$0xff]
        %v3029 = vld [vmem:[%s3025 + $0x18] sm:$0xff]
        %v3030 = vld [vmem:[%s3025 + $0x20] sm:$0xff]
        %v3031 = vld [vmem:[%s3025 + $0x28] sm:$0xff]
        %v3032 = vld [vmem:[%s3025 + $0x30] sm:$0xff]
        %v3033 = vld [vmem:[%s3025 + $0x38] sm:$0xff]
        %v3035 = vsel %vm667, %v3017, 0
        %v3038 = vsel %vm667, %v3022, 0
        %3040 = vmatprep.subr.mxu0 0.0
        %3041 = vmatpush1.msra.mxu0 0.0
        %3042 = vmatprep.subr.mxu0 0.0
        %3043 = vmatpush1.msra.mxu0 0.0
        %3044 = vmatprep.subr.mxu0 0.0
        %3045 = vmatpush1.msra.mxu0 0.0
        %3046 = vmatprep.subr.mxu0 0.0
        %3047 = vmatpush1.msra.mxu0 0.0
        %3048 = vmatprep.subr.mxu0 0.0
        %3049 = vmatpush1.msra.mxu0 0.0
        %3050 = vmatprep.subr.mxu0 0.0
        %3051 = vmatpush1.msra.mxu0 0.0
        %3052 = vmatprep.subr.mxu0 0.0
        %3053 = vmatpush1.msra.mxu0 0.0
        %3054 = vmatprep.subr.mxu0 0.0
        %3055 = vmatpush1.msra.mxu0 0.0
        %3056 = vmatprep.subr.mxu0 0.0
        %3057 = vmatpush1.msra.mxu0 %v3033
        %3058 = vmatprep.subr.mxu0 0.0
        %3059 = vmatpush1.msra.mxu0 %v3032
        %3060 = vmatprep.subr.mxu0 0.0
        %3061 = vmatpush1.msra.mxu0 %v3031
        %3062 = vmatprep.subr.mxu0 0.0
        %3063 = vmatpush1.msra.mxu0 %v3030
        %3064 = vmatprep.subr.mxu0 0.0
        %3065 = vmatpush1.msra.mxu0 %v3029
        %3066 = vmatprep.subr.mxu0 0.0
        %3067 = vmatpush1.msra.mxu0 %v3028
        %3068 = vmatprep.subr.mxu0 0.0
        %3069 = vmatpush1.msra.mxu0 %v3027
        %3070 = vmatprep.subr.mxu0 0.0
        %3071 = vmatpush1.msra.mxu0 %v3026
        %3072 = vmatprep.subr.mxu0 0.0
        %3073 = vmatpush2.msra.mxu0 0.0
        %3074 = vmatprep.subr.mxu0 0.0
        %3075 = vmatpush2.msra.mxu0 0.0
        %3076 = vmatprep.subr.mxu0 0.0
        %3077 = vmatpush2.msra.mxu0 0.0
        %3078 = vmatprep.subr.mxu0 0.0
        %3079 = vmatpush2.msra.mxu0 0.0
        %3080 = vmatprep.subr.mxu0 0.0
        %3081 = vmatpush2.msra.mxu0 0.0
        %3082 = vmatprep.subr.mxu0 0.0
        %3083 = vmatpush2.msra.mxu0 0.0
        %3084 = vmatprep.subr.mxu0 0.0
        %3085 = vmatpush2.msra.mxu0 0.0
        %3086 = vmatprep.subr.mxu0 0.0
        %3087 = vmatpush2.msra.mxu0 0.0
        %3088 = vmatprep.subr.mxu0 0.0
        %3089 = vmatpush2.msra.mxu0 0.0
        %3090 = vmatprep.subr.mxu0 0.0
        %3091 = vmatpush2.msra.mxu0 0.0
        %3092 = vmatprep.subr.mxu0 0.0
        %3093 = vmatpush2.msra.mxu0 0.0
        %3094 = vmatprep.subr.mxu0 0.0
        %3095 = vmatpush2.msra.mxu0 0.0
        %3096 = vmatprep.subr.mxu0 0.0
        %3097 = vmatpush2.msra.mxu0 0.0
        %3098 = vmatprep.subr.mxu0 0.0
        %3099 = vmatpush2.msra.mxu0 0.0
        %3100 = vmatprep.subr.mxu0 0.0
        %3101 = vmatpush2.msra.mxu0 0.0
        %3102 = vmatprep.subr.mxu0 0.0
        %3103 = vmatpush2.msra.mxu0 0.0
        %3104 = vmatprep.mubr.f32.mxu0 0.0
        %3105 = vmatmul.mubr.f32.gmra.mxu0 %v3035
        %v3106 = vpop.f32.mrf.mxu0
        %v3107 = vadd.f32 0.0, %v3106
        %v3108 = vpop.f32.mrf.mxu0
        %3109 = vmatprep.mubr.f32.mxu0 0.0
        %3110 = vmatmul.mubr.f32.gmra.mxu0 %v3038
        %v3111 = vpop.f32.mrf.mxu0
        %v3112 = vadd.f32 0.0, %v3111
        %v3113 = vpop.f32.mrf.mxu0
        %3114 = vdwg.mxu0
        %v3115 = vadd.f32 %v2939, %v3107
        %v3116 = vadd.f32 %v2940, %v3112
        %v3117 = vld [vmem:[%s12] sm:$0x1]
        %v3119 = vlaneseq
        %v3120 = vshrl.u32 %v3119, 7
        %v3121 = vsub.s32 0, %v3120
        %v3122 = vrot.slane %v3117, %v3121
        %v3124 = vadd.f32 %v3115, %v3122
        %v3125 = vadd.f32 %v3116, %v3122
        %v3126 = vmax.f32 %v3124, 0.0
        %v3127 = vmax.f32 %v3125, 0.0
        %3128 = vst.msk [vmem:[%s497] sm:$0xff] %vm667, %v3126
        %3129 = vst.msk [vmem:[%s497 + $0x8] sm:$0xff] %vm667, %v3127
        %p3130 = scmp.lt.s32.totalorder %s27, 1
        %s3131 = scalar_select %p3130, %s27, 1
        %s3132 = smul.addr %s3131, 2
        %s3133 = smul.addr %s3132, 8
        %s3134 = scalar_lea.vmem %s13, %s3133
        // Predicated region
        $region89: #{forward.1} parent=71 // pred_check
          %p3135 = pneg %p323
        $region90: #{forward.1} parent=71 // pred_check_branch
          %3137 = sbr.rel (%p3135) target = $region92
        $region91: #{forward.1} parent=71 // pred_region
          _
        $region92: #{forward.1} parent=71 // pred_fallthru
          _
      $region72: #{forward.1} parent=5 // pred_fallthru
        _
      %p3138 = scmp.le.s32.totalorder 2, %s22
      // Predicated region
      $region93: #{forward.1} parent=5 // pred_check
        %p3139 = pneg %p3138
      $region94: #{forward.1} parent=5 // pred_check_branch
        %3141 = sbr.rel (%p3139) target = $region96
      $region95: #{forward.1} parent=5 // pred_region
        %s3142 = ssub.s32 %s22, 2
        // Predicated region
        $region97: #{forward.1} parent=95 // pred_check
          %p3143 = pneg %p329
        $region98: #{forward.1} parent=95 // pred_check_branch
          %3145 = sbr.rel (%p3143) target = $region100
        $region99: #{forward.1} parent=95 // pred_region
          %p3146 = scmp.lt.s32.totalorder %s28, 1
          %s3147 = scalar_select %p3146, %s28, 1
          %s3148 = smul.addr %s3147, 2
          %s3149 = smul.addr %s3148, 8
          %s3150 = scalar_lea.vmem %s13, %s3149
        $region100: #{forward.1} parent=95 // pred_fallthru
          _
      $region96: #{forward.1} parent=5 // pred_fallthru
        _
    $region6: #{forward.1} parent=1 // loop_footer
      %s26 = sadd.s32 1, %s22
    $region7: #{forward.1} parent=1 // loop_footer_branch
      %21 = sbr.rel target = $region3
    $region8: #{forward.1} parent=1 // loop_exit
      _
    %3151 = vsyncpa [#allocation3], 1
    %s3152 = scalar_lea.sflag [#allocation3], 1
    %3153 = vsyncpa %s3152, 1
    %3154 = vsyncpa [#allocation5], 1
    %3155 = vsyncpa [#allocation8], 1

</llo_original>
